<compile_context>
chip_gen: v5e
topology: v5e:2x2
jax: 0.10.0
libtpu: 0.0.40
codegen_flags: <defaults>
</compile_context>

<pallas_src>
import functools

import numpy as np
import jax
import jax.numpy as jnp
from jax import lax
from jax.experimental import pallas as pl
from jax.experimental.pallas import tpu as pltpu

EPS = 1e-5


def _dense_block_kernel(x_ref, mask_ref, scale_ref, shift_ref, w_ref, o_ref,
                        feat_ref, act_ref, *, Wp, Lr):
    """One grid step = one (image, layer) pair.

    feat_ref : (Rtot, C_pad) f32  raw (pre-BN) features, flat padded layout,
               internal channel order [x0, out_0, out_1, ...]; persists across
               the layer axis.
    act_ref  : (Rtot, C_pad) f32  BN+ReLU activations with zero halo.
    """
    l = pl.program_id(1)

    # Load the image into the resident feature buffer once per image.
    @pl.when(l == 0)
    def _():
        feat_ref[...] = x_ref[0]

    # ---- BatchNorm (folded scale/shift) + ReLU, halo forced to zero --------
    # scale/shift are zero for not-yet-live channels, so those lanes stay 0.
    y = jnp.maximum(feat_ref[...] * scale_ref[0] + shift_ref[0], 0.0)
    act_ref[...] = y * mask_ref[...]          # mask is (Rtot, 1), lane-bcast

    # ---- 3x3 conv = 9 accumulating MXU matmuls on contiguous row slabs -----
    # Output row r (= y*Wp + x) of tap (dy,dx) reads input row r + dy*Wp + dx,
    # so each tap's LHS is a single contiguous slab of the flat image.
    acc = None
    for dy in range(3):
        for dx in range(3):
            lhs = act_ref[pl.ds(dy * Wp + dx, Lr), :].astype(jnp.bfloat16)
            d = jnp.dot(lhs, w_ref[0, dy * 3 + dx],
                        preferred_element_type=jnp.float32)
            acc = d if acc is None else acc + d

    # ---- "concat" --------------------------------------------------------
    # Weight columns are zero outside this layer's output-channel slot, so a
    # full-width, lane-dense add writes the new channels in place and leaves
    # existing channels untouched.  Junk (wrap-column) rows only land on halo
    # positions, which the mask zeroes before the next layer's conv.
    base = Wp + 1
    feat_ref[pl.ds(base, Lr), :] = feat_ref[pl.ds(base, Lr), :] + acc

    # Store once per image, after the last layer (lane-dense 128-wide store).
    @pl.when(l == pl.num_programs(1) - 1)
    def _():
        o_ref[0] = feat_ref[...]


def dense_block_forward(x_nchw, params):
    """x_nchw: (N, C, H, W).  params: per-layer
    (gamma, beta, running_mean, running_var, weight_HWIO) in PyTorch order."""
    N, Cin, H, W = x_nchw.shape
    L = len(params)
    g = params[0][4].shape[-1]                        # growth rate
    C_final = Cin + L * g
    C_pad = max(128, ((C_final + 127) // 128) * 128)  # lane-dense channels

    Wp = W + 2                    # row stride of the flattened padded image
    Hp = H + 2
    Rtot = Hp * Wp                # rows of the flat padded image
    Lr = (H - 1) * Wp + W         # rows of the per-layer conv result

    # ---- fold BN, permute channels to internal order, pack conv weights ----
    # Internal channel order: [x0, out_0, ..., out_{L-1}]; torch order of
    # layer-j's input is [out_{j-1}, ..., out_0, x0].
    scales, shifts, weights = [], [], []
    for j, (gamma, beta, mean, var, w) in enumerate(params):
        C_j = Cin + j * g
        perm = np.concatenate(
            [np.arange(j * g, j * g + Cin)]
            + [np.arange((j - 1 - m) * g, (j - m) * g) for m in range(j)]
        ).astype(np.int32)
        s = gamma * lax.rsqrt(var + EPS)              # folded BN scale
        t = beta - mean * s                           # folded BN shift
        scales.append(jnp.zeros((C_pad,), jnp.float32).at[:C_j].set(s[perm]))
        shifts.append(jnp.zeros((C_pad,), jnp.float32).at[:C_j].set(t[perm]))
        off = Cin + j * g                             # this layer's out slot
        w_pad = jnp.zeros((3, 3, C_pad, C_pad), jnp.float32)
        w_pad = w_pad.at[:, :, :C_j, off:off + g].set(w[:, :, perm, :])
        weights.append(w_pad.reshape(9, C_pad, C_pad))
    scale_all = jnp.stack(scales).reshape(L, 1, C_pad)
    shift_all = jnp.stack(shifts).reshape(L, 1, C_pad)
    w_all = jnp.stack(weights).astype(jnp.bfloat16)   # (L, 9, C_pad, C_pad)

    # ---- input: NCHW -> flat padded NHWC, zero halo, channels padded -------
    x = jnp.transpose(x_nchw, (0, 2, 3, 1))
    x = jnp.pad(x, ((0, 0), (1, 1), (1, 1), (0, C_pad - Cin)))
    x_flat = x.reshape(N, Rtot, C_pad)

    # Interior mask (1 on real pixels, 0 on the 1-pixel halo).
    m2 = np.zeros((Hp, Wp), np.float32)
    m2[1:H + 1, 1:W + 1] = 1.0
    mask = jnp.asarray(m2.reshape(Rtot, 1))

    kernel = functools.partial(_dense_block_kernel, Wp=Wp, Lr=Lr)
    out_flat = pl.pallas_call(
        kernel,
        out_shape=jax.ShapeDtypeStruct((N, Rtot, C_pad), jnp.float32),
        grid_spec=pltpu.PrefetchScalarGridSpec(
            num_scalar_prefetch=0,
            grid=(N, L),                               # layer axis innermost
            in_specs=[
                # x / mask: block index constant along l -> fetched once per n.
                pl.BlockSpec((1, Rtot, C_pad), lambda n, l: (n, 0, 0)),
                pl.BlockSpec((Rtot, 1), lambda n, l: (0, 0)),
                # per-layer BN params and conv weight: DMA'd layer by layer,
                # prefetched (double-buffered) under the previous layer.
                pl.BlockSpec((1, 1, C_pad), lambda n, l: (l, 0, 0)),
                pl.BlockSpec((1, 1, C_pad), lambda n, l: (l, 0, 0)),
                pl.BlockSpec((1, 9, C_pad, C_pad), lambda n, l: (l, 0, 0, 0)),
            ],
            out_specs=pl.BlockSpec((1, Rtot, C_pad), lambda n, l: (n, 0, 0)),
            scratch_shapes=[
                pltpu.VMEM((Rtot, C_pad), jnp.float32),   # feat (persists)
                pltpu.VMEM((Rtot, C_pad), jnp.float32),   # act  (zero halo)
            ],
        ),
        compiler_params=pltpu.CompilerParams(
            dimension_semantics=("parallel", "arbitrary"),
            vmem_limit_bytes=32 * 1024 * 1024,
        ),
    )(x_flat, mask, scale_all, shift_all, w_all)

    # ---- crop halo, back to torch channel order [o_{L-1},...,o_0,x0], NCHW -
    out = out_flat.reshape(N, Hp, Wp, C_pad)[:, 1:H + 1, 1:W + 1, :]
    final_perm = np.concatenate(
        [np.arange(Cin + (L - 1 - b) * g, Cin + (L - b) * g) for b in range(L)]
        + [np.arange(Cin)]).astype(np.int32)
    out = out[..., final_perm]
    return jnp.transpose(out, (0, 3, 1, 2))


def dense_block_reference(x_nchw, params, conv_dtype=jnp.float32):
    """Pure-JAX reference.  conv_dtype=bf16 mirrors the kernel's MXU cast."""
    x = jnp.transpose(x_nchw, (0, 2, 3, 1))
    for (gamma, beta, mean, var, w) in params:
        y = (x - mean) * lax.rsqrt(var + EPS) * gamma + beta
        y = jnp.maximum(y, 0.0)
        out = lax.conv_general_dilated(
            y.astype(conv_dtype), w.astype(conv_dtype),
            window_strides=(1, 1), padding="SAME",
            dimension_numbers=("NHWC", "HWIO", "NHWC"),
            preferred_element_type=jnp.float32)
        x = jnp.concatenate([out, x], axis=-1)
    return jnp.transpose(x, (0, 3, 1, 2))


def make_params(key, in_channel, growth_rate, num_layers):
    """Deterministic synthetic params mirroring dense_block.__init__ shapes."""
    params = []
    channel = in_channel
    for _ in range(num_layers):
        key, k1, k2, k3, k4, k5 = jax.random.split(key, 6)
        gamma = jax.random.uniform(k1, (channel,), jnp.float32, 0.5, 1.5)
        beta = 0.1 * jax.random.normal(k2, (channel,), jnp.float32)
        mean = 0.1 * jax.random.normal(k3, (channel,), jnp.float32)
        var = jax.random.uniform(k4, (channel,), jnp.float32, 0.5, 1.5)
        w = 0.1 * jax.random.normal(k5, (3, 3, channel, growth_rate),
                                    jnp.float32)          # HWIO
        params.append((gamma, beta, mean, var, w))
        channel += growth_rate
    return params


if __name__ == "__main__":
    in_channel, growth_rate, num_layers = 4, 4, 3
    N, H, W = 2, 16, 16

    key = jax.random.PRNGKey(0)
    kx, kp = jax.random.split(key)
    x = jax.random.normal(kx, (N, in_channel, H, W), jnp.float32)   # NCHW
    params = make_params(kp, in_channel, growth_rate, num_layers)

    out = jax.block_until_ready(dense_block_forward(x, params))

    C_out = in_channel + growth_rate * num_layers
    assert out.shape == (N, C_out, H, W), out.shape

    # Tight structural check against a reference using the same bf16 MXU cast.
    ref_bf16 = dense_block_reference(x, params, conv_dtype=jnp.bfloat16)
    err_b = float(jnp.abs(out - ref_bf16).max())
    assert jnp.allclose(out, ref_bf16, atol=2e-2, rtol=2e-2), err_b

    # Loose semantic sanity check against the pure-f32 reference (bf16 MXU
    # operands are an intentional precision tradeoff on v6e/v7x).
    ref_f32 = dense_block_reference(x, params, conv_dtype=jnp.float32)
    err_f = float(jnp.abs(out - ref_f32).max())
    assert jnp.allclose(out, ref_f32, atol=1e-1, rtol=1e-1), err_f

    print("KERNEL_OK")
</pallas_src>

<mosaic_0001>
module attributes {stable_mosaic.version = 11 : i64} {
  func.func @_dense_block_kernel(%arg0: i32, %arg1: i32, %arg2: memref<1x324x128xf32, #tpu.memory_space<vmem>>, %arg3: memref<324x1xf32, #tpu.memory_space<vmem>>, %arg4: memref<1x1x128xf32, #tpu.memory_space<vmem>>, %arg5: memref<1x1x128xf32, #tpu.memory_space<vmem>>, %arg6: memref<1x9x128x128xbf16, #tpu.memory_space<vmem>>, %arg7: memref<1x324x128xf32, #tpu.memory_space<vmem>>, %arg8: memref<324x128xf32, #tpu.memory_space<vmem>>, %arg9: memref<324x128xf32, #tpu.memory_space<vmem>>) attributes {dimension_semantics = [#tpu.dimension_semantics<parallel>, #tpu.dimension_semantics<arbitrary>], iteration_bounds = array<i64: 2, 3>, scalar_prefetch = 0 : i64, scratch_operands = 2 : i64, tpu.core_type = #tpu.core_type<tc>, window_params = [{transform_indices = @transform_0, window_bounds = array<i64: 1, 324, 128>}, {pipeline_mode = #tpu.pipeline_mode<synchronous>, transform_indices = @transform_1, window_bounds = array<i64: 324, 1>}, {transform_indices = @transform_2, window_bounds = array<i64: 1, 1, 128>}, {transform_indices = @transform_3, window_bounds = array<i64: 1, 1, 128>}, {transform_indices = @transform_4, window_bounds = array<i64: 1, 9, 128, 128>}, {transform_indices = @transform_5, window_bounds = array<i64: 1, 324, 128>}]} {
    %c0_i32 = arith.constant 0 : i32
    %0 = arith.cmpi eq, %arg1, %c0_i32 : i32
    %1 = arith.extui %0 : i1 to i32
    %c0_i32_0 = arith.constant 0 : i32
    %2 = arith.cmpi ne, %1, %c0_i32_0 : i32
    scf.if %2 {
      %c0_66 = arith.constant 0 : index
      %c0_67 = arith.constant 0 : index
      %c0_68 = arith.constant 0 : index
      %77 = vector.load %arg2[%c0_66, %c0_67, %c0_68] : memref<1x324x128xf32, #tpu.memory_space<vmem>>, vector<1x324x128xf32>
      %78 = vector.shape_cast %77 : vector<1x324x128xf32> to vector<324x128xf32>
      %c0_69 = arith.constant 0 : index
      %c0_70 = arith.constant 0 : index
      %79 = vector.load %arg8[%c0_69, %c0_70] : memref<324x128xf32, #tpu.memory_space<vmem>>, vector<324x128xf32>
      tpu.vector_store %arg8[%c0_69, %c0_70], %78 {strides = array<i32>} : memref<324x128xf32, #tpu.memory_space<vmem>>, vector<324x128xf32>,
    } else {
    }
    %c0 = arith.constant 0 : index
    %c0_1 = arith.constant 0 : index
    %3 = vector.load %arg8[%c0, %c0_1] : memref<324x128xf32, #tpu.memory_space<vmem>>, vector<324x128xf32>
    %c0_2 = arith.constant 0 : index
    %c0_3 = arith.constant 0 : index
    %c0_4 = arith.constant 0 : index
    %4 = vector.load %arg4[%c0_2, %c0_3, %c0_4] : memref<1x1x128xf32, #tpu.memory_space<vmem>>, vector<1x1x128xf32>
    %5 = vector.shape_cast %4 : vector<1x1x128xf32> to vector<1x128xf32>
    %6 = vector.broadcast %5 : vector<1x128xf32> to vector<324x128xf32>
    %7 = arith.mulf %3, %6 : vector<324x128xf32>
    %c0_5 = arith.constant 0 : index
    %c0_6 = arith.constant 0 : index
    %c0_7 = arith.constant 0 : index
    %8 = vector.load %arg5[%c0_5, %c0_6, %c0_7] : memref<1x1x128xf32, #tpu.memory_space<vmem>>, vector<1x1x128xf32>
    %9 = vector.shape_cast %8 : vector<1x1x128xf32> to vector<1x128xf32>
    %10 = vector.broadcast %9 : vector<1x128xf32> to vector<324x128xf32>
    %11 = arith.addf %7, %10 : vector<324x128xf32>
    %cst = arith.constant 0.000000e+00 : f32
    %12 = vector.broadcast %cst : f32 to vector<324x128xf32>
    %13 = arith.maximumf %11, %12 : vector<324x128xf32>
    %c0_8 = arith.constant 0 : index
    %c0_9 = arith.constant 0 : index
    %14 = vector.load %arg3[%c0_8, %c0_9] : memref<324x1xf32, #tpu.memory_space<vmem>>, vector<324x1xf32>
    %15 = vector.broadcast %14 : vector<324x1xf32> to vector<324x128xf32>
    %16 = arith.mulf %13, %15 : vector<324x128xf32>
    %c0_10 = arith.constant 0 : index
    %c0_11 = arith.constant 0 : index
    %17 = vector.load %arg9[%c0_10, %c0_11] : memref<324x128xf32, #tpu.memory_space<vmem>>, vector<324x128xf32>
    tpu.vector_store %arg9[%c0_10, %c0_11], %16 {strides = array<i32>} : memref<324x128xf32, #tpu.memory_space<vmem>>, vector<324x128xf32>,
    %c0_12 = arith.constant 0 : index
    %c0_13 = arith.constant 0 : index
    %18 = vector.load %arg9[%c0_12, %c0_13] : memref<324x128xf32, #tpu.memory_space<vmem>>, vector<286x128xf32>
    %19 = arith.truncf %18 : vector<286x128xf32> to vector<286x128xbf16>
    %c0_14 = arith.constant 0 : index
    %c0_15 = arith.constant 0 : index
    %c0_16 = arith.constant 0 : index
    %c0_17 = arith.constant 0 : index
    %20 = vector.load %arg6[%c0_14, %c0_15, %c0_16, %c0_17] : memref<1x9x128x128xbf16, #tpu.memory_space<vmem>>, vector<1x1x128x128xbf16>
    %21 = vector.shape_cast %20 : vector<1x1x128x128xbf16> to vector<128x128xbf16>
    %cst_18 = arith.constant dense<0.000000e+00> : vector<286x128xf32>
    %22 = tpu.matmul %19, %21, %cst_18 {dimension_numbers = #tpu.dot_dimension_numbers<[1], [0], [0], [1], [0, 0, 1, 1], [], []>} : vector<286x128xbf16>, vector<128x128xbf16>, vector<286x128xf32> -> vector<286x128xf32>
    %c1 = arith.constant 1 : index
    %c0_19 = arith.constant 0 : index
    %23 = vector.load %arg9[%c1, %c0_19] : memref<324x128xf32, #tpu.memory_space<vmem>>, vector<286x128xf32>
    %24 = arith.truncf %23 : vector<286x128xf32> to vector<286x128xbf16>
    %c0_20 = arith.constant 0 : index
    %c1_21 = arith.constant 1 : index
    %c0_22 = arith.constant 0 : index
    %c0_23 = arith.constant 0 : index
    %25 = vector.load %arg6[%c0_20, %c1_21, %c0_22, %c0_23] : memref<1x9x128x128xbf16, #tpu.memory_space<vmem>>, vector<1x1x128x128xbf16>
    %26 = vector.shape_cast %25 : vector<1x1x128x128xbf16> to vector<128x128xbf16>
    %cst_24 = arith.constant dense<0.000000e+00> : vector<286x128xf32>
    %27 = tpu.matmul %24, %26, %cst_24 {dimension_numbers = #tpu.dot_dimension_numbers<[1], [0], [0], [1], [0, 0, 1, 1], [], []>} : vector<286x128xbf16>, vector<128x128xbf16>, vector<286x128xf32> -> vector<286x128xf32>
    %28 = arith.addf %22, %27 : vector<286x128xf32>
    %c2 = arith.constant 2 : index
    %c0_25 = arith.constant 0 : index
    %29 = vector.load %arg9[%c2, %c0_25] : memref<324x128xf32, #tpu.memory_space<vmem>>, vector<286x128xf32>
    %30 = arith.truncf %29 : vector<286x128xf32> to vector<286x128xbf16>
    %c0_26 = arith.constant 0 : index
    %c2_27 = arith.constant 2 : index
    %c0_28 = arith.constant 0 : index
    %c0_29 = arith.constant 0 : index
    %31 = vector.load %arg6[%c0_26, %c2_27, %c0_28, %c0_29] : memref<1x9x128x128xbf16, #tpu.memory_space<vmem>>, vector<1x1x128x128xbf16>
    %32 = vector.shape_cast %31 : vector<1x1x128x128xbf16> to vector<128x128xbf16>
    %cst_30 = arith.constant dense<0.000000e+00> : vector<286x128xf32>
    %33 = tpu.matmul %30, %32, %cst_30 {dimension_numbers = #tpu.dot_dimension_numbers<[1], [0], [0], [1], [0, 0, 1, 1], [], []>} : vector<286x128xbf16>, vector<128x128xbf16>, vector<286x128xf32> -> vector<286x128xf32>
    %34 = arith.addf %28, %33 : vector<286x128xf32>
    %c18 = arith.constant 18 : index
    %c0_31 = arith.constant 0 : index
    %35 = vector.load %arg9[%c18, %c0_31] : memref<324x128xf32, #tpu.memory_space<vmem>>, vector<286x128xf32>
    %36 = arith.truncf %35 : vector<286x128xf32> to vector<286x128xbf16>
    %c0_32 = arith.constant 0 : index
    %c3 = arith.constant 3 : index
    %c0_33 = arith.constant 0 : index
    %c0_34 = arith.constant 0 : index
    %37 = vector.load %arg6[%c0_32, %c3, %c0_33, %c0_34] : memref<1x9x128x128xbf16, #tpu.memory_space<vmem>>, vector<1x1x128x128xbf16>
    %38 = vector.shape_cast %37 : vector<1x1x128x128xbf16> to vector<128x128xbf16>
    %cst_35 = arith.constant dense<0.000000e+00> : vector<286x128xf32>
    %39 = tpu.matmul %36, %38, %cst_35 {dimension_numbers = #tpu.dot_dimension_numbers<[1], [0], [0], [1], [0, 0, 1, 1], [], []>} : vector<286x128xbf16>, vector<128x128xbf16>, vector<286x128xf32> -> vector<286x128xf32>
    %40 = arith.addf %34, %39 : vector<286x128xf32>
    %c19 = arith.constant 19 : index
    %c0_36 = arith.constant 0 : index
    %41 = vector.load %arg9[%c19, %c0_36] : memref<324x128xf32, #tpu.memory_space<vmem>>, vector<286x128xf32>
    %42 = arith.truncf %41 : vector<286x128xf32> to vector<286x128xbf16>
    %c0_37 = arith.constant 0 : index
    %c4 = arith.constant 4 : index
    %c0_38 = arith.constant 0 : index
    %c0_39 = arith.constant 0 : index
    %43 = vector.load %arg6[%c0_37, %c4, %c0_38, %c0_39] : memref<1x9x128x128xbf16, #tpu.memory_space<vmem>>, vector<1x1x128x128xbf16>
    %44 = vector.shape_cast %43 : vector<1x1x128x128xbf16> to vector<128x128xbf16>
    %cst_40 = arith.constant dense<0.000000e+00> : vector<286x128xf32>
    %45 = tpu.matmul %42, %44, %cst_40 {dimension_numbers = #tpu.dot_dimension_numbers<[1], [0], [0], [1], [0, 0, 1, 1], [], []>} : vector<286x128xbf16>, vector<128x128xbf16>, vector<286x128xf32> -> vector<286x128xf32>
    %46 = arith.addf %40, %45 : vector<286x128xf32>
    %c20 = arith.constant 20 : index
    %c0_41 = arith.constant 0 : index
    %47 = vector.load %arg9[%c20, %c0_41] : memref<324x128xf32, #tpu.memory_space<vmem>>, vector<286x128xf32>
    %48 = arith.truncf %47 : vector<286x128xf32> to vector<286x128xbf16>
    %c0_42 = arith.constant 0 : index
    %c5 = arith.constant 5 : index
    %c0_43 = arith.constant 0 : index
    %c0_44 = arith.constant 0 : index
    %49 = vector.load %arg6[%c0_42, %c5, %c0_43, %c0_44] : memref<1x9x128x128xbf16, #tpu.memory_space<vmem>>, vector<1x1x128x128xbf16>
    %50 = vector.shape_cast %49 : vector<1x1x128x128xbf16> to vector<128x128xbf16>
    %cst_45 = arith.constant dense<0.000000e+00> : vector<286x128xf32>
    %51 = tpu.matmul %48, %50, %cst_45 {dimension_numbers = #tpu.dot_dimension_numbers<[1], [0], [0], [1], [0, 0, 1, 1], [], []>} : vector<286x128xbf16>, vector<128x128xbf16>, vector<286x128xf32> -> vector<286x128xf32>
    %52 = arith.addf %46, %51 : vector<286x128xf32>
    %c36 = arith.constant 36 : index
    %c0_46 = arith.constant 0 : index
    %53 = vector.load %arg9[%c36, %c0_46] : memref<324x128xf32, #tpu.memory_space<vmem>>, vector<286x128xf32>
    %54 = arith.truncf %53 : vector<286x128xf32> to vector<286x128xbf16>
    %c0_47 = arith.constant 0 : index
    %c6 = arith.constant 6 : index
    %c0_48 = arith.constant 0 : index
    %c0_49 = arith.constant 0 : index
    %55 = vector.load %arg6[%c0_47, %c6, %c0_48, %c0_49] : memref<1x9x128x128xbf16, #tpu.memory_space<vmem>>, vector<1x1x128x128xbf16>
    %56 = vector.shape_cast %55 : vector<1x1x128x128xbf16> to vector<128x128xbf16>
    %cst_50 = arith.constant dense<0.000000e+00> : vector<286x128xf32>
    %57 = tpu.matmul %54, %56, %cst_50 {dimension_numbers = #tpu.dot_dimension_numbers<[1], [0], [0], [1], [0, 0, 1, 1], [], []>} : vector<286x128xbf16>, vector<128x128xbf16>, vector<286x128xf32> -> vector<286x128xf32>
    %58 = arith.addf %52, %57 : vector<286x128xf32>
    %c37 = arith.constant 37 : index
    %c0_51 = arith.constant 0 : index
    %59 = vector.load %arg9[%c37, %c0_51] : memref<324x128xf32, #tpu.memory_space<vmem>>, vector<286x128xf32>
    %60 = arith.truncf %59 : vector<286x128xf32> to vector<286x128xbf16>
    %c0_52 = arith.constant 0 : index
    %c7 = arith.constant 7 : index
    %c0_53 = arith.constant 0 : index
    %c0_54 = arith.constant 0 : index
    %61 = vector.load %arg6[%c0_52, %c7, %c0_53, %c0_54] : memref<1x9x128x128xbf16, #tpu.memory_space<vmem>>, vector<1x1x128x128xbf16>
    %62 = vector.shape_cast %61 : vector<1x1x128x128xbf16> to vector<128x128xbf16>
    %cst_55 = arith.constant dense<0.000000e+00> : vector<286x128xf32>
    %63 = tpu.matmul %60, %62, %cst_55 {dimension_numbers = #tpu.dot_dimension_numbers<[1], [0], [0], [1], [0, 0, 1, 1], [], []>} : vector<286x128xbf16>, vector<128x128xbf16>, vector<286x128xf32> -> vector<286x128xf32>
    %64 = arith.addf %58, %63 : vector<286x128xf32>
    %c38 = arith.constant 38 : index
    %c0_56 = arith.constant 0 : index
    %65 = vector.load %arg9[%c38, %c0_56] : memref<324x128xf32, #tpu.memory_space<vmem>>, vector<286x128xf32>
    %66 = arith.truncf %65 : vector<286x128xf32> to vector<286x128xbf16>
    %c0_57 = arith.constant 0 : index
    %c8 = arith.constant 8 : index
    %c0_58 = arith.constant 0 : index
    %c0_59 = arith.constant 0 : index
    %67 = vector.load %arg6[%c0_57, %c8, %c0_58, %c0_59] : memref<1x9x128x128xbf16, #tpu.memory_space<vmem>>, vector<1x1x128x128xbf16>
    %68 = vector.shape_cast %67 : vector<1x1x128x128xbf16> to vector<128x128xbf16>
    %cst_60 = arith.constant dense<0.000000e+00> : vector<286x128xf32>
    %69 = tpu.matmul %66, %68, %cst_60 {dimension_numbers = #tpu.dot_dimension_numbers<[1], [0], [0], [1], [0, 0, 1, 1], [], []>} : vector<286x128xbf16>, vector<128x128xbf16>, vector<286x128xf32> -> vector<286x128xf32>
    %70 = arith.addf %64, %69 : vector<286x128xf32>
    %c19_61 = arith.constant 19 : index
    %c0_62 = arith.constant 0 : index
    %71 = vector.load %arg8[%c19_61, %c0_62] : memref<324x128xf32, #tpu.memory_space<vmem>>, vector<286x128xf32>
    %72 = arith.addf %71, %70 : vector<286x128xf32>
    %c19_63 = arith.constant 19 : index
    %c0_64 = arith.constant 0 : index
    %73 = vector.load %arg8[%c19_63, %c0_64] : memref<324x128xf32, #tpu.memory_space<vmem>>, vector<286x128xf32>
    tpu.vector_store %arg8[%c19_63, %c0_64], %72 {strides = array<i32>} : memref<324x128xf32, #tpu.memory_space<vmem>>, vector<286x128xf32>,
    %c2_i32 = arith.constant 2 : i32
    %74 = arith.cmpi eq, %arg1, %c2_i32 : i32
    %75 = arith.extui %74 : i1 to i32
    %c0_i32_65 = arith.constant 0 : i32
    %76 = arith.cmpi ne, %75, %c0_i32_65 : i32
    scf.if %76 {
      %c0_66 = arith.constant 0 : index
      %c0_67 = arith.constant 0 : index
      %77 = vector.load %arg8[%c0_66, %c0_67] : memref<324x128xf32, #tpu.memory_space<vmem>>, vector<324x128xf32>
      %c0_68 = arith.constant 0 : index
      %c0_69 = arith.constant 0 : index
      %c0_70 = arith.constant 0 : index
      %78 = vector.load %arg7[%c0_68, %c0_69, %c0_70] : memref<1x324x128xf32, #tpu.memory_space<vmem>>, vector<1x324x128xf32>
      %79 = vector.shape_cast %78 : vector<1x324x128xf32> to vector<324x128xf32>
      %80 = vector.shape_cast %77 : vector<324x128xf32> to vector<1x324x128xf32>
      tpu.vector_store %arg7[%c0_68, %c0_69, %c0_70], %80 {strides = array<i32>} : memref<1x324x128xf32, #tpu.memory_space<vmem>>, vector<1x324x128xf32>,
    } else {
    }
    return
  }
  func.func @transform_0(%arg0: i32, %arg1: i32) -> (i32, i32, i32) {
    %c0_i32 = arith.constant 0 : i32
    %c0_i32_0 = arith.constant 0 : i32
    %c0_i32_1 = arith.constant 0 : i32
    return %arg0, %c0_i32, %c0_i32_0 : i32, i32, i32
  }
  func.func @transform_1(%arg0: i32, %arg1: i32) -> (i32, i32) {
    %c0_i32 = arith.constant 0 : i32
    %c0_i32_0 = arith.constant 0 : i32
    %c0_i32_1 = arith.constant 0 : i32
    return %c0_i32, %c0_i32_0 : i32, i32
  }
  func.func @transform_2(%arg0: i32, %arg1: i32) -> (i32, i32, i32) {
    %c0_i32 = arith.constant 0 : i32
    %c0_i32_0 = arith.constant 0 : i32
    %c0_i32_1 = arith.constant 0 : i32
    return %arg1, %c0_i32, %c0_i32_0 : i32, i32, i32
  }
  func.func @transform_3(%arg0: i32, %arg1: i32) -> (i32, i32, i32) {
    %c0_i32 = arith.constant 0 : i32
    %c0_i32_0 = arith.constant 0 : i32
    %c0_i32_1 = arith.constant 0 : i32
    return %arg1, %c0_i32, %c0_i32_0 : i32, i32, i32
  }
  func.func @transform_4(%arg0: i32, %arg1: i32) -> (i32, i32, i32, i32) {
    %c0_i32 = arith.constant 0 : i32
    %c0_i32_0 = arith.constant 0 : i32
    %c0_i32_1 = arith.constant 0 : i32
    %c0_i32_2 = arith.constant 0 : i32
    return %arg1, %c0_i32, %c0_i32_0, %c0_i32_1 : i32, i32, i32, i32
  }
  func.func @transform_5(%arg0: i32, %arg1: i32) -> (i32, i32, i32) {
    %c0_i32 = arith.constant 0 : i32
    %c0_i32_0 = arith.constant 0 : i32
    %c0_i32_1 = arith.constant 0 : i32
    return %arg0, %c0_i32, %c0_i32_0 : i32, i32, i32
  }
}

</mosaic_0001>

<llo_original>
// kernel: tpu_custom_call.1
$region0: #{tpu_custom_call.1}
  #allocation0 [shape = 'u32[]', space=smem, size = 0x4, offset = 0x4, fixed_abs, tag = 'smem constant byte address 0x4 - core index']
  #allocation1 [shape = 'u32[72,128]{1,0:T(1,128)}', space=vmem, size = 0x9000, scoped, tag = 'internal scratch']
  #allocation2 [shape = 'f32[324,128]{1,0:T(8,128)}', space=vmem, size = 0x29000, scoped, tag = 'scratch operand']
  #allocation3 [shape = 'f32[324,128]{1,0:T(8,128)}', space=vmem, size = 0x29000, scoped, tag = 'scratch operand']
  %s0 = inlined_call_operand.vmem [shape: f32[2,324,128], index: 0, kind: input, shape index: {}]
  %s1 = inlined_call_operand.vmem [shape: f32[324,1], index: 1, kind: input, shape index: {}]
  %s2 = inlined_call_operand.vmem [shape: f32[3,1,128], index: 2, kind: input, shape index: {}]
  %s3 = inlined_call_operand.vmem [shape: f32[3,1,128], index: 3, kind: input, shape index: {}]
  %s4 = inlined_call_operand.hbm [shape: bf16[3,9,128,128], index: 4, kind: input, shape index: {}]
  %s5 = inlined_call_operand.vmem [shape: f32[2,324,128], index: 5, kind: output, shape index: {}]
  %s6 = sld [smem:[#allocation0]]
  $region65: #{tpu_custom_call.1} parent=0
    _
  %s8 = ssub.s32 1, %s6
  %s9 = scalar_select 0, %s8, %s6
  $region1: #{tpu_custom_call.1} parent=0
    #allocation4 [shape = 'u8[589824]{0}', space=vmem, size = 0x90000, scoped, tag = 'input window, operand 4']
    #allocation5 [shape = 's32[2]{0}', space=sflag, size = 0x8, scoped, tag = 'scoped memory for tpu_custom_call.1']
    %10 = vsyncpa [#allocation5], 0
    %s11 = scalar_lea.sflag [#allocation5], 1
    %12 = vsyncpa %s11, 0
    loop: start=0, step=1, limit=8
    $region2: #{tpu_custom_call.1} parent=1 // loop_pre_header
      _
    $region3: #{tpu_custom_call.1} parent=1 // loop_header
      %s14 = sphi 0, %s18
      %p15 = scmp.ge.s32.totalorder %s14, 8
      %s21 = sphi 0, %s33
      %s22 = sphi 0, %s29
      %s23 = sphi 0, %s21
      %s24 = sphi 0, %s22
      %s25 = sphi 0, %s23
      %s26 = sphi 0, %s24
      %s36 = sphi 0, %s38
      %s39 = sphi 0, %s36
      %s40 = sphi 0, %s39
      %s56 = sphi 0, %s40
      %s60 = sphi 0, %s60
      %s62 = sphi 0, %s60
      %s63 = sphi 0, %s62
      %s77 = sphi 0, %s63
      %s83 = sphi 0, %s85
      %s86 = sphi 0, %s83
      %s87 = sphi 0, %s86
      %s103 = sphi 0, %s87
      %s109 = sphi 0, %s111
      %s112 = sphi 0, %s109
      %s113 = sphi 0, %s112
      %s129 = sphi 0, %s113
      %s135 = sphi 0, %s137
      %s138 = sphi 0, %s135
      %s139 = sphi 0, %s138
      %s155 = sphi 0, %s139
      %s161 = sphi 0, %s163
      %s164 = sphi 0, %s161
      %s165 = sphi 0, %s164
      %s181 = sphi 0, %s165
    $region4: #{tpu_custom_call.1} parent=1 // loop_header_branch
      %17 = sbr.rel (%p15) target = $region8
    $region5: #{tpu_custom_call.1} parent=1 // loop_body
      %s19 = ssub.s32 %s14, 1
      %s20 = ssub.s32 %s14, 2
      %s27 = sadd.s32 1, %s22
      %p28 = scmp.ge.s32.totalorder %s27, 3
      %s29 = scalar_select %p28, 0, %s27
      %s30 = sadd.s32 1, %s21
      %s31 = scalar_select %p28, %s30, %s21
      %p32 = scmp.ge.s32.totalorder %s31, 2
      %s33 = scalar_select %p32, 0, %s31
      %s34 = ssub.s32 %s21, %s33
      %p35 = scmp.eq.s32.totalorder %s34, 0
      %s37 = sadd.s32 %s36, 1
      %s38 = scalar_select %p35, %s36, %s37
      %p41 = pneg %p35
      %p42 = scmp.eq.s32.totalorder %s14, 5
      %p43 = por %p41, %p42
      %p44 = scmp.ne.s32.totalorder %s36, %s39
      %p45 = scmp.eq.s32.totalorder %s14, 0
      %p46 = por %p44, %p45
      %p47 = scmp.ne.s32.totalorder %s36, %s39
      %p48 = scmp.eq.s32.totalorder %s19, 5
      %p49 = por %p47, %p48
      %p50 = scmp.ne.s32.totalorder %s39, %s40
      %p51 = scmp.eq.s32.totalorder %s19, 0
      %p52 = por %p50, %p51
      %p53 = scmp.ne.s32.totalorder %s39, %s40
      %p54 = scmp.eq.s32.totalorder %s20, 5
      %p55 = por %p53, %p54
      %p57 = scmp.ne.s32.totalorder %s40, %s56
      %p58 = scmp.eq.s32.totalorder %s20, 0
      %p59 = por %p57, %p58
      %s61 = sadd.s32 %s60, 1
      %p64 = scmp.eq.s32.totalorder %s14, 5
      %p65 = scmp.ne.s32.totalorder %s60, %s62
      %p66 = scmp.eq.s32.totalorder %s14, 0
      %p67 = por %p65, %p66
      %p68 = scmp.ne.s32.totalorder %s60, %s62
      %p69 = scmp.eq.s32.totalorder %s19, 5
      %p70 = por %p68, %p69
      %p71 = scmp.ne.s32.totalorder %s62, %s63
      %p72 = scmp.eq.s32.totalorder %s19, 0
      %p73 = por %p71, %p72
      %p74 = scmp.ne.s32.totalorder %s62, %s63
      %p75 = scmp.eq.s32.totalorder %s20, 5
      %p76 = por %p74, %p75
      %p78 = scmp.ne.s32.totalorder %s63, %s77
      %p79 = scmp.eq.s32.totalorder %s20, 0
      %p80 = por %p78, %p79
      %s81 = ssub.s32 %s22, %s29
      %p82 = scmp.eq.s32.totalorder %s81, 0
      %s84 = sadd.s32 %s83, 1
      %s85 = scalar_select %p82, %s83, %s84
      %p88 = pneg %p82
      %p89 = scmp.eq.s32.totalorder %s14, 5
      %p90 = por %p88, %p89
      %p91 = scmp.ne.s32.totalorder %s83, %s86
      %p92 = scmp.eq.s32.totalorder %s14, 0
      %p93 = por %p91, %p92
      %p94 = scmp.ne.s32.totalorder %s83, %s86
      %p95 = scmp.eq.s32.totalorder %s19, 5
      %p96 = por %p94, %p95
      %p97 = scmp.ne.s32.totalorder %s86, %s87
      %p98 = scmp.eq.s32.totalorder %s19, 0
      %p99 = por %p97, %p98
      %p100 = scmp.ne.s32.totalorder %s86, %s87
      %p101 = scmp.eq.s32.totalorder %s20, 5
      %p102 = por %p100, %p101
      %p104 = scmp.ne.s32.totalorder %s87, %s103
      %p105 = scmp.eq.s32.totalorder %s20, 0
      %p106 = por %p104, %p105
      %s107 = ssub.s32 %s22, %s29
      %p108 = scmp.eq.s32.totalorder %s107, 0
      %s110 = sadd.s32 %s109, 1
      %s111 = scalar_select %p108, %s109, %s110
      %p114 = pneg %p108
      %p115 = scmp.eq.s32.totalorder %s14, 5
      %p116 = por %p114, %p115
      %p117 = scmp.ne.s32.totalorder %s109, %s112
      %p118 = scmp.eq.s32.totalorder %s14, 0
      %p119 = por %p117, %p118
      %p120 = scmp.ne.s32.totalorder %s109, %s112
      %p121 = scmp.eq.s32.totalorder %s19, 5
      %p122 = por %p120, %p121
      %p123 = scmp.ne.s32.totalorder %s112, %s113
      %p124 = scmp.eq.s32.totalorder %s19, 0
      %p125 = por %p123, %p124
      %p126 = scmp.ne.s32.totalorder %s112, %s113
      %p127 = scmp.eq.s32.totalorder %s20, 5
      %p128 = por %p126, %p127
      %p130 = scmp.ne.s32.totalorder %s113, %s129
      %p131 = scmp.eq.s32.totalorder %s20, 0
      %p132 = por %p130, %p131
      %s133 = ssub.s32 %s22, %s29
      %p134 = scmp.eq.s32.totalorder %s133, 0
      %s136 = sadd.s32 %s135, 1
      %s137 = scalar_select %p134, %s135, %s136
      %p140 = pneg %p134
      %p141 = scmp.eq.s32.totalorder %s14, 5
      %p142 = por %p140, %p141
      %p143 = scmp.ne.s32.totalorder %s135, %s138
      %p144 = scmp.eq.s32.totalorder %s14, 0
      %p145 = por %p143, %p144
      %p146 = scmp.ne.s32.totalorder %s135, %s138
      %p147 = scmp.eq.s32.totalorder %s19, 5
      %p148 = por %p146, %p147
      %p149 = scmp.ne.s32.totalorder %s138, %s139
      %p150 = scmp.eq.s32.totalorder %s19, 0
      %p151 = por %p149, %p150
      %p152 = scmp.ne.s32.totalorder %s138, %s139
      %p153 = scmp.eq.s32.totalorder %s20, 5
      %p154 = por %p152, %p153
      %p156 = scmp.ne.s32.totalorder %s139, %s155
      %p157 = scmp.eq.s32.totalorder %s20, 0
      %p158 = por %p156, %p157
      %s159 = ssub.s32 %s21, %s33
      %p160 = scmp.eq.s32.totalorder %s159, 0
      %s162 = sadd.s32 %s161, 1
      %s163 = scalar_select %p160, %s161, %s162
      %p166 = pneg %p160
      %p167 = scmp.eq.s32.totalorder %s14, 5
      %p168 = por %p166, %p167
      %p169 = scmp.ne.s32.totalorder %s161, %s164
      %p170 = scmp.eq.s32.totalorder %s14, 0
      %p171 = por %p169, %p170
      %p172 = scmp.ne.s32.totalorder %s161, %s164
      %p173 = scmp.eq.s32.totalorder %s19, 5
      %p174 = por %p172, %p173
      %p175 = scmp.ne.s32.totalorder %s164, %s165
      %p176 = scmp.eq.s32.totalorder %s19, 0
      %p177 = por %p175, %p176
      %p178 = scmp.ne.s32.totalorder %s164, %s165
      %p179 = scmp.eq.s32.totalorder %s20, 5
      %p180 = por %p178, %p179
      %p182 = scmp.ne.s32.totalorder %s165, %s181
      %p183 = scmp.eq.s32.totalorder %s20, 0
      %p184 = por %p182, %p183
      %p185 = scmp.le.s32.totalorder 1, %s14
      %p186 = scmp.lt.s32.totalorder %s14, 7
      %p187 = pnand %p185, %p186
      %p188 = pneg %p187
      // Predicated region
      $region9: #{tpu_custom_call.1} parent=5 // pred_check
        _
      $region10: #{tpu_custom_call.1} parent=5 // pred_check_branch
        %190 = sbr.rel (%p187) target = $region12
      $region11: #{tpu_custom_call.1} parent=5 // pred_region
        %s191 = ssub.s32 %s14, 1
        // Predicated region
        $region13: #{tpu_custom_call.1} parent=11 // pred_check
          %p192 = pneg %p73
        $region14: #{tpu_custom_call.1} parent=11 // pred_check_branch
          %194 = sbr.rel (%p192) target = $region16
        $region15: #{tpu_custom_call.1} parent=11 // pred_region
          _
        $region16: #{tpu_custom_call.1} parent=11 // pred_fallthru
          _
      $region12: #{tpu_custom_call.1} parent=5 // pred_fallthru
        _
      %p195 = scmp.lt.s32.totalorder %s14, 6
      // Predicated region
      $region17: #{tpu_custom_call.1} parent=5 // pred_check
        %p196 = pneg %p195
      $region18: #{tpu_custom_call.1} parent=5 // pred_check_branch
        %198 = sbr.rel (%p196) target = $region20
      $region19: #{tpu_custom_call.1} parent=5 // pred_region
        // Predicated region
        $region21: #{tpu_custom_call.1} parent=19 // pred_check
          %p199 = pneg %p46
        $region22: #{tpu_custom_call.1} parent=19 // pred_check_branch
          %201 = sbr.rel (%p199) target = $region24
        $region23: #{tpu_custom_call.1} parent=19 // pred_region
          %p202 = scmp.lt.s32.totalorder %s21, 1
          %s203 = scalar_select %p202, %s21, 1
          %s204 = smul.addr %s203, 41
          %s205 = smul.addr %s204, 8
          %s206 = scalar_lea.vmem %s0, %s205
        $region24: #{tpu_custom_call.1} parent=19 // pred_fallthru
          _
        // Predicated region
        $region25: #{tpu_custom_call.1} parent=19 // pred_check
          %p207 = pneg %p93
        $region26: #{tpu_custom_call.1} parent=19 // pred_check_branch
          %209 = sbr.rel (%p207) target = $region28
        $region27: #{tpu_custom_call.1} parent=19 // pred_region
          %p210 = scmp.lt.s32.totalorder %s22, 2
          %s211 = scalar_select %p210, %s22, 2
          %s212 = scalar_lea.vmem %s2, %s211
        $region28: #{tpu_custom_call.1} parent=19 // pred_fallthru
          _
        // Predicated region
        $region29: #{tpu_custom_call.1} parent=19 // pred_check
          %p213 = pneg %p119
        $region30: #{tpu_custom_call.1} parent=19 // pred_check_branch
          %215 = sbr.rel (%p213) target = $region32
        $region31: #{tpu_custom_call.1} parent=19 // pred_region
          %p216 = scmp.lt.s32.totalorder %s22, 2
          %s217 = scalar_select %p216, %s22, 2
          %s218 = scalar_lea.vmem %s3, %s217
        $region32: #{tpu_custom_call.1} parent=19 // pred_fallthru
          _
        // Predicated region
        $region33: #{tpu_custom_call.1} parent=19 // pred_check
          %p219 = pneg %p145
        $region34: #{tpu_custom_call.1} parent=19 // pred_check_branch
          %221 = sbr.rel (%p219) target = $region36
        $region35: #{tpu_custom_call.1} parent=19 // pred_region
          %s222 = sand.u32 %s135, 1
          %s223 = scalar_lea.sflag [#allocation5], %s222
          %s224 = sand.u32 %s135, 1
          %s225 = smul.addr %s224, 576
          %s226 = scalar_lea.vmem [#allocation4], %s225
          %228 = vsyncadd %s223, 0
          %s229 = smul.addr %s22, 144
          %s230 = smul.addr %s229, 4
          %s231 = scalar_lea.hbm %s4, %s230
          %s232 = sshll.u32 %s231, 4
          %s233 = int_to_ptr.hbm [resolvable:$true] %s232
          %s234 = sshll.u32 %s226, 4
          %s235 = int_to_ptr.vmem [resolvable:$true] %s234
          %240 = dma.hbm_to_vmem [thread:$0]  %s233, 9216, %s235, %s223, 64, 64, 4
        $region36: #{tpu_custom_call.1} parent=19 // pred_fallthru
          _
      $region20: #{tpu_custom_call.1} parent=5 // pred_fallthru
        _
      %p241 = scmp.le.s32.totalorder 1, %s14
      %p242 = scmp.lt.s32.totalorder %s14, 7
      %p243 = pnand %p241, %p242
      %p244 = pneg %p243
      // Predicated region
      $region37: #{tpu_custom_call.1} parent=5 // pred_check
        _
      $region38: #{tpu_custom_call.1} parent=5 // pred_check_branch
        %246 = sbr.rel (%p243) target = $region40
      $region39: #{tpu_custom_call.1} parent=5 // pred_region
        %s247 = ssub.s32 %s14, 1
        %s248 = sand.u32 %s138, 1
        %s249 = scalar_lea.sflag [#allocation5], %s248
        %s250 = sand.u32 %s138, 1
        %s251 = smul.addr %s250, 576
        %s252 = scalar_lea.vmem [#allocation4], %s251
        // Predicated region
        $region41: #{tpu_custom_call.1} parent=39 // pred_check
          %p253 = pneg %p151
        $region42: #{tpu_custom_call.1} parent=39 // pred_check_branch
          %255 = sbr.rel (%p253) target = $region44
        $region43: #{tpu_custom_call.1} parent=39 // pred_region
          %257 = dma.done %s249, 9216
        $region44: #{tpu_custom_call.1} parent=39 // pred_fallthru
          _
        %p258 = scmp.lt.s32.totalorder %s23, 1
        %s259 = scalar_select %p258, %s23, 1
        %s260 = smul.addr %s259, 41
        %s261 = smul.addr %s260, 8
        %s262 = scalar_lea.vmem %s0, %s261
        %p263 = pneg %p52
        %p264 = pneg %p49
        %p265 = pneg %p73
        %p266 = pneg %p70
        %p267 = scmp.lt.s32.totalorder %s24, 2
        %s268 = scalar_select %p267, %s24, 2
        %s269 = scalar_lea.vmem %s2, %s268
        %p270 = pneg %p99
        %p271 = pneg %p96
        %p272 = scmp.lt.s32.totalorder %s24, 2
        %s273 = scalar_select %p272, %s24, 2
        %s274 = scalar_lea.vmem %s3, %s273
        %p275 = pneg %p125
        %p276 = pneg %p122
        %s277 = sand.u32 %s138, 1
        %s278 = scalar_lea.sflag [#allocation5], %s277
        %s279 = sand.u32 %s138, 1
        %s280 = smul.addr %s279, 576
        %s281 = scalar_lea.vmem [#allocation4], %s280
        %p282 = pneg %p151
        %p283 = pneg %p148
        %p284 = pneg %p177
        %p285 = pneg %p174
        %p286 = scmp.lt.s32.totalorder %s23, 1
        %s287 = scalar_select %p286, %s23, 1
        %s288 = smul.addr %s287, 41
        %s289 = smul.addr %s288, 8
        %s290 = scalar_lea.vmem %s5, %s289
        %p291 = scmp.lt.s32.totalorder %s23, 1
        %s292 = scalar_select %p291, %s23, 1
        %s293 = smul.addr %s292, 41
        %s294 = smul.addr %s293, 8
        %s295 = scalar_lea.vmem %s0, %s294
        %p296 = scmp.lt.s32.totalorder %s24, 2
        %s297 = scalar_select %p296, %s24, 2
        %s298 = scalar_lea.vmem %s2, %s297
        %p299 = scmp.lt.s32.totalorder %s24, 2
        %s300 = scalar_select %p299, %s24, 2
        %s301 = scalar_lea.vmem %s3, %s300
        %p302 = scmp.lt.s32.totalorder %s23, 1
        %s303 = scalar_select %p302, %s23, 1
        %s304 = smul.addr %s303, 41
        %s305 = smul.addr %s304, 8
        %s306 = scalar_lea.vmem %s5, %s305
        %p307 = scmp.eq.s32.totalorder %s24, 0
        // Predicated region
        $region45: #{tpu_custom_call.1} parent=39 // pred_check
          %p308 = pneg %p307
        $region46: #{tpu_custom_call.1} parent=39 // pred_check_branch
          %310 = sbr.rel (%p308) target = $region48
        $region47: #{tpu_custom_call.1} parent=39 // pred_region
          %v311 = vld [vmem:[%s295] sm:$0xff]
          %v312 = vld [vmem:[%s295 + $0x8] sm:$0xff]
          %v313 = vld [vmem:[%s295 + $0x10] sm:$0xff]
          %v314 = vld [vmem:[%s295 + $0x18] sm:$0xff]
          %v315 = vld [vmem:[%s295 + $0x20] sm:$0xff]
          %v316 = vld [vmem:[%s295 + $0x28] sm:$0xff]
          %v317 = vld [vmem:[%s295 + $0x30] sm:$0xff]
          %v318 = vld [vmem:[%s295 + $0x38] sm:$0xff]
          %v319 = vld [vmem:[%s295 + $0x40] sm:$0xff]
          %v320 = vld [vmem:[%s295 + $0x48] sm:$0xff]
          %v321 = vld [vmem:[%s295 + $0x50] sm:$0xff]
          %v322 = vld [vmem:[%s295 + $0x58] sm:$0xff]
          %v323 = vld [vmem:[%s295 + $0x60] sm:$0xff]
          %v324 = vld [vmem:[%s295 + $0x68] sm:$0xff]
          %v325 = vld [vmem:[%s295 + $0x70] sm:$0xff]
          %v326 = vld [vmem:[%s295 + $0x78] sm:$0xff]
          %v327 = vld [vmem:[%s295 + $0x80] sm:$0xff]
          %v328 = vld [vmem:[%s295 + $0x88] sm:$0xff]
          %v329 = vld [vmem:[%s295 + $0x90] sm:$0xff]
          %v330 = vld [vmem:[%s295 + $0x98] sm:$0xff]
          %v331 = vld [vmem:[%s295 + $0xa0] sm:$0xff]
          %v332 = vld [vmem:[%s295 + $0xa8] sm:$0xff]
          %v333 = vld [vmem:[%s295 + $0xb0] sm:$0xff]
          %v334 = vld [vmem:[%s295 + $0xb8] sm:$0xff]
          %v335 = vld [vmem:[%s295 + $0xc0] sm:$0xff]
          %v336 = vld [vmem:[%s295 + $0xc8] sm:$0xff]
          %v337 = vld [vmem:[%s295 + $0xd0] sm:$0xff]
          %v338 = vld [vmem:[%s295 + $0xd8] sm:$0xff]
          %v339 = vld [vmem:[%s295 + $0xe0] sm:$0xff]
          %v340 = vld [vmem:[%s295 + $0xe8] sm:$0xff]
          %v341 = vld [vmem:[%s295 + $0xf0] sm:$0xff]
          %v342 = vld [vmem:[%s295 + $0xf8] sm:$0xff]
          %v343 = vld [vmem:[%s295 + $0x100] sm:$0xff]
          %v344 = vld [vmem:[%s295 + $0x108] sm:$0xff]
          %v345 = vld [vmem:[%s295 + $0x110] sm:$0xff]
          %v346 = vld [vmem:[%s295 + $0x118] sm:$0xff]
          %v347 = vld [vmem:[%s295 + $0x120] sm:$0xff]
          %v348 = vld [vmem:[%s295 + $0x128] sm:$0xff]
          %v349 = vld [vmem:[%s295 + $0x130] sm:$0xff]
          %v350 = vld [vmem:[%s295 + $0x138] sm:$0xff]
          %v351 = vld [vmem:[%s295 + $0x140] sm:$0xf]
          %352 = vst [vmem:[#allocation2] sm:$0xff] %v311
          %353 = vst [vmem:[#allocation2 + $0x8] sm:$0xff] %v312
          %354 = vst [vmem:[#allocation2 + $0x10] sm:$0xff] %v313
          %355 = vst [vmem:[#allocation2 + $0x18] sm:$0xff] %v314
          %356 = vst [vmem:[#allocation2 + $0x20] sm:$0xff] %v315
          %357 = vst [vmem:[#allocation2 + $0x28] sm:$0xff] %v316
          %358 = vst [vmem:[#allocation2 + $0x30] sm:$0xff] %v317
          %359 = vst [vmem:[#allocation2 + $0x38] sm:$0xff] %v318
          %360 = vst [vmem:[#allocation2 + $0x40] sm:$0xff] %v319
          %361 = vst [vmem:[#allocation2 + $0x48] sm:$0xff] %v320
          %362 = vst [vmem:[#allocation2 + $0x50] sm:$0xff] %v321
          %363 = vst [vmem:[#allocation2 + $0x58] sm:$0xff] %v322
          %364 = vst [vmem:[#allocation2 + $0x60] sm:$0xff] %v323
          %365 = vst [vmem:[#allocation2 + $0x68] sm:$0xff] %v324
          %366 = vst [vmem:[#allocation2 + $0x70] sm:$0xff] %v325
          %367 = vst [vmem:[#allocation2 + $0x78] sm:$0xff] %v326
          %368 = vst [vmem:[#allocation2 + $0x80] sm:$0xff] %v327
          %369 = vst [vmem:[#allocation2 + $0x88] sm:$0xff] %v328
          %370 = vst [vmem:[#allocation2 + $0x90] sm:$0xff] %v329
          %371 = vst [vmem:[#allocation2 + $0x98] sm:$0xff] %v330
          %372 = vst [vmem:[#allocation2 + $0xa0] sm:$0xff] %v331
          %373 = vst [vmem:[#allocation2 + $0xa8] sm:$0xff] %v332
          %374 = vst [vmem:[#allocation2 + $0xb0] sm:$0xff] %v333
          %375 = vst [vmem:[#allocation2 + $0xb8] sm:$0xff] %v334
          %376 = vst [vmem:[#allocation2 + $0xc0] sm:$0xff] %v335
          %377 = vst [vmem:[#allocation2 + $0xc8] sm:$0xff] %v336
          %378 = vst [vmem:[#allocation2 + $0xd0] sm:$0xff] %v337
          %379 = vst [vmem:[#allocation2 + $0xd8] sm:$0xff] %v338
          %380 = vst [vmem:[#allocation2 + $0xe0] sm:$0xff] %v339
          %381 = vst [vmem:[#allocation2 + $0xe8] sm:$0xff] %v340
          %382 = vst [vmem:[#allocation2 + $0xf0] sm:$0xff] %v341
          %383 = vst [vmem:[#allocation2 + $0xf8] sm:$0xff] %v342
          %384 = vst [vmem:[#allocation2 + $0x100] sm:$0xff] %v343
          %385 = vst [vmem:[#allocation2 + $0x108] sm:$0xff] %v344
          %386 = vst [vmem:[#allocation2 + $0x110] sm:$0xff] %v345
          %387 = vst [vmem:[#allocation2 + $0x118] sm:$0xff] %v346
          %388 = vst [vmem:[#allocation2 + $0x120] sm:$0xff] %v347
          %389 = vst [vmem:[#allocation2 + $0x128] sm:$0xff] %v348
          %390 = vst [vmem:[#allocation2 + $0x130] sm:$0xff] %v349
          %391 = vst [vmem:[#allocation2 + $0x138] sm:$0xff] %v350
          %392 = vst [vmem:[#allocation2 + $0x140] sm:$0xf] %v351
        $region48: #{tpu_custom_call.1} parent=39 // pred_fallthru
          _
        %v393 = vld [vmem:[#allocation2] sm:$0xff]
        %v394 = vld [vmem:[#allocation2 + $0x8] sm:$0xff]
        %v395 = vld [vmem:[#allocation2 + $0x10] sm:$0xff]
        %v396 = vld [vmem:[#allocation2 + $0x18] sm:$0xff]
        %v397 = vld [vmem:[#allocation2 + $0x20] sm:$0xff]
        %v398 = vld [vmem:[#allocation2 + $0x28] sm:$0xff]
        %v399 = vld [vmem:[#allocation2 + $0x30] sm:$0xff]
        %v400 = vld [vmem:[#allocation2 + $0x38] sm:$0xff]
        %v401 = vld [vmem:[#allocation2 + $0x40] sm:$0xff]
        %v402 = vld [vmem:[#allocation2 + $0x48] sm:$0xff]
        %v403 = vld [vmem:[#allocation2 + $0x50] sm:$0xff]
        %v404 = vld [vmem:[#allocation2 + $0x58] sm:$0xff]
        %v405 = vld [vmem:[#allocation2 + $0x60] sm:$0xff]
        %v406 = vld [vmem:[#allocation2 + $0x68] sm:$0xff]
        %v407 = vld [vmem:[#allocation2 + $0x70] sm:$0xff]
        %v408 = vld [vmem:[#allocation2 + $0x78] sm:$0xff]
        %v409 = vld [vmem:[#allocation2 + $0x80] sm:$0xff]
        %v410 = vld [vmem:[#allocation2 + $0x88] sm:$0xff]
        %v411 = vld [vmem:[#allocation2 + $0x90] sm:$0xff]
        %v412 = vld [vmem:[#allocation2 + $0x98] sm:$0xff]
        %v413 = vld [vmem:[#allocation2 + $0xa0] sm:$0xff]
        %v414 = vld [vmem:[#allocation2 + $0xa8] sm:$0xff]
        %v415 = vld [vmem:[#allocation2 + $0xb0] sm:$0xff]
        %v416 = vld [vmem:[#allocation2 + $0xb8] sm:$0xff]
        %v417 = vld [vmem:[#allocation2 + $0xc0] sm:$0xff]
        %v418 = vld [vmem:[#allocation2 + $0xc8] sm:$0xff]
        %v419 = vld [vmem:[#allocation2 + $0xd0] sm:$0xff]
        %v420 = vld [vmem:[#allocation2 + $0xd8] sm:$0xff]
        %v421 = vld [vmem:[#allocation2 + $0xe0] sm:$0xff]
        %v422 = vld [vmem:[#allocation2 + $0xe8] sm:$0xff]
        %v423 = vld [vmem:[#allocation2 + $0xf0] sm:$0xff]
        %v424 = vld [vmem:[#allocation2 + $0xf8] sm:$0xff]
        %v425 = vld [vmem:[#allocation2 + $0x100] sm:$0xff]
        %v426 = vld [vmem:[#allocation2 + $0x108] sm:$0xff]
        %v427 = vld [vmem:[#allocation2 + $0x110] sm:$0xff]
        %v428 = vld [vmem:[#allocation2 + $0x118] sm:$0xff]
        %v429 = vld [vmem:[#allocation2 + $0x120] sm:$0xff]
        %v430 = vld [vmem:[#allocation2 + $0x128] sm:$0xff]
        %v431 = vld [vmem:[#allocation2 + $0x130] sm:$0xff]
        %v432 = vld [vmem:[#allocation2 + $0x138] sm:$0xff]
        %v433 = vld [vmem:[#allocation2 + $0x140] sm:$0xf]
        %v434 = vld [vmem:[%s298] sm:$0x1]
        %v436 = vperm.slane %v434, 0
        %v438 = vmul.f32 %v393, %v436
        %v439 = vmul.f32 %v394, %v436
        %v440 = vmul.f32 %v395, %v436
        %v441 = vmul.f32 %v396, %v436
        %v442 = vmul.f32 %v397, %v436
        %v443 = vmul.f32 %v398, %v436
        %v444 = vmul.f32 %v399, %v436
        %v445 = vmul.f32 %v400, %v436
        %v446 = vmul.f32 %v401, %v436
        %v447 = vmul.f32 %v402, %v436
        %v448 = vmul.f32 %v403, %v436
        %v449 = vmul.f32 %v404, %v436
        %v450 = vmul.f32 %v405, %v436
        %v451 = vmul.f32 %v406, %v436
        %v452 = vmul.f32 %v407, %v436
        %v453 = vmul.f32 %v408, %v436
        %v454 = vmul.f32 %v409, %v436
        %v455 = vmul.f32 %v410, %v436
        %v456 = vmul.f32 %v411, %v436
        %v457 = vmul.f32 %v412, %v436
        %v458 = vmul.f32 %v413, %v436
        %v459 = vmul.f32 %v414, %v436
        %v460 = vmul.f32 %v415, %v436
        %v461 = vmul.f32 %v416, %v436
        %v462 = vmul.f32 %v417, %v436
        %v463 = vmul.f32 %v418, %v436
        %v464 = vmul.f32 %v419, %v436
        %v465 = vmul.f32 %v420, %v436
        %v466 = vmul.f32 %v421, %v436
        %v467 = vmul.f32 %v422, %v436
        %v468 = vmul.f32 %v423, %v436
        %v469 = vmul.f32 %v424, %v436
        %v470 = vmul.f32 %v425, %v436
        %v471 = vmul.f32 %v426, %v436
        %v472 = vmul.f32 %v427, %v436
        %v473 = vmul.f32 %v428, %v436
        %v474 = vmul.f32 %v429, %v436
        %v475 = vmul.f32 %v430, %v436
        %v476 = vmul.f32 %v431, %v436
        %v477 = vmul.f32 %v432, %v436
        %v478 = vmul.f32 %v433, %v436
        %v479 = vld [vmem:[%s301] sm:$0x1]
        %v481 = vperm.slane %v479, 0
        %v483 = vadd.f32 %v438, %v481
        %v484 = vadd.f32 %v439, %v481
        %v485 = vadd.f32 %v440, %v481
        %v486 = vadd.f32 %v441, %v481
        %v487 = vadd.f32 %v442, %v481
        %v488 = vadd.f32 %v443, %v481
        %v489 = vadd.f32 %v444, %v481
        %v490 = vadd.f32 %v445, %v481
        %v491 = vadd.f32 %v446, %v481
        %v492 = vadd.f32 %v447, %v481
        %v493 = vadd.f32 %v448, %v481
        %v494 = vadd.f32 %v449, %v481
        %v495 = vadd.f32 %v450, %v481
        %v496 = vadd.f32 %v451, %v481
        %v497 = vadd.f32 %v452, %v481
        %v498 = vadd.f32 %v453, %v481
        %v499 = vadd.f32 %v454, %v481
        %v500 = vadd.f32 %v455, %v481
        %v501 = vadd.f32 %v456, %v481
        %v502 = vadd.f32 %v457, %v481
        %v503 = vadd.f32 %v458, %v481
        %v504 = vadd.f32 %v459, %v481
        %v505 = vadd.f32 %v460, %v481
        %v506 = vadd.f32 %v461, %v481
        %v507 = vadd.f32 %v462, %v481
        %v508 = vadd.f32 %v463, %v481
        %v509 = vadd.f32 %v464, %v481
        %v510 = vadd.f32 %v465, %v481
        %v511 = vadd.f32 %v466, %v481
        %v512 = vadd.f32 %v467, %v481
        %v513 = vadd.f32 %v468, %v481
        %v514 = vadd.f32 %v469, %v481
        %v515 = vadd.f32 %v470, %v481
        %v516 = vadd.f32 %v471, %v481
        %v517 = vadd.f32 %v472, %v481
        %v518 = vadd.f32 %v473, %v481
        %v519 = vadd.f32 %v474, %v481
        %v520 = vadd.f32 %v475, %v481
        %v521 = vadd.f32 %v476, %v481
        %v522 = vadd.f32 %v477, %v481
        %v523 = vadd.f32 %v478, %v481
        %v524 = vmax.f32 %v483, 0.0
        %v525 = vmax.f32 %v484, 0.0
        %v526 = vmax.f32 %v485, 0.0
        %v527 = vmax.f32 %v486, 0.0
        %v528 = vmax.f32 %v487, 0.0
        %v529 = vmax.f32 %v488, 0.0
        %v530 = vmax.f32 %v489, 0.0
        %v531 = vmax.f32 %v490, 0.0
        %v532 = vmax.f32 %v491, 0.0
        %v533 = vmax.f32 %v492, 0.0
        %v534 = vmax.f32 %v493, 0.0
        %v535 = vmax.f32 %v494, 0.0
        %v536 = vmax.f32 %v495, 0.0
        %v537 = vmax.f32 %v496, 0.0
        %v538 = vmax.f32 %v497, 0.0
        %v539 = vmax.f32 %v498, 0.0
        %v540 = vmax.f32 %v499, 0.0
        %v541 = vmax.f32 %v500, 0.0
        %v542 = vmax.f32 %v501, 0.0
        %v543 = vmax.f32 %v502, 0.0
        %v544 = vmax.f32 %v503, 0.0
        %v545 = vmax.f32 %v504, 0.0
        %v546 = vmax.f32 %v505, 0.0
        %v547 = vmax.f32 %v506, 0.0
        %v548 = vmax.f32 %v507, 0.0
        %v549 = vmax.f32 %v508, 0.0
        %v550 = vmax.f32 %v509, 0.0
        %v551 = vmax.f32 %v510, 0.0
        %v552 = vmax.f32 %v511, 0.0
        %v553 = vmax.f32 %v512, 0.0
        %v554 = vmax.f32 %v513, 0.0
        %v555 = vmax.f32 %v514, 0.0
        %v556 = vmax.f32 %v515, 0.0
        %v557 = vmax.f32 %v516, 0.0
        %v558 = vmax.f32 %v517, 0.0
        %v559 = vmax.f32 %v518, 0.0
        %v560 = vmax.f32 %v519, 0.0
        %v561 = vmax.f32 %v520, 0.0
        %v562 = vmax.f32 %v521, 0.0
        %v563 = vmax.f32 %v522, 0.0
        %v564 = vmax.f32 %v523, 0.0
        %v565 = vld [vmem:[%s1] sm:$0xff]
        %v566 = vld [vmem:[%s1 + $0x8] sm:$0xff]
        %v567 = vld [vmem:[%s1 + $0x10] sm:$0xff]
        %v568 = vld [vmem:[%s1 + $0x18] sm:$0xff]
        %v569 = vld [vmem:[%s1 + $0x20] sm:$0xff]
        %v570 = vld [vmem:[%s1 + $0x28] sm:$0xff]
        %v571 = vld [vmem:[%s1 + $0x30] sm:$0xff]
        %v572 = vld [vmem:[%s1 + $0x38] sm:$0xff]
        %v573 = vld [vmem:[%s1 + $0x40] sm:$0xff]
        %v574 = vld [vmem:[%s1 + $0x48] sm:$0xff]
        %v575 = vld [vmem:[%s1 + $0x50] sm:$0xff]
        %v576 = vld [vmem:[%s1 + $0x58] sm:$0xff]
        %v577 = vld [vmem:[%s1 + $0x60] sm:$0xff]
        %v578 = vld [vmem:[%s1 + $0x68] sm:$0xff]
        %v579 = vld [vmem:[%s1 + $0x70] sm:$0xff]
        %v580 = vld [vmem:[%s1 + $0x78] sm:$0xff]
        %v581 = vld [vmem:[%s1 + $0x80] sm:$0xff]
        %v582 = vld [vmem:[%s1 + $0x88] sm:$0xff]
        %v583 = vld [vmem:[%s1 + $0x90] sm:$0xff]
        %v584 = vld [vmem:[%s1 + $0x98] sm:$0xff]
        %v585 = vld [vmem:[%s1 + $0xa0] sm:$0xff]
        %v586 = vld [vmem:[%s1 + $0xa8] sm:$0xff]
        %v587 = vld [vmem:[%s1 + $0xb0] sm:$0xff]
        %v588 = vld [vmem:[%s1 + $0xb8] sm:$0xff]
        %v589 = vld [vmem:[%s1 + $0xc0] sm:$0xff]
        %v590 = vld [vmem:[%s1 + $0xc8] sm:$0xff]
        %v591 = vld [vmem:[%s1 + $0xd0] sm:$0xff]
        %v592 = vld [vmem:[%s1 + $0xd8] sm:$0xff]
        %v593 = vld [vmem:[%s1 + $0xe0] sm:$0xff]
        %v594 = vld [vmem:[%s1 + $0xe8] sm:$0xff]
        %v595 = vld [vmem:[%s1 + $0xf0] sm:$0xff]
        %v596 = vld [vmem:[%s1 + $0xf8] sm:$0xff]
        %v597 = vld [vmem:[%s1 + $0x100] sm:$0xff]
        %v598 = vld [vmem:[%s1 + $0x108] sm:$0xff]
        %v599 = vld [vmem:[%s1 + $0x110] sm:$0xff]
        %v600 = vld [vmem:[%s1 + $0x118] sm:$0xff]
        %v601 = vld [vmem:[%s1 + $0x120] sm:$0xff]
        %v602 = vld [vmem:[%s1 + $0x128] sm:$0xff]
        %v603 = vld [vmem:[%s1 + $0x130] sm:$0xff]
        %v604 = vld [vmem:[%s1 + $0x138] sm:$0xff]
        %v605 = vld [vmem:[%s1 + $0x140] sm:$0xf]
        %607 = vset.pattern.permute.xlu0 0
        %608 = vperm.xlu0 %607, %v565
        %v609 = vpop.permute.xlu0 %608
        %612 = vset.pattern.permute.xlu0 0
        %613 = vperm.xlu0 %612, %v566
        %v614 = vpop.permute.xlu0 %613
        %617 = vset.pattern.permute.xlu0 0
        %618 = vperm.xlu0 %617, %v567
        %v619 = vpop.permute.xlu0 %618
        %622 = vset.pattern.permute.xlu0 0
        %623 = vperm.xlu0 %622, %v568
        %v624 = vpop.permute.xlu0 %623
        %627 = vset.pattern.permute.xlu0 0
        %628 = vperm.xlu0 %627, %v569
        %v629 = vpop.permute.xlu0 %628
        %632 = vset.pattern.permute.xlu0 0
        %633 = vperm.xlu0 %632, %v570
        %v634 = vpop.permute.xlu0 %633
        %637 = vset.pattern.permute.xlu0 0
        %638 = vperm.xlu0 %637, %v571
        %v639 = vpop.permute.xlu0 %638
        %642 = vset.pattern.permute.xlu0 0
        %643 = vperm.xlu0 %642, %v572
        %v644 = vpop.permute.xlu0 %643
        %647 = vset.pattern.permute.xlu0 0
        %648 = vperm.xlu0 %647, %v573
        %v649 = vpop.permute.xlu0 %648
        %652 = vset.pattern.permute.xlu0 0
        %653 = vperm.xlu0 %652, %v574
        %v654 = vpop.permute.xlu0 %653
        %657 = vset.pattern.permute.xlu0 0
        %658 = vperm.xlu0 %657, %v575
        %v659 = vpop.permute.xlu0 %658
        %662 = vset.pattern.permute.xlu0 0
        %663 = vperm.xlu0 %662, %v576
        %v664 = vpop.permute.xlu0 %663
        %667 = vset.pattern.permute.xlu0 0
        %668 = vperm.xlu0 %667, %v577
        %v669 = vpop.permute.xlu0 %668
        %672 = vset.pattern.permute.xlu0 0
        %673 = vperm.xlu0 %672, %v578
        %v674 = vpop.permute.xlu0 %673
        %677 = vset.pattern.permute.xlu0 0
        %678 = vperm.xlu0 %677, %v579
        %v679 = vpop.permute.xlu0 %678
        %682 = vset.pattern.permute.xlu0 0
        %683 = vperm.xlu0 %682, %v580
        %v684 = vpop.permute.xlu0 %683
        %687 = vset.pattern.permute.xlu0 0
        %688 = vperm.xlu0 %687, %v581
        %v689 = vpop.permute.xlu0 %688
        %692 = vset.pattern.permute.xlu0 0
        %693 = vperm.xlu0 %692, %v582
        %v694 = vpop.permute.xlu0 %693
        %697 = vset.pattern.permute.xlu0 0
        %698 = vperm.xlu0 %697, %v583
        %v699 = vpop.permute.xlu0 %698
        %702 = vset.pattern.permute.xlu0 0
        %703 = vperm.xlu0 %702, %v584
        %v704 = vpop.permute.xlu0 %703
        %707 = vset.pattern.permute.xlu0 0
        %708 = vperm.xlu0 %707, %v585
        %v709 = vpop.permute.xlu0 %708
        %712 = vset.pattern.permute.xlu0 0
        %713 = vperm.xlu0 %712, %v586
        %v714 = vpop.permute.xlu0 %713
        %717 = vset.pattern.permute.xlu0 0
        %718 = vperm.xlu0 %717, %v587
        %v719 = vpop.permute.xlu0 %718
        %722 = vset.pattern.permute.xlu0 0
        %723 = vperm.xlu0 %722, %v588
        %v724 = vpop.permute.xlu0 %723
        %727 = vset.pattern.permute.xlu0 0
        %728 = vperm.xlu0 %727, %v589
        %v729 = vpop.permute.xlu0 %728
        %732 = vset.pattern.permute.xlu0 0
        %733 = vperm.xlu0 %732, %v590
        %v734 = vpop.permute.xlu0 %733
        %737 = vset.pattern.permute.xlu0 0
        %738 = vperm.xlu0 %737, %v591
        %v739 = vpop.permute.xlu0 %738
        %742 = vset.pattern.permute.xlu0 0
        %743 = vperm.xlu0 %742, %v592
        %v744 = vpop.permute.xlu0 %743
        %747 = vset.pattern.permute.xlu0 0
        %748 = vperm.xlu0 %747, %v593
        %v749 = vpop.permute.xlu0 %748
        %752 = vset.pattern.permute.xlu0 0
        %753 = vperm.xlu0 %752, %v594
        %v754 = vpop.permute.xlu0 %753
        %757 = vset.pattern.permute.xlu0 0
        %758 = vperm.xlu0 %757, %v595
        %v759 = vpop.permute.xlu0 %758
        %762 = vset.pattern.permute.xlu0 0
        %763 = vperm.xlu0 %762, %v596
        %v764 = vpop.permute.xlu0 %763
        %767 = vset.pattern.permute.xlu0 0
        %768 = vperm.xlu0 %767, %v597
        %v769 = vpop.permute.xlu0 %768
        %772 = vset.pattern.permute.xlu0 0
        %773 = vperm.xlu0 %772, %v598
        %v774 = vpop.permute.xlu0 %773
        %777 = vset.pattern.permute.xlu0 0
        %778 = vperm.xlu0 %777, %v599
        %v779 = vpop.permute.xlu0 %778
        %782 = vset.pattern.permute.xlu0 0
        %783 = vperm.xlu0 %782, %v600
        %v784 = vpop.permute.xlu0 %783
        %787 = vset.pattern.permute.xlu0 0
        %788 = vperm.xlu0 %787, %v601
        %v789 = vpop.permute.xlu0 %788
        %792 = vset.pattern.permute.xlu0 0
        %793 = vperm.xlu0 %792, %v602
        %v794 = vpop.permute.xlu0 %793
        %797 = vset.pattern.permute.xlu0 0
        %798 = vperm.xlu0 %797, %v603
        %v799 = vpop.permute.xlu0 %798
        %802 = vset.pattern.permute.xlu0 0
        %803 = vperm.xlu0 %802, %v604
        %v804 = vpop.permute.xlu0 %803
        %807 = vset.pattern.permute.xlu0 0
        %808 = vperm.xlu0 %807, %v605
        %v809 = vpop.permute.xlu0 %808
        %v811 = vmul.f32 %v524, %v609
        %v812 = vmul.f32 %v525, %v614
        %v813 = vmul.f32 %v526, %v619
        %v814 = vmul.f32 %v527, %v624
        %v815 = vmul.f32 %v528, %v629
        %v816 = vmul.f32 %v529, %v634
        %v817 = vmul.f32 %v530, %v639
        %v818 = vmul.f32 %v531, %v644
        %v819 = vmul.f32 %v532, %v649
        %v820 = vmul.f32 %v533, %v654
        %v821 = vmul.f32 %v534, %v659
        %v822 = vmul.f32 %v535, %v664
        %v823 = vmul.f32 %v536, %v669
        %v824 = vmul.f32 %v537, %v674
        %v825 = vmul.f32 %v538, %v679
        %v826 = vmul.f32 %v539, %v684
        %v827 = vmul.f32 %v540, %v689
        %v828 = vmul.f32 %v541, %v694
        %v829 = vmul.f32 %v542, %v699
        %v830 = vmul.f32 %v543, %v704
        %v831 = vmul.f32 %v544, %v709
        %v832 = vmul.f32 %v545, %v714
        %v833 = vmul.f32 %v546, %v719
        %v834 = vmul.f32 %v547, %v724
        %v835 = vmul.f32 %v548, %v729
        %v836 = vmul.f32 %v549, %v734
        %v837 = vmul.f32 %v550, %v739
        %v838 = vmul.f32 %v551, %v744
        %v839 = vmul.f32 %v552, %v749
        %v840 = vmul.f32 %v553, %v754
        %v841 = vmul.f32 %v554, %v759
        %v842 = vmul.f32 %v555, %v764
        %v843 = vmul.f32 %v556, %v769
        %v844 = vmul.f32 %v557, %v774
        %v845 = vmul.f32 %v558, %v779
        %v846 = vmul.f32 %v559, %v784
        %v847 = vmul.f32 %v560, %v789
        %v848 = vmul.f32 %v561, %v794
        %v849 = vmul.f32 %v562, %v799
        %v850 = vmul.f32 %v563, %v804
        %v851 = vmul.f32 %v564, %v809
        %852 = vst [vmem:[#allocation3] sm:$0xff] %v811
        %853 = vst [vmem:[#allocation3 + $0x8] sm:$0xff] %v812
        %854 = vst [vmem:[#allocation3 + $0x10] sm:$0xff] %v813
        %855 = vst [vmem:[#allocation3 + $0x18] sm:$0xff] %v814
        %856 = vst [vmem:[#allocation3 + $0x20] sm:$0xff] %v815
        %857 = vst [vmem:[#allocation3 + $0x28] sm:$0xff] %v816
        %858 = vst [vmem:[#allocation3 + $0x30] sm:$0xff] %v817
        %859 = vst [vmem:[#allocation3 + $0x38] sm:$0xff] %v818
        %860 = vst [vmem:[#allocation3 + $0x40] sm:$0xff] %v819
        %861 = vst [vmem:[#allocation3 + $0x48] sm:$0xff] %v820
        %862 = vst [vmem:[#allocation3 + $0x50] sm:$0xff] %v821
        %863 = vst [vmem:[#allocation3 + $0x58] sm:$0xff] %v822
        %864 = vst [vmem:[#allocation3 + $0x60] sm:$0xff] %v823
        %865 = vst [vmem:[#allocation3 + $0x68] sm:$0xff] %v824
        %866 = vst [vmem:[#allocation3 + $0x70] sm:$0xff] %v825
        %867 = vst [vmem:[#allocation3 + $0x78] sm:$0xff] %v826
        %868 = vst [vmem:[#allocation3 + $0x80] sm:$0xff] %v827
        %869 = vst [vmem:[#allocation3 + $0x88] sm:$0xff] %v828
        %870 = vst [vmem:[#allocation3 + $0x90] sm:$0xff] %v829
        %871 = vst [vmem:[#allocation3 + $0x98] sm:$0xff] %v830
        %872 = vst [vmem:[#allocation3 + $0xa0] sm:$0xff] %v831
        %873 = vst [vmem:[#allocation3 + $0xa8] sm:$0xff] %v832
        %874 = vst [vmem:[#allocation3 + $0xb0] sm:$0xff] %v833
        %875 = vst [vmem:[#allocation3 + $0xb8] sm:$0xff] %v834
        %876 = vst [vmem:[#allocation3 + $0xc0] sm:$0xff] %v835
        %877 = vst [vmem:[#allocation3 + $0xc8] sm:$0xff] %v836
        %878 = vst [vmem:[#allocation3 + $0xd0] sm:$0xff] %v837
        %879 = vst [vmem:[#allocation3 + $0xd8] sm:$0xff] %v838
        %880 = vst [vmem:[#allocation3 + $0xe0] sm:$0xff] %v839
        %881 = vst [vmem:[#allocation3 + $0xe8] sm:$0xff] %v840
        %882 = vst [vmem:[#allocation3 + $0xf0] sm:$0xff] %v841
        %883 = vst [vmem:[#allocation3 + $0xf8] sm:$0xff] %v842
        %884 = vst [vmem:[#allocation3 + $0x100] sm:$0xff] %v843
        %885 = vst [vmem:[#allocation3 + $0x108] sm:$0xff] %v844
        %886 = vst [vmem:[#allocation3 + $0x110] sm:$0xff] %v845
        %887 = vst [vmem:[#allocation3 + $0x118] sm:$0xff] %v846
        %888 = vst [vmem:[#allocation3 + $0x120] sm:$0xff] %v847
        %889 = vst [vmem:[#allocation3 + $0x128] sm:$0xff] %v848
        %890 = vst [vmem:[#allocation3 + $0x130] sm:$0xff] %v849
        %891 = vst [vmem:[#allocation3 + $0x138] sm:$0xff] %v850
        %892 = vst [vmem:[#allocation3 + $0x140] sm:$0xf] %v851
        %v893 = vld [vmem:[#allocation3] sm:$0xff]
        %v894 = vld [vmem:[#allocation3 + $0x8] sm:$0xff]
        %v895 = vld [vmem:[#allocation3 + $0x10] sm:$0xff]
        %v896 = vld [vmem:[#allocation3 + $0x18] sm:$0xff]
        %v897 = vld [vmem:[#allocation3 + $0x20] sm:$0xff]
        %v898 = vld [vmem:[#allocation3 + $0x28] sm:$0xff]
        %v899 = vld [vmem:[#allocation3 + $0x30] sm:$0xff]
        %v900 = vld [vmem:[#allocation3 + $0x38] sm:$0xff]
        %v901 = vld [vmem:[#allocation3 + $0x40] sm:$0xff]
        %v902 = vld [vmem:[#allocation3 + $0x48] sm:$0xff]
        %v903 = vld [vmem:[#allocation3 + $0x50] sm:$0xff]
        %v904 = vld [vmem:[#allocation3 + $0x58] sm:$0xff]
        %v905 = vld [vmem:[#allocation3 + $0x60] sm:$0xff]
        %v906 = vld [vmem:[#allocation3 + $0x68] sm:$0xff]
        %v907 = vld [vmem:[#allocation3 + $0x70] sm:$0xff]
        %v908 = vld [vmem:[#allocation3 + $0x78] sm:$0xff]
        %v909 = vld [vmem:[#allocation3 + $0x80] sm:$0xff]
        %v910 = vld [vmem:[#allocation3 + $0x88] sm:$0xff]
        %v911 = vld [vmem:[#allocation3 + $0x90] sm:$0xff]
        %v912 = vld [vmem:[#allocation3 + $0x98] sm:$0xff]
        %v913 = vld [vmem:[#allocation3 + $0xa0] sm:$0xff]
        %v914 = vld [vmem:[#allocation3 + $0xa8] sm:$0xff]
        %v915 = vld [vmem:[#allocation3 + $0xb0] sm:$0xff]
        %v916 = vld [vmem:[#allocation3 + $0xb8] sm:$0xff]
        %v917 = vld [vmem:[#allocation3 + $0xc0] sm:$0xff]
        %v918 = vld [vmem:[#allocation3 + $0xc8] sm:$0xff]
        %v919 = vld [vmem:[#allocation3 + $0xd0] sm:$0xff]
        %v920 = vld [vmem:[#allocation3 + $0xd8] sm:$0xff]
        %v921 = vld [vmem:[#allocation3 + $0xe0] sm:$0xff]
        %v922 = vld [vmem:[#allocation3 + $0xe8] sm:$0xff]
        %v923 = vld [vmem:[#allocation3 + $0xf0] sm:$0xff]
        %v924 = vld [vmem:[#allocation3 + $0xf8] sm:$0xff]
        %v925 = vld [vmem:[#allocation3 + $0x100] sm:$0xff]
        %v926 = vld [vmem:[#allocation3 + $0x108] sm:$0xff]
        %v927 = vld [vmem:[#allocation3 + $0x110] sm:$0xff]
        %v928 = vld [vmem:[#allocation3 + $0x118] sm:$0x3f]
        %v929 = vpack.c.bf16 %v894, %v893
        %v930 = vpack.c.bf16 %v896, %v895
        %v931 = vpack.c.bf16 %v898, %v897
        %v932 = vpack.c.bf16 %v900, %v899
        %v933 = vpack.c.bf16 %v902, %v901
        %v934 = vpack.c.bf16 %v904, %v903
        %v935 = vpack.c.bf16 %v906, %v905
        %v936 = vpack.c.bf16 %v908, %v907
        %v937 = vpack.c.bf16 %v910, %v909
        %v938 = vpack.c.bf16 %v912, %v911
        %v939 = vpack.c.bf16 %v914, %v913
        %v940 = vpack.c.bf16 %v916, %v915
        %v941 = vpack.c.bf16 %v918, %v917
        %v942 = vpack.c.bf16 %v920, %v919
        %v943 = vpack.c.bf16 %v922, %v921
        %v944 = vpack.c.bf16 %v924, %v923
        %v945 = vpack.c.bf16 %v926, %v925
        %v946 = vpack.c.bf16 %v928, %v927
        %v947 = vld [vmem:[%s252] sm:$0xf]
        %v948 = vld [vmem:[%s252 + $0x4] sm:$0xf]
        %v949 = vld [vmem:[%s252 + $0x8] sm:$0xf]
        %v950 = vld [vmem:[%s252 + $0xc] sm:$0xf]
        %v951 = vld [vmem:[%s252 + $0x10] sm:$0xf]
        %v952 = vld [vmem:[%s252 + $0x14] sm:$0xf]
        %v953 = vld [vmem:[%s252 + $0x18] sm:$0xf]
        %v954 = vld [vmem:[%s252 + $0x1c] sm:$0xf]
        %v955 = vld [vmem:[%s252 + $0x20] sm:$0xf]
        %v956 = vld [vmem:[%s252 + $0x24] sm:$0xf]
        %v957 = vld [vmem:[%s252 + $0x28] sm:$0xf]
        %v958 = vld [vmem:[%s252 + $0x2c] sm:$0xf]
        %v959 = vld [vmem:[%s252 + $0x30] sm:$0xf]
        %v960 = vld [vmem:[%s252 + $0x34] sm:$0xf]
        %v961 = vld [vmem:[%s252 + $0x38] sm:$0xf]
        %v962 = vld [vmem:[%s252 + $0x3c] sm:$0xf]
        %v963 = vld [vmem:[#allocation3 + $0x1] sm:$0xff]
        %v964 = vld [vmem:[#allocation3 + $0x9] sm:$0xff]
        %v965 = vld [vmem:[#allocation3 + $0x11] sm:$0xff]
        %v966 = vld [vmem:[#allocation3 + $0x19] sm:$0xff]
        %v967 = vld [vmem:[#allocation3 + $0x21] sm:$0xff]
        %v968 = vld [vmem:[#allocation3 + $0x29] sm:$0xff]
        %v969 = vld [vmem:[#allocation3 + $0x31] sm:$0xff]
        %v970 = vld [vmem:[#allocation3 + $0x39] sm:$0xff]
        %v971 = vld [vmem:[#allocation3 + $0x41] sm:$0xff]
        %v972 = vld [vmem:[#allocation3 + $0x49] sm:$0xff]
        %v973 = vld [vmem:[#allocation3 + $0x51] sm:$0xff]
        %v974 = vld [vmem:[#allocation3 + $0x59] sm:$0xff]
        %v975 = vld [vmem:[#allocation3 + $0x61] sm:$0xff]
        %v976 = vld [vmem:[#allocation3 + $0x69] sm:$0xff]
        %v977 = vld [vmem:[#allocation3 + $0x71] sm:$0xff]
        %v978 = vld [vmem:[#allocation3 + $0x79] sm:$0xff]
        %v979 = vld [vmem:[#allocation3 + $0x81] sm:$0xff]
        %v980 = vld [vmem:[#allocation3 + $0x89] sm:$0xff]
        %v981 = vld [vmem:[#allocation3 + $0x91] sm:$0xff]
        %v982 = vld [vmem:[#allocation3 + $0x99] sm:$0xff]
        %v983 = vld [vmem:[#allocation3 + $0xa1] sm:$0xff]
        %v984 = vld [vmem:[#allocation3 + $0xa9] sm:$0xff]
        %v985 = vld [vmem:[#allocation3 + $0xb1] sm:$0xff]
        %v986 = vld [vmem:[#allocation3 + $0xb9] sm:$0xff]
        %v987 = vld [vmem:[#allocation3 + $0xc1] sm:$0xff]
        %v988 = vld [vmem:[#allocation3 + $0xc9] sm:$0xff]
        %v989 = vld [vmem:[#allocation3 + $0xd1] sm:$0xff]
        %v990 = vld [vmem:[#allocation3 + $0xd9] sm:$0xff]
        %v991 = vld [vmem:[#allocation3 + $0xe1] sm:$0xff]
        %v992 = vld [vmem:[#allocation3 + $0xe9] sm:$0xff]
        %v993 = vld [vmem:[#allocation3 + $0xf1] sm:$0xff]
        %v994 = vld [vmem:[#allocation3 + $0xf9] sm:$0xff]
        %v995 = vld [vmem:[#allocation3 + $0x101] sm:$0xff]
        %v996 = vld [vmem:[#allocation3 + $0x109] sm:$0xff]
        %v997 = vld [vmem:[#allocation3 + $0x111] sm:$0xff]
        %v998 = vld [vmem:[#allocation3 + $0x119] sm:$0x3f]
        %v999 = vpack.c.bf16 %v964, %v963
        %v1000 = vpack.c.bf16 %v966, %v965
        %v1001 = vpack.c.bf16 %v968, %v967
        %v1002 = vpack.c.bf16 %v970, %v969
        %v1003 = vpack.c.bf16 %v972, %v971
        %v1004 = vpack.c.bf16 %v974, %v973
        %v1005 = vpack.c.bf16 %v976, %v975
        %v1006 = vpack.c.bf16 %v978, %v977
        %v1007 = vpack.c.bf16 %v980, %v979
        %v1008 = vpack.c.bf16 %v982, %v981
        %v1009 = vpack.c.bf16 %v984, %v983
        %v1010 = vpack.c.bf16 %v986, %v985
        %v1011 = vpack.c.bf16 %v988, %v987
        %v1012 = vpack.c.bf16 %v990, %v989
        %v1013 = vpack.c.bf16 %v992, %v991
        %v1014 = vpack.c.bf16 %v994, %v993
        %v1015 = vpack.c.bf16 %v996, %v995
        %v1016 = vpack.c.bf16 %v998, %v997
        %s1017 = scalar_lea.vmem %s252, 64 [#allocation4]
        %v1018 = vld [vmem:[%s1017] sm:$0xf]
        %v1019 = vld [vmem:[%s1017 + $0x4] sm:$0xf]
        %v1020 = vld [vmem:[%s1017 + $0x8] sm:$0xf]
        %v1021 = vld [vmem:[%s1017 + $0xc] sm:$0xf]
        %v1022 = vld [vmem:[%s1017 + $0x10] sm:$0xf]
        %v1023 = vld [vmem:[%s1017 + $0x14] sm:$0xf]
        %v1024 = vld [vmem:[%s1017 + $0x18] sm:$0xf]
        %v1025 = vld [vmem:[%s1017 + $0x1c] sm:$0xf]
        %v1026 = vld [vmem:[%s1017 + $0x20] sm:$0xf]
        %v1027 = vld [vmem:[%s1017 + $0x24] sm:$0xf]
        %v1028 = vld [vmem:[%s1017 + $0x28] sm:$0xf]
        %v1029 = vld [vmem:[%s1017 + $0x2c] sm:$0xf]
        %v1030 = vld [vmem:[%s1017 + $0x30] sm:$0xf]
        %v1031 = vld [vmem:[%s1017 + $0x34] sm:$0xf]
        %v1032 = vld [vmem:[%s1017 + $0x38] sm:$0xf]
        %v1033 = vld [vmem:[%s1017 + $0x3c] sm:$0xf]
        %v1050 = vunpack.c.l.b16 %v1018
        %v1051 = vunpack.c.l.b16 %v1019
        %v1052 = vunpack.c.l.b16 %v1020
        %v1053 = vunpack.c.l.b16 %v1021
        %v1054 = vunpack.c.l.b16 %v1022
        %v1055 = vunpack.c.l.b16 %v1023
        %v1056 = vunpack.c.l.b16 %v1024
        %v1057 = vunpack.c.l.b16 %v1025
        %v1058 = vunpack.c.l.b16 %v1026
        %v1059 = vunpack.c.l.b16 %v1027
        %v1060 = vunpack.c.l.b16 %v1028
        %v1061 = vunpack.c.l.b16 %v1029
        %v1062 = vunpack.c.l.b16 %v1030
        %v1063 = vunpack.c.l.b16 %v1031
        %v1064 = vunpack.c.l.b16 %v1032
        %v1065 = vunpack.c.l.b16 %v1033
        %v1066 = vpack.c.b16 %v1051, %v1050
        %v1067 = vpack.c.b16 %v1053, %v1052
        %v1068 = vpack.c.b16 %v1055, %v1054
        %v1069 = vpack.c.b16 %v1057, %v1056
        %v1070 = vpack.c.b16 %v1059, %v1058
        %v1071 = vpack.c.b16 %v1061, %v1060
        %v1072 = vpack.c.b16 %v1063, %v1062
        %v1073 = vpack.c.b16 %v1065, %v1064
        %1082 = vmatpush.bf16.msra.mxu0 %v1073
        %1083 = vmatpush.bf16.msra.mxu0 %v1072
        %1084 = vmatpush.bf16.msra.mxu0 %v1071
        %1085 = vmatpush.bf16.msra.mxu0 %v1070
        %1086 = vmatpush.bf16.msra.mxu0 %v1069
        %1087 = vmatpush.bf16.msra.mxu0 %v1068
        %1088 = vmatpush.bf16.msra.mxu0 %v1067
        %1089 = vmatpush.bf16.msra.mxu0 %v1066
        %1090 = vmatmul.bf16.gmra.mxu0 %v999
        %v1091 = vpop.f32.mrf.mxu0
        %v1092 = vadd.f32 0.0, %v1091
        %v1093 = vpop.f32.mrf.mxu0
        %v1094 = vadd.f32 0.0, %v1093
        %1095 = vmatmul.bf16.gmra.mxu0 %v1000
        %v1096 = vpop.f32.mrf.mxu0
        %v1097 = vadd.f32 0.0, %v1096
        %v1098 = vpop.f32.mrf.mxu0
        %v1099 = vadd.f32 0.0, %v1098
        %1100 = vmatmul.bf16.gmra.mxu0 %v1001
        %v1101 = vpop.f32.mrf.mxu0
        %v1102 = vadd.f32 0.0, %v1101
        %v1103 = vpop.f32.mrf.mxu0
        %v1104 = vadd.f32 0.0, %v1103
        %1105 = vmatmul.bf16.gmra.mxu0 %v1002
        %v1106 = vpop.f32.mrf.mxu0
        %v1107 = vadd.f32 0.0, %v1106
        %v1108 = vpop.f32.mrf.mxu0
        %v1109 = vadd.f32 0.0, %v1108
        %1110 = vmatmul.bf16.gmra.mxu0 %v1003
        %v1111 = vpop.f32.mrf.mxu0
        %v1112 = vadd.f32 0.0, %v1111
        %v1113 = vpop.f32.mrf.mxu0
        %v1114 = vadd.f32 0.0, %v1113
        %1115 = vmatmul.bf16.gmra.mxu0 %v1004
        %v1116 = vpop.f32.mrf.mxu0
        %v1117 = vadd.f32 0.0, %v1116
        %v1118 = vpop.f32.mrf.mxu0
        %v1119 = vadd.f32 0.0, %v1118
        %1120 = vmatmul.bf16.gmra.mxu0 %v1005
        %v1121 = vpop.f32.mrf.mxu0
        %v1122 = vadd.f32 0.0, %v1121
        %v1123 = vpop.f32.mrf.mxu0
        %v1124 = vadd.f32 0.0, %v1123
        %1125 = vmatmul.bf16.gmra.mxu0 %v1006
        %v1126 = vpop.f32.mrf.mxu0
        %v1127 = vadd.f32 0.0, %v1126
        %v1128 = vpop.f32.mrf.mxu0
        %v1129 = vadd.f32 0.0, %v1128
        %1130 = vmatmul.bf16.gmra.mxu0 %v1007
        %v1131 = vpop.f32.mrf.mxu0
        %v1132 = vadd.f32 0.0, %v1131
        %v1133 = vpop.f32.mrf.mxu0
        %v1134 = vadd.f32 0.0, %v1133
        %1135 = vmatmul.bf16.gmra.mxu0 %v1008
        %v1136 = vpop.f32.mrf.mxu0
        %v1137 = vadd.f32 0.0, %v1136
        %v1138 = vpop.f32.mrf.mxu0
        %v1139 = vadd.f32 0.0, %v1138
        %1140 = vmatmul.bf16.gmra.mxu0 %v1009
        %v1141 = vpop.f32.mrf.mxu0
        %v1142 = vadd.f32 0.0, %v1141
        %v1143 = vpop.f32.mrf.mxu0
        %v1144 = vadd.f32 0.0, %v1143
        %1145 = vmatmul.bf16.gmra.mxu0 %v1010
        %v1146 = vpop.f32.mrf.mxu0
        %v1147 = vadd.f32 0.0, %v1146
        %v1148 = vpop.f32.mrf.mxu0
        %v1149 = vadd.f32 0.0, %v1148
        %1150 = vmatmul.bf16.gmra.mxu0 %v1011
        %v1151 = vpop.f32.mrf.mxu0
        %v1152 = vadd.f32 0.0, %v1151
        %v1153 = vpop.f32.mrf.mxu0
        %v1154 = vadd.f32 0.0, %v1153
        %1155 = vmatmul.bf16.gmra.mxu0 %v1012
        %v1156 = vpop.f32.mrf.mxu0
        %v1157 = vadd.f32 0.0, %v1156
        %v1158 = vpop.f32.mrf.mxu0
        %v1159 = vadd.f32 0.0, %v1158
        %1160 = vmatmul.bf16.gmra.mxu0 %v1013
        %v1161 = vpop.f32.mrf.mxu0
        %v1162 = vadd.f32 0.0, %v1161
        %v1163 = vpop.f32.mrf.mxu0
        %v1164 = vadd.f32 0.0, %v1163
        %1165 = vmatmul.bf16.gmra.mxu0 %v1014
        %v1166 = vpop.f32.mrf.mxu0
        %v1167 = vadd.f32 0.0, %v1166
        %v1168 = vpop.f32.mrf.mxu0
        %v1169 = vadd.f32 0.0, %v1168
        %1170 = vmatmul.bf16.gmra.mxu0 %v1015
        %v1171 = vpop.f32.mrf.mxu0
        %v1172 = vadd.f32 0.0, %v1171
        %v1173 = vpop.f32.mrf.mxu0
        %v1174 = vadd.f32 0.0, %v1173
        %1175 = vmatmul.bf16.gmra.mxu0 %v1016
        %v1176 = vpop.f32.mrf.mxu0
        %v1177 = vadd.f32 0.0, %v1176
        %v1178 = vpop.f32.mrf.mxu0
        %v1179 = vadd.f32 0.0, %v1178
        %1180 = vdwg.mxu0
        %v1197 = vunpack.c.l.b16 %v947
        %v1198 = vunpack.c.l.b16 %v948
        %v1199 = vunpack.c.l.b16 %v949
        %v1200 = vunpack.c.l.b16 %v950
        %v1201 = vunpack.c.l.b16 %v951
        %v1202 = vunpack.c.l.b16 %v952
        %v1203 = vunpack.c.l.b16 %v953
        %v1204 = vunpack.c.l.b16 %v954
        %v1205 = vunpack.c.l.b16 %v955
        %v1206 = vunpack.c.l.b16 %v956
        %v1207 = vunpack.c.l.b16 %v957
        %v1208 = vunpack.c.l.b16 %v958
        %v1209 = vunpack.c.l.b16 %v959
        %v1210 = vunpack.c.l.b16 %v960
        %v1211 = vunpack.c.l.b16 %v961
        %v1212 = vunpack.c.l.b16 %v962
        %v1213 = vpack.c.b16 %v1198, %v1197
        %v1214 = vpack.c.b16 %v1200, %v1199
        %v1215 = vpack.c.b16 %v1202, %v1201
        %v1216 = vpack.c.b16 %v1204, %v1203
        %v1217 = vpack.c.b16 %v1206, %v1205
        %v1218 = vpack.c.b16 %v1208, %v1207
        %v1219 = vpack.c.b16 %v1210, %v1209
        %v1220 = vpack.c.b16 %v1212, %v1211
        %1229 = vmatpush.bf16.msra.mxu0 %v1220
        %1230 = vmatpush.bf16.msra.mxu0 %v1219
        %1231 = vmatpush.bf16.msra.mxu0 %v1218
        %1232 = vmatpush.bf16.msra.mxu0 %v1217
        %1233 = vmatpush.bf16.msra.mxu0 %v1216
        %1234 = vmatpush.bf16.msra.mxu0 %v1215
        %1235 = vmatpush.bf16.msra.mxu0 %v1214
        %1236 = vmatpush.bf16.msra.mxu0 %v1213
        %1237 = vmatmul.bf16.gmra.mxu0 %v929
        %v1238 = vpop.f32.mrf.mxu0
        %v1239 = vadd.f32 %v1092, %v1238
        %v1240 = vpop.f32.mrf.mxu0
        %v1241 = vadd.f32 %v1094, %v1240
        %1242 = vmatmul.bf16.gmra.mxu0 %v930
        %v1243 = vpop.f32.mrf.mxu0
        %v1244 = vadd.f32 %v1097, %v1243
        %v1245 = vpop.f32.mrf.mxu0
        %v1246 = vadd.f32 %v1099, %v1245
        %1247 = vmatmul.bf16.gmra.mxu0 %v931
        %v1248 = vpop.f32.mrf.mxu0
        %v1249 = vadd.f32 %v1102, %v1248
        %v1250 = vpop.f32.mrf.mxu0
        %v1251 = vadd.f32 %v1104, %v1250
        %1252 = vmatmul.bf16.gmra.mxu0 %v932
        %v1253 = vpop.f32.mrf.mxu0
        %v1254 = vadd.f32 %v1107, %v1253
        %v1255 = vpop.f32.mrf.mxu0
        %v1256 = vadd.f32 %v1109, %v1255
        %1257 = vmatmul.bf16.gmra.mxu0 %v933
        %v1258 = vpop.f32.mrf.mxu0
        %v1259 = vadd.f32 %v1112, %v1258
        %v1260 = vpop.f32.mrf.mxu0
        %v1261 = vadd.f32 %v1114, %v1260
        %1262 = vmatmul.bf16.gmra.mxu0 %v934
        %v1263 = vpop.f32.mrf.mxu0
        %v1264 = vadd.f32 %v1117, %v1263
        %v1265 = vpop.f32.mrf.mxu0
        %v1266 = vadd.f32 %v1119, %v1265
        %1267 = vmatmul.bf16.gmra.mxu0 %v935
        %v1268 = vpop.f32.mrf.mxu0
        %v1269 = vadd.f32 %v1122, %v1268
        %v1270 = vpop.f32.mrf.mxu0
        %v1271 = vadd.f32 %v1124, %v1270
        %1272 = vmatmul.bf16.gmra.mxu0 %v936
        %v1273 = vpop.f32.mrf.mxu0
        %v1274 = vadd.f32 %v1127, %v1273
        %v1275 = vpop.f32.mrf.mxu0
        %v1276 = vadd.f32 %v1129, %v1275
        %1277 = vmatmul.bf16.gmra.mxu0 %v937
        %v1278 = vpop.f32.mrf.mxu0
        %v1279 = vadd.f32 %v1132, %v1278
        %v1280 = vpop.f32.mrf.mxu0
        %v1281 = vadd.f32 %v1134, %v1280
        %1282 = vmatmul.bf16.gmra.mxu0 %v938
        %v1283 = vpop.f32.mrf.mxu0
        %v1284 = vadd.f32 %v1137, %v1283
        %v1285 = vpop.f32.mrf.mxu0
        %v1286 = vadd.f32 %v1139, %v1285
        %1287 = vmatmul.bf16.gmra.mxu0 %v939
        %v1288 = vpop.f32.mrf.mxu0
        %v1289 = vadd.f32 %v1142, %v1288
        %v1290 = vpop.f32.mrf.mxu0
        %v1291 = vadd.f32 %v1144, %v1290
        %1292 = vmatmul.bf16.gmra.mxu0 %v940
        %v1293 = vpop.f32.mrf.mxu0
        %v1294 = vadd.f32 %v1147, %v1293
        %v1295 = vpop.f32.mrf.mxu0
        %v1296 = vadd.f32 %v1149, %v1295
        %1297 = vmatmul.bf16.gmra.mxu0 %v941
        %v1298 = vpop.f32.mrf.mxu0
        %v1299 = vadd.f32 %v1152, %v1298
        %v1300 = vpop.f32.mrf.mxu0
        %v1301 = vadd.f32 %v1154, %v1300
        %1302 = vmatmul.bf16.gmra.mxu0 %v942
        %v1303 = vpop.f32.mrf.mxu0
        %v1304 = vadd.f32 %v1157, %v1303
        %v1305 = vpop.f32.mrf.mxu0
        %v1306 = vadd.f32 %v1159, %v1305
        %1307 = vmatmul.bf16.gmra.mxu0 %v943
        %v1308 = vpop.f32.mrf.mxu0
        %v1309 = vadd.f32 %v1162, %v1308
        %v1310 = vpop.f32.mrf.mxu0
        %v1311 = vadd.f32 %v1164, %v1310
        %1312 = vmatmul.bf16.gmra.mxu0 %v944
        %v1313 = vpop.f32.mrf.mxu0
        %v1314 = vadd.f32 %v1167, %v1313
        %v1315 = vpop.f32.mrf.mxu0
        %v1316 = vadd.f32 %v1169, %v1315
        %1317 = vmatmul.bf16.gmra.mxu0 %v945
        %v1318 = vpop.f32.mrf.mxu0
        %v1319 = vadd.f32 %v1172, %v1318
        %v1320 = vpop.f32.mrf.mxu0
        %v1321 = vadd.f32 %v1174, %v1320
        %1322 = vmatmul.bf16.gmra.mxu0 %v946
        %v1323 = vpop.f32.mrf.mxu0
        %v1324 = vadd.f32 %v1177, %v1323
        %v1325 = vpop.f32.mrf.mxu0
        %v1326 = vadd.f32 %v1179, %v1325
        %1327 = vdwg.mxu0
        %v1328 = vld [vmem:[#allocation3 + $0x2] sm:$0xff]
        %v1329 = vld [vmem:[#allocation3 + $0xa] sm:$0xff]
        %v1330 = vld [vmem:[#allocation3 + $0x12] sm:$0xff]
        %v1331 = vld [vmem:[#allocation3 + $0x1a] sm:$0xff]
        %v1332 = vld [vmem:[#allocation3 + $0x22] sm:$0xff]
        %v1333 = vld [vmem:[#allocation3 + $0x2a] sm:$0xff]
        %v1334 = vld [vmem:[#allocation3 + $0x32] sm:$0xff]
        %v1335 = vld [vmem:[#allocation3 + $0x3a] sm:$0xff]
        %v1336 = vld [vmem:[#allocation3 + $0x42] sm:$0xff]
        %v1337 = vld [vmem:[#allocation3 + $0x4a] sm:$0xff]
        %v1338 = vld [vmem:[#allocation3 + $0x52] sm:$0xff]
        %v1339 = vld [vmem:[#allocation3 + $0x5a] sm:$0xff]
        %v1340 = vld [vmem:[#allocation3 + $0x62] sm:$0xff]
        %v1341 = vld [vmem:[#allocation3 + $0x6a] sm:$0xff]
        %v1342 = vld [vmem:[#allocation3 + $0x72] sm:$0xff]
        %v1343 = vld [vmem:[#allocation3 + $0x7a] sm:$0xff]
        %v1344 = vld [vmem:[#allocation3 + $0x82] sm:$0xff]
        %v1345 = vld [vmem:[#allocation3 + $0x8a] sm:$0xff]
        %v1346 = vld [vmem:[#allocation3 + $0x92] sm:$0xff]
        %v1347 = vld [vmem:[#allocation3 + $0x9a] sm:$0xff]
        %v1348 = vld [vmem:[#allocation3 + $0xa2] sm:$0xff]
        %v1349 = vld [vmem:[#allocation3 + $0xaa] sm:$0xff]
        %v1350 = vld [vmem:[#allocation3 + $0xb2] sm:$0xff]
        %v1351 = vld [vmem:[#allocation3 + $0xba] sm:$0xff]
        %v1352 = vld [vmem:[#allocation3 + $0xc2] sm:$0xff]
        %v1353 = vld [vmem:[#allocation3 + $0xca] sm:$0xff]
        %v1354 = vld [vmem:[#allocation3 + $0xd2] sm:$0xff]
        %v1355 = vld [vmem:[#allocation3 + $0xda] sm:$0xff]
        %v1356 = vld [vmem:[#allocation3 + $0xe2] sm:$0xff]
        %v1357 = vld [vmem:[#allocation3 + $0xea] sm:$0xff]
        %v1358 = vld [vmem:[#allocation3 + $0xf2] sm:$0xff]
        %v1359 = vld [vmem:[#allocation3 + $0xfa] sm:$0xff]
        %v1360 = vld [vmem:[#allocation3 + $0x102] sm:$0xff]
        %v1361 = vld [vmem:[#allocation3 + $0x10a] sm:$0xff]
        %v1362 = vld [vmem:[#allocation3 + $0x112] sm:$0xff]
        %v1363 = vld [vmem:[#allocation3 + $0x11a] sm:$0x3f]
        %v1364 = vpack.c.bf16 %v1329, %v1328
        %v1365 = vpack.c.bf16 %v1331, %v1330
        %v1366 = vpack.c.bf16 %v1333, %v1332
        %v1367 = vpack.c.bf16 %v1335, %v1334
        %v1368 = vpack.c.bf16 %v1337, %v1336
        %v1369 = vpack.c.bf16 %v1339, %v1338
        %v1370 = vpack.c.bf16 %v1341, %v1340
        %v1371 = vpack.c.bf16 %v1343, %v1342
        %v1372 = vpack.c.bf16 %v1345, %v1344
        %v1373 = vpack.c.bf16 %v1347, %v1346
        %v1374 = vpack.c.bf16 %v1349, %v1348
        %v1375 = vpack.c.bf16 %v1351, %v1350
        %v1376 = vpack.c.bf16 %v1353, %v1352
        %v1377 = vpack.c.bf16 %v1355, %v1354
        %v1378 = vpack.c.bf16 %v1357, %v1356
        %v1379 = vpack.c.bf16 %v1359, %v1358
        %v1380 = vpack.c.bf16 %v1361, %v1360
        %v1381 = vpack.c.bf16 %v1363, %v1362
        %s1382 = scalar_lea.vmem %s252, 128 [#allocation4]
        %v1383 = vld [vmem:[%s1382] sm:$0xf]
        %v1384 = vld [vmem:[%s1382 + $0x4] sm:$0xf]
        %v1385 = vld [vmem:[%s1382 + $0x8] sm:$0xf]
        %v1386 = vld [vmem:[%s1382 + $0xc] sm:$0xf]
        %v1387 = vld [vmem:[%s1382 + $0x10] sm:$0xf]
        %v1388 = vld [vmem:[%s1382 + $0x14] sm:$0xf]
        %v1389 = vld [vmem:[%s1382 + $0x18] sm:$0xf]
        %v1390 = vld [vmem:[%s1382 + $0x1c] sm:$0xf]
        %v1391 = vld [vmem:[%s1382 + $0x20] sm:$0xf]
        %v1392 = vld [vmem:[%s1382 + $0x24] sm:$0xf]
        %v1393 = vld [vmem:[%s1382 + $0x28] sm:$0xf]
        %v1394 = vld [vmem:[%s1382 + $0x2c] sm:$0xf]
        %v1395 = vld [vmem:[%s1382 + $0x30] sm:$0xf]
        %v1396 = vld [vmem:[%s1382 + $0x34] sm:$0xf]
        %v1397 = vld [vmem:[%s1382 + $0x38] sm:$0xf]
        %v1398 = vld [vmem:[%s1382 + $0x3c] sm:$0xf]
        %v1415 = vunpack.c.l.b16 %v1383
        %v1416 = vunpack.c.l.b16 %v1384
        %v1417 = vunpack.c.l.b16 %v1385
        %v1418 = vunpack.c.l.b16 %v1386
        %v1419 = vunpack.c.l.b16 %v1387
        %v1420 = vunpack.c.l.b16 %v1388
        %v1421 = vunpack.c.l.b16 %v1389
        %v1422 = vunpack.c.l.b16 %v1390
        %v1423 = vunpack.c.l.b16 %v1391
        %v1424 = vunpack.c.l.b16 %v1392
        %v1425 = vunpack.c.l.b16 %v1393
        %v1426 = vunpack.c.l.b16 %v1394
        %v1427 = vunpack.c.l.b16 %v1395
        %v1428 = vunpack.c.l.b16 %v1396
        %v1429 = vunpack.c.l.b16 %v1397
        %v1430 = vunpack.c.l.b16 %v1398
        %v1431 = vpack.c.b16 %v1416, %v1415
        %v1432 = vpack.c.b16 %v1418, %v1417
        %v1433 = vpack.c.b16 %v1420, %v1419
        %v1434 = vpack.c.b16 %v1422, %v1421
        %v1435 = vpack.c.b16 %v1424, %v1423
        %v1436 = vpack.c.b16 %v1426, %v1425
        %v1437 = vpack.c.b16 %v1428, %v1427
        %v1438 = vpack.c.b16 %v1430, %v1429
        %1447 = vmatpush.bf16.msra.mxu0 %v1438
        %1448 = vmatpush.bf16.msra.mxu0 %v1437
        %1449 = vmatpush.bf16.msra.mxu0 %v1436
        %1450 = vmatpush.bf16.msra.mxu0 %v1435
        %1451 = vmatpush.bf16.msra.mxu0 %v1434
        %1452 = vmatpush.bf16.msra.mxu0 %v1433
        %1453 = vmatpush.bf16.msra.mxu0 %v1432
        %1454 = vmatpush.bf16.msra.mxu0 %v1431
        %1455 = vmatmul.bf16.gmra.mxu0 %v1364
        %v1456 = vpop.f32.mrf.mxu0
        %v1457 = vadd.f32 0.0, %v1456
        %v1458 = vpop.f32.mrf.mxu0
        %v1459 = vadd.f32 0.0, %v1458
        %1460 = vmatmul.bf16.gmra.mxu0 %v1365
        %v1461 = vpop.f32.mrf.mxu0
        %v1462 = vadd.f32 0.0, %v1461
        %v1463 = vpop.f32.mrf.mxu0
        %v1464 = vadd.f32 0.0, %v1463
        %1465 = vmatmul.bf16.gmra.mxu0 %v1366
        %v1466 = vpop.f32.mrf.mxu0
        %v1467 = vadd.f32 0.0, %v1466
        %v1468 = vpop.f32.mrf.mxu0
        %v1469 = vadd.f32 0.0, %v1468
        %1470 = vmatmul.bf16.gmra.mxu0 %v1367
        %v1471 = vpop.f32.mrf.mxu0
        %v1472 = vadd.f32 0.0, %v1471
        %v1473 = vpop.f32.mrf.mxu0
        %v1474 = vadd.f32 0.0, %v1473
        %1475 = vmatmul.bf16.gmra.mxu0 %v1368
        %v1476 = vpop.f32.mrf.mxu0
        %v1477 = vadd.f32 0.0, %v1476
        %v1478 = vpop.f32.mrf.mxu0
        %v1479 = vadd.f32 0.0, %v1478
        %1480 = vmatmul.bf16.gmra.mxu0 %v1369
        %v1481 = vpop.f32.mrf.mxu0
        %v1482 = vadd.f32 0.0, %v1481
        %v1483 = vpop.f32.mrf.mxu0
        %v1484 = vadd.f32 0.0, %v1483
        %1485 = vmatmul.bf16.gmra.mxu0 %v1370
        %v1486 = vpop.f32.mrf.mxu0
        %v1487 = vadd.f32 0.0, %v1486
        %v1488 = vpop.f32.mrf.mxu0
        %v1489 = vadd.f32 0.0, %v1488
        %1490 = vmatmul.bf16.gmra.mxu0 %v1371
        %v1491 = vpop.f32.mrf.mxu0
        %v1492 = vadd.f32 0.0, %v1491
        %v1493 = vpop.f32.mrf.mxu0
        %v1494 = vadd.f32 0.0, %v1493
        %1495 = vmatmul.bf16.gmra.mxu0 %v1372
        %v1496 = vpop.f32.mrf.mxu0
        %v1497 = vadd.f32 0.0, %v1496
        %v1498 = vpop.f32.mrf.mxu0
        %v1499 = vadd.f32 0.0, %v1498
        %1500 = vmatmul.bf16.gmra.mxu0 %v1373
        %v1501 = vpop.f32.mrf.mxu0
        %v1502 = vadd.f32 0.0, %v1501
        %v1503 = vpop.f32.mrf.mxu0
        %v1504 = vadd.f32 0.0, %v1503
        %1505 = vmatmul.bf16.gmra.mxu0 %v1374
        %v1506 = vpop.f32.mrf.mxu0
        %v1507 = vadd.f32 0.0, %v1506
        %v1508 = vpop.f32.mrf.mxu0
        %v1509 = vadd.f32 0.0, %v1508
        %1510 = vmatmul.bf16.gmra.mxu0 %v1375
        %v1511 = vpop.f32.mrf.mxu0
        %v1512 = vadd.f32 0.0, %v1511
        %v1513 = vpop.f32.mrf.mxu0
        %v1514 = vadd.f32 0.0, %v1513
        %1515 = vmatmul.bf16.gmra.mxu0 %v1376
        %v1516 = vpop.f32.mrf.mxu0
        %v1517 = vadd.f32 0.0, %v1516
        %v1518 = vpop.f32.mrf.mxu0
        %v1519 = vadd.f32 0.0, %v1518
        %1520 = vmatmul.bf16.gmra.mxu0 %v1377
        %v1521 = vpop.f32.mrf.mxu0
        %v1522 = vadd.f32 0.0, %v1521
        %v1523 = vpop.f32.mrf.mxu0
        %v1524 = vadd.f32 0.0, %v1523
        %1525 = vmatmul.bf16.gmra.mxu0 %v1378
        %v1526 = vpop.f32.mrf.mxu0
        %v1527 = vadd.f32 0.0, %v1526
        %v1528 = vpop.f32.mrf.mxu0
        %v1529 = vadd.f32 0.0, %v1528
        %1530 = vmatmul.bf16.gmra.mxu0 %v1379
        %v1531 = vpop.f32.mrf.mxu0
        %v1532 = vadd.f32 0.0, %v1531
        %v1533 = vpop.f32.mrf.mxu0
        %v1534 = vadd.f32 0.0, %v1533
        %1535 = vmatmul.bf16.gmra.mxu0 %v1380
        %v1536 = vpop.f32.mrf.mxu0
        %v1537 = vadd.f32 0.0, %v1536
        %v1538 = vpop.f32.mrf.mxu0
        %v1539 = vadd.f32 0.0, %v1538
        %1540 = vmatmul.bf16.gmra.mxu0 %v1381
        %v1541 = vpop.f32.mrf.mxu0
        %v1542 = vadd.f32 0.0, %v1541
        %v1543 = vpop.f32.mrf.mxu0
        %v1544 = vadd.f32 0.0, %v1543
        %1545 = vdwg.mxu0
        %v1546 = vadd.f32 %v1239, %v1457
        %v1547 = vadd.f32 %v1241, %v1459
        %v1548 = vadd.f32 %v1244, %v1462
        %v1549 = vadd.f32 %v1246, %v1464
        %v1550 = vadd.f32 %v1249, %v1467
        %v1551 = vadd.f32 %v1251, %v1469
        %v1552 = vadd.f32 %v1254, %v1472
        %v1553 = vadd.f32 %v1256, %v1474
        %v1554 = vadd.f32 %v1259, %v1477
        %v1555 = vadd.f32 %v1261, %v1479
        %v1556 = vadd.f32 %v1264, %v1482
        %v1557 = vadd.f32 %v1266, %v1484
        %v1558 = vadd.f32 %v1269, %v1487
        %v1559 = vadd.f32 %v1271, %v1489
        %v1560 = vadd.f32 %v1274, %v1492
        %v1561 = vadd.f32 %v1276, %v1494
        %v1562 = vadd.f32 %v1279, %v1497
        %v1563 = vadd.f32 %v1281, %v1499
        %v1564 = vadd.f32 %v1284, %v1502
        %v1565 = vadd.f32 %v1286, %v1504
        %v1566 = vadd.f32 %v1289, %v1507
        %v1567 = vadd.f32 %v1291, %v1509
        %v1568 = vadd.f32 %v1294, %v1512
        %v1569 = vadd.f32 %v1296, %v1514
        %v1570 = vadd.f32 %v1299, %v1517
        %v1571 = vadd.f32 %v1301, %v1519
        %v1572 = vadd.f32 %v1304, %v1522
        %v1573 = vadd.f32 %v1306, %v1524
        %v1574 = vadd.f32 %v1309, %v1527
        %v1575 = vadd.f32 %v1311, %v1529
        %v1576 = vadd.f32 %v1314, %v1532
        %v1577 = vadd.f32 %v1316, %v1534
        %v1578 = vadd.f32 %v1319, %v1537
        %v1579 = vadd.f32 %v1321, %v1539
        %v1580 = vadd.f32 %v1324, %v1542
        %v1581 = vadd.f32 %v1326, %v1544
        %v1582 = vld [vmem:[#allocation3 + $0x12] sm:$0xff]
        %v1583 = vld [vmem:[#allocation3 + $0x1a] sm:$0xff]
        %v1584 = vld [vmem:[#allocation3 + $0x22] sm:$0xff]
        %v1585 = vld [vmem:[#allocation3 + $0x2a] sm:$0xff]
        %v1586 = vld [vmem:[#allocation3 + $0x32] sm:$0xff]
        %v1587 = vld [vmem:[#allocation3 + $0x3a] sm:$0xff]
        %v1588 = vld [vmem:[#allocation3 + $0x42] sm:$0xff]
        %v1589 = vld [vmem:[#allocation3 + $0x4a] sm:$0xff]
        %v1590 = vld [vmem:[#allocation3 + $0x52] sm:$0xff]
        %v1591 = vld [vmem:[#allocation3 + $0x5a] sm:$0xff]
        %v1592 = vld [vmem:[#allocation3 + $0x62] sm:$0xff]
        %v1593 = vld [vmem:[#allocation3 + $0x6a] sm:$0xff]
        %v1594 = vld [vmem:[#allocation3 + $0x72] sm:$0xff]
        %v1595 = vld [vmem:[#allocation3 + $0x7a] sm:$0xff]
        %v1596 = vld [vmem:[#allocation3 + $0x82] sm:$0xff]
        %v1597 = vld [vmem:[#allocation3 + $0x8a] sm:$0xff]
        %v1598 = vld [vmem:[#allocation3 + $0x92] sm:$0xff]
        %v1599 = vld [vmem:[#allocation3 + $0x9a] sm:$0xff]
        %v1600 = vld [vmem:[#allocation3 + $0xa2] sm:$0xff]
        %v1601 = vld [vmem:[#allocation3 + $0xaa] sm:$0xff]
        %v1602 = vld [vmem:[#allocation3 + $0xb2] sm:$0xff]
        %v1603 = vld [vmem:[#allocation3 + $0xba] sm:$0xff]
        %v1604 = vld [vmem:[#allocation3 + $0xc2] sm:$0xff]
        %v1605 = vld [vmem:[#allocation3 + $0xca] sm:$0xff]
        %v1606 = vld [vmem:[#allocation3 + $0xd2] sm:$0xff]
        %v1607 = vld [vmem:[#allocation3 + $0xda] sm:$0xff]
        %v1608 = vld [vmem:[#allocation3 + $0xe2] sm:$0xff]
        %v1609 = vld [vmem:[#allocation3 + $0xea] sm:$0xff]
        %v1610 = vld [vmem:[#allocation3 + $0xf2] sm:$0xff]
        %v1611 = vld [vmem:[#allocation3 + $0xfa] sm:$0xff]
        %v1612 = vld [vmem:[#allocation3 + $0x102] sm:$0xff]
        %v1613 = vld [vmem:[#allocation3 + $0x10a] sm:$0xff]
        %v1614 = vld [vmem:[#allocation3 + $0x112] sm:$0xff]
        %v1615 = vld [vmem:[#allocation3 + $0x11a] sm:$0xff]
        %v1616 = vld [vmem:[#allocation3 + $0x122] sm:$0xff]
        %v1617 = vld [vmem:[#allocation3 + $0x12a] sm:$0x3f]
        %v1618 = vpack.c.bf16 %v1583, %v1582
        %v1619 = vpack.c.bf16 %v1585, %v1584
        %v1620 = vpack.c.bf16 %v1587, %v1586
        %v1621 = vpack.c.bf16 %v1589, %v1588
        %v1622 = vpack.c.bf16 %v1591, %v1590
        %v1623 = vpack.c.bf16 %v1593, %v1592
        %v1624 = vpack.c.bf16 %v1595, %v1594
        %v1625 = vpack.c.bf16 %v1597, %v1596
        %v1626 = vpack.c.bf16 %v1599, %v1598
        %v1627 = vpack.c.bf16 %v1601, %v1600
        %v1628 = vpack.c.bf16 %v1603, %v1602
        %v1629 = vpack.c.bf16 %v1605, %v1604
        %v1630 = vpack.c.bf16 %v1607, %v1606
        %v1631 = vpack.c.bf16 %v1609, %v1608
        %v1632 = vpack.c.bf16 %v1611, %v1610
        %v1633 = vpack.c.bf16 %v1613, %v1612
        %v1634 = vpack.c.bf16 %v1615, %v1614
        %v1635 = vpack.c.bf16 %v1617, %v1616
        %s1636 = scalar_lea.vmem %s252, 192 [#allocation4]
        %v1637 = vld [vmem:[%s1636] sm:$0xf]
        %v1638 = vld [vmem:[%s1636 + $0x4] sm:$0xf]
        %v1639 = vld [vmem:[%s1636 + $0x8] sm:$0xf]
        %v1640 = vld [vmem:[%s1636 + $0xc] sm:$0xf]
        %v1641 = vld [vmem:[%s1636 + $0x10] sm:$0xf]
        %v1642 = vld [vmem:[%s1636 + $0x14] sm:$0xf]
        %v1643 = vld [vmem:[%s1636 + $0x18] sm:$0xf]
        %v1644 = vld [vmem:[%s1636 + $0x1c] sm:$0xf]
        %v1645 = vld [vmem:[%s1636 + $0x20] sm:$0xf]
        %v1646 = vld [vmem:[%s1636 + $0x24] sm:$0xf]
        %v1647 = vld [vmem:[%s1636 + $0x28] sm:$0xf]
        %v1648 = vld [vmem:[%s1636 + $0x2c] sm:$0xf]
        %v1649 = vld [vmem:[%s1636 + $0x30] sm:$0xf]
        %v1650 = vld [vmem:[%s1636 + $0x34] sm:$0xf]
        %v1651 = vld [vmem:[%s1636 + $0x38] sm:$0xf]
        %v1652 = vld [vmem:[%s1636 + $0x3c] sm:$0xf]
        %v1669 = vunpack.c.l.b16 %v1637
        %v1670 = vunpack.c.l.b16 %v1638
        %v1671 = vunpack.c.l.b16 %v1639
        %v1672 = vunpack.c.l.b16 %v1640
        %v1673 = vunpack.c.l.b16 %v1641
        %v1674 = vunpack.c.l.b16 %v1642
        %v1675 = vunpack.c.l.b16 %v1643
        %v1676 = vunpack.c.l.b16 %v1644
        %v1677 = vunpack.c.l.b16 %v1645
        %v1678 = vunpack.c.l.b16 %v1646
        %v1679 = vunpack.c.l.b16 %v1647
        %v1680 = vunpack.c.l.b16 %v1648
        %v1681 = vunpack.c.l.b16 %v1649
        %v1682 = vunpack.c.l.b16 %v1650
        %v1683 = vunpack.c.l.b16 %v1651
        %v1684 = vunpack.c.l.b16 %v1652
        %v1685 = vpack.c.b16 %v1670, %v1669
        %v1686 = vpack.c.b16 %v1672, %v1671
        %v1687 = vpack.c.b16 %v1674, %v1673
        %v1688 = vpack.c.b16 %v1676, %v1675
        %v1689 = vpack.c.b16 %v1678, %v1677
        %v1690 = vpack.c.b16 %v1680, %v1679
        %v1691 = vpack.c.b16 %v1682, %v1681
        %v1692 = vpack.c.b16 %v1684, %v1683
        %1701 = vmatpush.bf16.msra.mxu0 %v1692
        %1702 = vmatpush.bf16.msra.mxu0 %v1691
        %1703 = vmatpush.bf16.msra.mxu0 %v1690
        %1704 = vmatpush.bf16.msra.mxu0 %v1689
        %1705 = vmatpush.bf16.msra.mxu0 %v1688
        %1706 = vmatpush.bf16.msra.mxu0 %v1687
        %1707 = vmatpush.bf16.msra.mxu0 %v1686
        %1708 = vmatpush.bf16.msra.mxu0 %v1685
        %1709 = vmatmul.bf16.gmra.mxu0 %v1618
        %v1710 = vpop.f32.mrf.mxu0
        %v1711 = vadd.f32 0.0, %v1710
        %v1712 = vpop.f32.mrf.mxu0
        %v1713 = vadd.f32 0.0, %v1712
        %1714 = vmatmul.bf16.gmra.mxu0 %v1619
        %v1715 = vpop.f32.mrf.mxu0
        %v1716 = vadd.f32 0.0, %v1715
        %v1717 = vpop.f32.mrf.mxu0
        %v1718 = vadd.f32 0.0, %v1717
        %1719 = vmatmul.bf16.gmra.mxu0 %v1620
        %v1720 = vpop.f32.mrf.mxu0
        %v1721 = vadd.f32 0.0, %v1720
        %v1722 = vpop.f32.mrf.mxu0
        %v1723 = vadd.f32 0.0, %v1722
        %1724 = vmatmul.bf16.gmra.mxu0 %v1621
        %v1725 = vpop.f32.mrf.mxu0
        %v1726 = vadd.f32 0.0, %v1725
        %v1727 = vpop.f32.mrf.mxu0
        %v1728 = vadd.f32 0.0, %v1727
        %1729 = vmatmul.bf16.gmra.mxu0 %v1622
        %v1730 = vpop.f32.mrf.mxu0
        %v1731 = vadd.f32 0.0, %v1730
        %v1732 = vpop.f32.mrf.mxu0
        %v1733 = vadd.f32 0.0, %v1732
        %1734 = vmatmul.bf16.gmra.mxu0 %v1623
        %v1735 = vpop.f32.mrf.mxu0
        %v1736 = vadd.f32 0.0, %v1735
        %v1737 = vpop.f32.mrf.mxu0
        %v1738 = vadd.f32 0.0, %v1737
        %1739 = vmatmul.bf16.gmra.mxu0 %v1624
        %v1740 = vpop.f32.mrf.mxu0
        %v1741 = vadd.f32 0.0, %v1740
        %v1742 = vpop.f32.mrf.mxu0
        %v1743 = vadd.f32 0.0, %v1742
        %1744 = vmatmul.bf16.gmra.mxu0 %v1625
        %v1745 = vpop.f32.mrf.mxu0
        %v1746 = vadd.f32 0.0, %v1745
        %v1747 = vpop.f32.mrf.mxu0
        %v1748 = vadd.f32 0.0, %v1747
        %1749 = vmatmul.bf16.gmra.mxu0 %v1626
        %v1750 = vpop.f32.mrf.mxu0
        %v1751 = vadd.f32 0.0, %v1750
        %v1752 = vpop.f32.mrf.mxu0
        %v1753 = vadd.f32 0.0, %v1752
        %1754 = vmatmul.bf16.gmra.mxu0 %v1627
        %v1755 = vpop.f32.mrf.mxu0
        %v1756 = vadd.f32 0.0, %v1755
        %v1757 = vpop.f32.mrf.mxu0
        %v1758 = vadd.f32 0.0, %v1757
        %1759 = vmatmul.bf16.gmra.mxu0 %v1628
        %v1760 = vpop.f32.mrf.mxu0
        %v1761 = vadd.f32 0.0, %v1760
        %v1762 = vpop.f32.mrf.mxu0
        %v1763 = vadd.f32 0.0, %v1762
        %1764 = vmatmul.bf16.gmra.mxu0 %v1629
        %v1765 = vpop.f32.mrf.mxu0
        %v1766 = vadd.f32 0.0, %v1765
        %v1767 = vpop.f32.mrf.mxu0
        %v1768 = vadd.f32 0.0, %v1767
        %1769 = vmatmul.bf16.gmra.mxu0 %v1630
        %v1770 = vpop.f32.mrf.mxu0
        %v1771 = vadd.f32 0.0, %v1770
        %v1772 = vpop.f32.mrf.mxu0
        %v1773 = vadd.f32 0.0, %v1772
        %1774 = vmatmul.bf16.gmra.mxu0 %v1631
        %v1775 = vpop.f32.mrf.mxu0
        %v1776 = vadd.f32 0.0, %v1775
        %v1777 = vpop.f32.mrf.mxu0
        %v1778 = vadd.f32 0.0, %v1777
        %1779 = vmatmul.bf16.gmra.mxu0 %v1632
        %v1780 = vpop.f32.mrf.mxu0
        %v1781 = vadd.f32 0.0, %v1780
        %v1782 = vpop.f32.mrf.mxu0
        %v1783 = vadd.f32 0.0, %v1782
        %1784 = vmatmul.bf16.gmra.mxu0 %v1633
        %v1785 = vpop.f32.mrf.mxu0
        %v1786 = vadd.f32 0.0, %v1785
        %v1787 = vpop.f32.mrf.mxu0
        %v1788 = vadd.f32 0.0, %v1787
        %1789 = vmatmul.bf16.gmra.mxu0 %v1634
        %v1790 = vpop.f32.mrf.mxu0
        %v1791 = vadd.f32 0.0, %v1790
        %v1792 = vpop.f32.mrf.mxu0
        %v1793 = vadd.f32 0.0, %v1792
        %1794 = vmatmul.bf16.gmra.mxu0 %v1635
        %v1795 = vpop.f32.mrf.mxu0
        %v1796 = vadd.f32 0.0, %v1795
        %v1797 = vpop.f32.mrf.mxu0
        %v1798 = vadd.f32 0.0, %v1797
        %1799 = vdwg.mxu0
        %v1800 = vadd.f32 %v1546, %v1711
        %v1801 = vadd.f32 %v1547, %v1713
        %v1802 = vadd.f32 %v1548, %v1716
        %v1803 = vadd.f32 %v1549, %v1718
        %v1804 = vadd.f32 %v1550, %v1721
        %v1805 = vadd.f32 %v1551, %v1723
        %v1806 = vadd.f32 %v1552, %v1726
        %v1807 = vadd.f32 %v1553, %v1728
        %v1808 = vadd.f32 %v1554, %v1731
        %v1809 = vadd.f32 %v1555, %v1733
        %v1810 = vadd.f32 %v1556, %v1736
        %v1811 = vadd.f32 %v1557, %v1738
        %v1812 = vadd.f32 %v1558, %v1741
        %v1813 = vadd.f32 %v1559, %v1743
        %v1814 = vadd.f32 %v1560, %v1746
        %v1815 = vadd.f32 %v1561, %v1748
        %v1816 = vadd.f32 %v1562, %v1751
        %v1817 = vadd.f32 %v1563, %v1753
        %v1818 = vadd.f32 %v1564, %v1756
        %v1819 = vadd.f32 %v1565, %v1758
        %v1820 = vadd.f32 %v1566, %v1761
        %v1821 = vadd.f32 %v1567, %v1763
        %v1822 = vadd.f32 %v1568, %v1766
        %v1823 = vadd.f32 %v1569, %v1768
        %v1824 = vadd.f32 %v1570, %v1771
        %v1825 = vadd.f32 %v1571, %v1773
        %v1826 = vadd.f32 %v1572, %v1776
        %v1827 = vadd.f32 %v1573, %v1778
        %v1828 = vadd.f32 %v1574, %v1781
        %v1829 = vadd.f32 %v1575, %v1783
        %v1830 = vadd.f32 %v1576, %v1786
        %v1831 = vadd.f32 %v1577, %v1788
        %v1832 = vadd.f32 %v1578, %v1791
        %v1833 = vadd.f32 %v1579, %v1793
        %v1834 = vadd.f32 %v1580, %v1796
        %v1835 = vadd.f32 %v1581, %v1798
        %v1836 = vld [vmem:[#allocation3 + $0x13] sm:$0xff]
        %v1837 = vld [vmem:[#allocation3 + $0x1b] sm:$0xff]
        %v1838 = vld [vmem:[#allocation3 + $0x23] sm:$0xff]
        %v1839 = vld [vmem:[#allocation3 + $0x2b] sm:$0xff]
        %v1840 = vld [vmem:[#allocation3 + $0x33] sm:$0xff]
        %v1841 = vld [vmem:[#allocation3 + $0x3b] sm:$0xff]
        %v1842 = vld [vmem:[#allocation3 + $0x43] sm:$0xff]
        %v1843 = vld [vmem:[#allocation3 + $0x4b] sm:$0xff]
        %v1844 = vld [vmem:[#allocation3 + $0x53] sm:$0xff]
        %v1845 = vld [vmem:[#allocation3 + $0x5b] sm:$0xff]
        %v1846 = vld [vmem:[#allocation3 + $0x63] sm:$0xff]
        %v1847 = vld [vmem:[#allocation3 + $0x6b] sm:$0xff]
        %v1848 = vld [vmem:[#allocation3 + $0x73] sm:$0xff]
        %v1849 = vld [vmem:[#allocation3 + $0x7b] sm:$0xff]
        %v1850 = vld [vmem:[#allocation3 + $0x83] sm:$0xff]
        %v1851 = vld [vmem:[#allocation3 + $0x8b] sm:$0xff]
        %v1852 = vld [vmem:[#allocation3 + $0x93] sm:$0xff]
        %v1853 = vld [vmem:[#allocation3 + $0x9b] sm:$0xff]
        %v1854 = vld [vmem:[#allocation3 + $0xa3] sm:$0xff]
        %v1855 = vld [vmem:[#allocation3 + $0xab] sm:$0xff]
        %v1856 = vld [vmem:[#allocation3 + $0xb3] sm:$0xff]
        %v1857 = vld [vmem:[#allocation3 + $0xbb] sm:$0xff]
        %v1858 = vld [vmem:[#allocation3 + $0xc3] sm:$0xff]
        %v1859 = vld [vmem:[#allocation3 + $0xcb] sm:$0xff]
        %v1860 = vld [vmem:[#allocation3 + $0xd3] sm:$0xff]
        %v1861 = vld [vmem:[#allocation3 + $0xdb] sm:$0xff]
        %v1862 = vld [vmem:[#allocation3 + $0xe3] sm:$0xff]
        %v1863 = vld [vmem:[#allocation3 + $0xeb] sm:$0xff]
        %v1864 = vld [vmem:[#allocation3 + $0xf3] sm:$0xff]
        %v1865 = vld [vmem:[#allocation3 + $0xfb] sm:$0xff]
        %v1866 = vld [vmem:[#allocation3 + $0x103] sm:$0xff]
        %v1867 = vld [vmem:[#allocation3 + $0x10b] sm:$0xff]
        %v1868 = vld [vmem:[#allocation3 + $0x113] sm:$0xff]
        %v1869 = vld [vmem:[#allocation3 + $0x11b] sm:$0xff]
        %v1870 = vld [vmem:[#allocation3 + $0x123] sm:$0xff]
        %v1871 = vld [vmem:[#allocation3 + $0x12b] sm:$0x3f]
        %v1872 = vpack.c.bf16 %v1837, %v1836
        %v1873 = vpack.c.bf16 %v1839, %v1838
        %v1874 = vpack.c.bf16 %v1841, %v1840
        %v1875 = vpack.c.bf16 %v1843, %v1842
        %v1876 = vpack.c.bf16 %v1845, %v1844
        %v1877 = vpack.c.bf16 %v1847, %v1846
        %v1878 = vpack.c.bf16 %v1849, %v1848
        %v1879 = vpack.c.bf16 %v1851, %v1850
        %v1880 = vpack.c.bf16 %v1853, %v1852
        %v1881 = vpack.c.bf16 %v1855, %v1854
        %v1882 = vpack.c.bf16 %v1857, %v1856
        %v1883 = vpack.c.bf16 %v1859, %v1858
        %v1884 = vpack.c.bf16 %v1861, %v1860
        %v1885 = vpack.c.bf16 %v1863, %v1862
        %v1886 = vpack.c.bf16 %v1865, %v1864
        %v1887 = vpack.c.bf16 %v1867, %v1866
        %v1888 = vpack.c.bf16 %v1869, %v1868
        %v1889 = vpack.c.bf16 %v1871, %v1870
        %s1890 = scalar_lea.vmem %s252, 256 [#allocation4]
        %v1891 = vld [vmem:[%s1890] sm:$0xf]
        %v1892 = vld [vmem:[%s1890 + $0x4] sm:$0xf]
        %v1893 = vld [vmem:[%s1890 + $0x8] sm:$0xf]
        %v1894 = vld [vmem:[%s1890 + $0xc] sm:$0xf]
        %v1895 = vld [vmem:[%s1890 + $0x10] sm:$0xf]
        %v1896 = vld [vmem:[%s1890 + $0x14] sm:$0xf]
        %v1897 = vld [vmem:[%s1890 + $0x18] sm:$0xf]
        %v1898 = vld [vmem:[%s1890 + $0x1c] sm:$0xf]
        %v1899 = vld [vmem:[%s1890 + $0x20] sm:$0xf]
        %v1900 = vld [vmem:[%s1890 + $0x24] sm:$0xf]
        %v1901 = vld [vmem:[%s1890 + $0x28] sm:$0xf]
        %v1902 = vld [vmem:[%s1890 + $0x2c] sm:$0xf]
        %v1903 = vld [vmem:[%s1890 + $0x30] sm:$0xf]
        %v1904 = vld [vmem:[%s1890 + $0x34] sm:$0xf]
        %v1905 = vld [vmem:[%s1890 + $0x38] sm:$0xf]
        %v1906 = vld [vmem:[%s1890 + $0x3c] sm:$0xf]
        %v1923 = vunpack.c.l.b16 %v1891
        %v1924 = vunpack.c.l.b16 %v1892
        %v1925 = vunpack.c.l.b16 %v1893
        %v1926 = vunpack.c.l.b16 %v1894
        %v1927 = vunpack.c.l.b16 %v1895
        %v1928 = vunpack.c.l.b16 %v1896
        %v1929 = vunpack.c.l.b16 %v1897
        %v1930 = vunpack.c.l.b16 %v1898
        %v1931 = vunpack.c.l.b16 %v1899
        %v1932 = vunpack.c.l.b16 %v1900
        %v1933 = vunpack.c.l.b16 %v1901
        %v1934 = vunpack.c.l.b16 %v1902
        %v1935 = vunpack.c.l.b16 %v1903
        %v1936 = vunpack.c.l.b16 %v1904
        %v1937 = vunpack.c.l.b16 %v1905
        %v1938 = vunpack.c.l.b16 %v1906
        %v1939 = vpack.c.b16 %v1924, %v1923
        %v1940 = vpack.c.b16 %v1926, %v1925
        %v1941 = vpack.c.b16 %v1928, %v1927
        %v1942 = vpack.c.b16 %v1930, %v1929
        %v1943 = vpack.c.b16 %v1932, %v1931
        %v1944 = vpack.c.b16 %v1934, %v1933
        %v1945 = vpack.c.b16 %v1936, %v1935
        %v1946 = vpack.c.b16 %v1938, %v1937
        %1955 = vmatpush.bf16.msra.mxu0 %v1946
        %1956 = vmatpush.bf16.msra.mxu0 %v1945
        %1957 = vmatpush.bf16.msra.mxu0 %v1944
        %1958 = vmatpush.bf16.msra.mxu0 %v1943
        %1959 = vmatpush.bf16.msra.mxu0 %v1942
        %1960 = vmatpush.bf16.msra.mxu0 %v1941
        %1961 = vmatpush.bf16.msra.mxu0 %v1940
        %1962 = vmatpush.bf16.msra.mxu0 %v1939
        %1963 = vmatmul.bf16.gmra.mxu0 %v1872
        %v1964 = vpop.f32.mrf.mxu0
        %v1965 = vadd.f32 0.0, %v1964
        %v1966 = vpop.f32.mrf.mxu0
        %v1967 = vadd.f32 0.0, %v1966
        %1968 = vmatmul.bf16.gmra.mxu0 %v1873
        %v1969 = vpop.f32.mrf.mxu0
        %v1970 = vadd.f32 0.0, %v1969
        %v1971 = vpop.f32.mrf.mxu0
        %v1972 = vadd.f32 0.0, %v1971
        %1973 = vmatmul.bf16.gmra.mxu0 %v1874
        %v1974 = vpop.f32.mrf.mxu0
        %v1975 = vadd.f32 0.0, %v1974
        %v1976 = vpop.f32.mrf.mxu0
        %v1977 = vadd.f32 0.0, %v1976
        %1978 = vmatmul.bf16.gmra.mxu0 %v1875
        %v1979 = vpop.f32.mrf.mxu0
        %v1980 = vadd.f32 0.0, %v1979
        %v1981 = vpop.f32.mrf.mxu0
        %v1982 = vadd.f32 0.0, %v1981
        %1983 = vmatmul.bf16.gmra.mxu0 %v1876
        %v1984 = vpop.f32.mrf.mxu0
        %v1985 = vadd.f32 0.0, %v1984
        %v1986 = vpop.f32.mrf.mxu0
        %v1987 = vadd.f32 0.0, %v1986
        %1988 = vmatmul.bf16.gmra.mxu0 %v1877
        %v1989 = vpop.f32.mrf.mxu0
        %v1990 = vadd.f32 0.0, %v1989
        %v1991 = vpop.f32.mrf.mxu0
        %v1992 = vadd.f32 0.0, %v1991
        %1993 = vmatmul.bf16.gmra.mxu0 %v1878
        %v1994 = vpop.f32.mrf.mxu0
        %v1995 = vadd.f32 0.0, %v1994
        %v1996 = vpop.f32.mrf.mxu0
        %v1997 = vadd.f32 0.0, %v1996
        %1998 = vmatmul.bf16.gmra.mxu0 %v1879
        %v1999 = vpop.f32.mrf.mxu0
        %v2000 = vadd.f32 0.0, %v1999
        %v2001 = vpop.f32.mrf.mxu0
        %v2002 = vadd.f32 0.0, %v2001
        %2003 = vmatmul.bf16.gmra.mxu0 %v1880
        %v2004 = vpop.f32.mrf.mxu0
        %v2005 = vadd.f32 0.0, %v2004
        %v2006 = vpop.f32.mrf.mxu0
        %v2007 = vadd.f32 0.0, %v2006
        %2008 = vmatmul.bf16.gmra.mxu0 %v1881
        %v2009 = vpop.f32.mrf.mxu0
        %v2010 = vadd.f32 0.0, %v2009
        %v2011 = vpop.f32.mrf.mxu0
        %v2012 = vadd.f32 0.0, %v2011
        %2013 = vmatmul.bf16.gmra.mxu0 %v1882
        %v2014 = vpop.f32.mrf.mxu0
        %v2015 = vadd.f32 0.0, %v2014
        %v2016 = vpop.f32.mrf.mxu0
        %v2017 = vadd.f32 0.0, %v2016
        %2018 = vmatmul.bf16.gmra.mxu0 %v1883
        %v2019 = vpop.f32.mrf.mxu0
        %v2020 = vadd.f32 0.0, %v2019
        %v2021 = vpop.f32.mrf.mxu0
        %v2022 = vadd.f32 0.0, %v2021
        %2023 = vmatmul.bf16.gmra.mxu0 %v1884
        %v2024 = vpop.f32.mrf.mxu0
        %v2025 = vadd.f32 0.0, %v2024
        %v2026 = vpop.f32.mrf.mxu0
        %v2027 = vadd.f32 0.0, %v2026
        %2028 = vmatmul.bf16.gmra.mxu0 %v1885
        %v2029 = vpop.f32.mrf.mxu0
        %v2030 = vadd.f32 0.0, %v2029
        %v2031 = vpop.f32.mrf.mxu0
        %v2032 = vadd.f32 0.0, %v2031
        %2033 = vmatmul.bf16.gmra.mxu0 %v1886
        %v2034 = vpop.f32.mrf.mxu0
        %v2035 = vadd.f32 0.0, %v2034
        %v2036 = vpop.f32.mrf.mxu0
        %v2037 = vadd.f32 0.0, %v2036
        %2038 = vmatmul.bf16.gmra.mxu0 %v1887
        %v2039 = vpop.f32.mrf.mxu0
        %v2040 = vadd.f32 0.0, %v2039
        %v2041 = vpop.f32.mrf.mxu0
        %v2042 = vadd.f32 0.0, %v2041
        %2043 = vmatmul.bf16.gmra.mxu0 %v1888
        %v2044 = vpop.f32.mrf.mxu0
        %v2045 = vadd.f32 0.0, %v2044
        %v2046 = vpop.f32.mrf.mxu0
        %v2047 = vadd.f32 0.0, %v2046
        %2048 = vmatmul.bf16.gmra.mxu0 %v1889
        %v2049 = vpop.f32.mrf.mxu0
        %v2050 = vadd.f32 0.0, %v2049
        %v2051 = vpop.f32.mrf.mxu0
        %v2052 = vadd.f32 0.0, %v2051
        %2053 = vdwg.mxu0
        %v2054 = vadd.f32 %v1800, %v1965
        %v2055 = vadd.f32 %v1801, %v1967
        %v2056 = vadd.f32 %v1802, %v1970
        %v2057 = vadd.f32 %v1803, %v1972
        %v2058 = vadd.f32 %v1804, %v1975
        %v2059 = vadd.f32 %v1805, %v1977
        %v2060 = vadd.f32 %v1806, %v1980
        %v2061 = vadd.f32 %v1807, %v1982
        %v2062 = vadd.f32 %v1808, %v1985
        %v2063 = vadd.f32 %v1809, %v1987
        %v2064 = vadd.f32 %v1810, %v1990
        %v2065 = vadd.f32 %v1811, %v1992
        %v2066 = vadd.f32 %v1812, %v1995
        %v2067 = vadd.f32 %v1813, %v1997
        %v2068 = vadd.f32 %v1814, %v2000
        %v2069 = vadd.f32 %v1815, %v2002
        %v2070 = vadd.f32 %v1816, %v2005
        %v2071 = vadd.f32 %v1817, %v2007
        %v2072 = vadd.f32 %v1818, %v2010
        %v2073 = vadd.f32 %v1819, %v2012
        %v2074 = vadd.f32 %v1820, %v2015
        %v2075 = vadd.f32 %v1821, %v2017
        %v2076 = vadd.f32 %v1822, %v2020
        %v2077 = vadd.f32 %v1823, %v2022
        %v2078 = vadd.f32 %v1824, %v2025
        %v2079 = vadd.f32 %v1825, %v2027
        %v2080 = vadd.f32 %v1826, %v2030
        %v2081 = vadd.f32 %v1827, %v2032
        %v2082 = vadd.f32 %v1828, %v2035
        %v2083 = vadd.f32 %v1829, %v2037
        %v2084 = vadd.f32 %v1830, %v2040
        %v2085 = vadd.f32 %v1831, %v2042
        %v2086 = vadd.f32 %v1832, %v2045
        %v2087 = vadd.f32 %v1833, %v2047
        %v2088 = vadd.f32 %v1834, %v2050
        %v2089 = vadd.f32 %v1835, %v2052
        %v2090 = vld [vmem:[#allocation3 + $0x14] sm:$0xff]
        %v2091 = vld [vmem:[#allocation3 + $0x1c] sm:$0xff]
        %v2092 = vld [vmem:[#allocation3 + $0x24] sm:$0xff]
        %v2093 = vld [vmem:[#allocation3 + $0x2c] sm:$0xff]
        %v2094 = vld [vmem:[#allocation3 + $0x34] sm:$0xff]
        %v2095 = vld [vmem:[#allocation3 + $0x3c] sm:$0xff]
        %v2096 = vld [vmem:[#allocation3 + $0x44] sm:$0xff]
        %v2097 = vld [vmem:[#allocation3 + $0x4c] sm:$0xff]
        %v2098 = vld [vmem:[#allocation3 + $0x54] sm:$0xff]
        %v2099 = vld [vmem:[#allocation3 + $0x5c] sm:$0xff]
        %v2100 = vld [vmem:[#allocation3 + $0x64] sm:$0xff]
        %v2101 = vld [vmem:[#allocation3 + $0x6c] sm:$0xff]
        %v2102 = vld [vmem:[#allocation3 + $0x74] sm:$0xff]
        %v2103 = vld [vmem:[#allocation3 + $0x7c] sm:$0xff]
        %v2104 = vld [vmem:[#allocation3 + $0x84] sm:$0xff]
        %v2105 = vld [vmem:[#allocation3 + $0x8c] sm:$0xff]
        %v2106 = vld [vmem:[#allocation3 + $0x94] sm:$0xff]
        %v2107 = vld [vmem:[#allocation3 + $0x9c] sm:$0xff]
        %v2108 = vld [vmem:[#allocation3 + $0xa4] sm:$0xff]
        %v2109 = vld [vmem:[#allocation3 + $0xac] sm:$0xff]
        %v2110 = vld [vmem:[#allocation3 + $0xb4] sm:$0xff]
        %v2111 = vld [vmem:[#allocation3 + $0xbc] sm:$0xff]
        %v2112 = vld [vmem:[#allocation3 + $0xc4] sm:$0xff]
        %v2113 = vld [vmem:[#allocation3 + $0xcc] sm:$0xff]
        %v2114 = vld [vmem:[#allocation3 + $0xd4] sm:$0xff]
        %v2115 = vld [vmem:[#allocation3 + $0xdc] sm:$0xff]
        %v2116 = vld [vmem:[#allocation3 + $0xe4] sm:$0xff]
        %v2117 = vld [vmem:[#allocation3 + $0xec] sm:$0xff]
        %v2118 = vld [vmem:[#allocation3 + $0xf4] sm:$0xff]
        %v2119 = vld [vmem:[#allocation3 + $0xfc] sm:$0xff]
        %v2120 = vld [vmem:[#allocation3 + $0x104] sm:$0xff]
        %v2121 = vld [vmem:[#allocation3 + $0x10c] sm:$0xff]
        %v2122 = vld [vmem:[#allocation3 + $0x114] sm:$0xff]
        %v2123 = vld [vmem:[#allocation3 + $0x11c] sm:$0xff]
        %v2124 = vld [vmem:[#allocation3 + $0x124] sm:$0xff]
        %v2125 = vld [vmem:[#allocation3 + $0x12c] sm:$0x3f]
        %v2126 = vpack.c.bf16 %v2091, %v2090
        %v2127 = vpack.c.bf16 %v2093, %v2092
        %v2128 = vpack.c.bf16 %v2095, %v2094
        %v2129 = vpack.c.bf16 %v2097, %v2096
        %v2130 = vpack.c.bf16 %v2099, %v2098
        %v2131 = vpack.c.bf16 %v2101, %v2100
        %v2132 = vpack.c.bf16 %v2103, %v2102
        %v2133 = vpack.c.bf16 %v2105, %v2104
        %v2134 = vpack.c.bf16 %v2107, %v2106
        %v2135 = vpack.c.bf16 %v2109, %v2108
        %v2136 = vpack.c.bf16 %v2111, %v2110
        %v2137 = vpack.c.bf16 %v2113, %v2112
        %v2138 = vpack.c.bf16 %v2115, %v2114
        %v2139 = vpack.c.bf16 %v2117, %v2116
        %v2140 = vpack.c.bf16 %v2119, %v2118
        %v2141 = vpack.c.bf16 %v2121, %v2120
        %v2142 = vpack.c.bf16 %v2123, %v2122
        %v2143 = vpack.c.bf16 %v2125, %v2124
        %s2144 = scalar_lea.vmem %s252, 320 [#allocation4]
        %v2145 = vld [vmem:[%s2144] sm:$0xf]
        %v2146 = vld [vmem:[%s2144 + $0x4] sm:$0xf]
        %v2147 = vld [vmem:[%s2144 + $0x8] sm:$0xf]
        %v2148 = vld [vmem:[%s2144 + $0xc] sm:$0xf]
        %v2149 = vld [vmem:[%s2144 + $0x10] sm:$0xf]
        %v2150 = vld [vmem:[%s2144 + $0x14] sm:$0xf]
        %v2151 = vld [vmem:[%s2144 + $0x18] sm:$0xf]
        %v2152 = vld [vmem:[%s2144 + $0x1c] sm:$0xf]
        %v2153 = vld [vmem:[%s2144 + $0x20] sm:$0xf]
        %v2154 = vld [vmem:[%s2144 + $0x24] sm:$0xf]
        %v2155 = vld [vmem:[%s2144 + $0x28] sm:$0xf]
        %v2156 = vld [vmem:[%s2144 + $0x2c] sm:$0xf]
        %v2157 = vld [vmem:[%s2144 + $0x30] sm:$0xf]
        %v2158 = vld [vmem:[%s2144 + $0x34] sm:$0xf]
        %v2159 = vld [vmem:[%s2144 + $0x38] sm:$0xf]
        %v2160 = vld [vmem:[%s2144 + $0x3c] sm:$0xf]
        %v2177 = vunpack.c.l.b16 %v2145
        %v2178 = vunpack.c.l.b16 %v2146
        %v2179 = vunpack.c.l.b16 %v2147
        %v2180 = vunpack.c.l.b16 %v2148
        %v2181 = vunpack.c.l.b16 %v2149
        %v2182 = vunpack.c.l.b16 %v2150
        %v2183 = vunpack.c.l.b16 %v2151
        %v2184 = vunpack.c.l.b16 %v2152
        %v2185 = vunpack.c.l.b16 %v2153
        %v2186 = vunpack.c.l.b16 %v2154
        %v2187 = vunpack.c.l.b16 %v2155
        %v2188 = vunpack.c.l.b16 %v2156
        %v2189 = vunpack.c.l.b16 %v2157
        %v2190 = vunpack.c.l.b16 %v2158
        %v2191 = vunpack.c.l.b16 %v2159
        %v2192 = vunpack.c.l.b16 %v2160
        %v2193 = vpack.c.b16 %v2178, %v2177
        %v2194 = vpack.c.b16 %v2180, %v2179
        %v2195 = vpack.c.b16 %v2182, %v2181
        %v2196 = vpack.c.b16 %v2184, %v2183
        %v2197 = vpack.c.b16 %v2186, %v2185
        %v2198 = vpack.c.b16 %v2188, %v2187
        %v2199 = vpack.c.b16 %v2190, %v2189
        %v2200 = vpack.c.b16 %v2192, %v2191
        %2209 = vmatpush.bf16.msra.mxu0 %v2200
        %2210 = vmatpush.bf16.msra.mxu0 %v2199
        %2211 = vmatpush.bf16.msra.mxu0 %v2198
        %2212 = vmatpush.bf16.msra.mxu0 %v2197
        %2213 = vmatpush.bf16.msra.mxu0 %v2196
        %2214 = vmatpush.bf16.msra.mxu0 %v2195
        %2215 = vmatpush.bf16.msra.mxu0 %v2194
        %2216 = vmatpush.bf16.msra.mxu0 %v2193
        %2217 = vmatmul.bf16.gmra.mxu0 %v2126
        %v2218 = vpop.f32.mrf.mxu0
        %v2219 = vadd.f32 0.0, %v2218
        %v2220 = vpop.f32.mrf.mxu0
        %v2221 = vadd.f32 0.0, %v2220
        %2222 = vmatmul.bf16.gmra.mxu0 %v2127
        %v2223 = vpop.f32.mrf.mxu0
        %v2224 = vadd.f32 0.0, %v2223
        %v2225 = vpop.f32.mrf.mxu0
        %v2226 = vadd.f32 0.0, %v2225
        %2227 = vmatmul.bf16.gmra.mxu0 %v2128
        %v2228 = vpop.f32.mrf.mxu0
        %v2229 = vadd.f32 0.0, %v2228
        %v2230 = vpop.f32.mrf.mxu0
        %v2231 = vadd.f32 0.0, %v2230
        %2232 = vmatmul.bf16.gmra.mxu0 %v2129
        %v2233 = vpop.f32.mrf.mxu0
        %v2234 = vadd.f32 0.0, %v2233
        %v2235 = vpop.f32.mrf.mxu0
        %v2236 = vadd.f32 0.0, %v2235
        %2237 = vmatmul.bf16.gmra.mxu0 %v2130
        %v2238 = vpop.f32.mrf.mxu0
        %v2239 = vadd.f32 0.0, %v2238
        %v2240 = vpop.f32.mrf.mxu0
        %v2241 = vadd.f32 0.0, %v2240
        %2242 = vmatmul.bf16.gmra.mxu0 %v2131
        %v2243 = vpop.f32.mrf.mxu0
        %v2244 = vadd.f32 0.0, %v2243
        %v2245 = vpop.f32.mrf.mxu0
        %v2246 = vadd.f32 0.0, %v2245
        %2247 = vmatmul.bf16.gmra.mxu0 %v2132
        %v2248 = vpop.f32.mrf.mxu0
        %v2249 = vadd.f32 0.0, %v2248
        %v2250 = vpop.f32.mrf.mxu0
        %v2251 = vadd.f32 0.0, %v2250
        %2252 = vmatmul.bf16.gmra.mxu0 %v2133
        %v2253 = vpop.f32.mrf.mxu0
        %v2254 = vadd.f32 0.0, %v2253
        %v2255 = vpop.f32.mrf.mxu0
        %v2256 = vadd.f32 0.0, %v2255
        %2257 = vmatmul.bf16.gmra.mxu0 %v2134
        %v2258 = vpop.f32.mrf.mxu0
        %v2259 = vadd.f32 0.0, %v2258
        %v2260 = vpop.f32.mrf.mxu0
        %v2261 = vadd.f32 0.0, %v2260
        %2262 = vmatmul.bf16.gmra.mxu0 %v2135
        %v2263 = vpop.f32.mrf.mxu0
        %v2264 = vadd.f32 0.0, %v2263
        %v2265 = vpop.f32.mrf.mxu0
        %v2266 = vadd.f32 0.0, %v2265
        %2267 = vmatmul.bf16.gmra.mxu0 %v2136
        %v2268 = vpop.f32.mrf.mxu0
        %v2269 = vadd.f32 0.0, %v2268
        %v2270 = vpop.f32.mrf.mxu0
        %v2271 = vadd.f32 0.0, %v2270
        %2272 = vmatmul.bf16.gmra.mxu0 %v2137
        %v2273 = vpop.f32.mrf.mxu0
        %v2274 = vadd.f32 0.0, %v2273
        %v2275 = vpop.f32.mrf.mxu0
        %v2276 = vadd.f32 0.0, %v2275
        %2277 = vmatmul.bf16.gmra.mxu0 %v2138
        %v2278 = vpop.f32.mrf.mxu0
        %v2279 = vadd.f32 0.0, %v2278
        %v2280 = vpop.f32.mrf.mxu0
        %v2281 = vadd.f32 0.0, %v2280
        %2282 = vmatmul.bf16.gmra.mxu0 %v2139
        %v2283 = vpop.f32.mrf.mxu0
        %v2284 = vadd.f32 0.0, %v2283
        %v2285 = vpop.f32.mrf.mxu0
        %v2286 = vadd.f32 0.0, %v2285
        %2287 = vmatmul.bf16.gmra.mxu0 %v2140
        %v2288 = vpop.f32.mrf.mxu0
        %v2289 = vadd.f32 0.0, %v2288
        %v2290 = vpop.f32.mrf.mxu0
        %v2291 = vadd.f32 0.0, %v2290
        %2292 = vmatmul.bf16.gmra.mxu0 %v2141
        %v2293 = vpop.f32.mrf.mxu0
        %v2294 = vadd.f32 0.0, %v2293
        %v2295 = vpop.f32.mrf.mxu0
        %v2296 = vadd.f32 0.0, %v2295
        %2297 = vmatmul.bf16.gmra.mxu0 %v2142
        %v2298 = vpop.f32.mrf.mxu0
        %v2299 = vadd.f32 0.0, %v2298
        %v2300 = vpop.f32.mrf.mxu0
        %v2301 = vadd.f32 0.0, %v2300
        %2302 = vmatmul.bf16.gmra.mxu0 %v2143
        %v2303 = vpop.f32.mrf.mxu0
        %v2304 = vadd.f32 0.0, %v2303
        %v2305 = vpop.f32.mrf.mxu0
        %v2306 = vadd.f32 0.0, %v2305
        %2307 = vdwg.mxu0
        %v2308 = vadd.f32 %v2054, %v2219
        %v2309 = vadd.f32 %v2055, %v2221
        %v2310 = vadd.f32 %v2056, %v2224
        %v2311 = vadd.f32 %v2057, %v2226
        %v2312 = vadd.f32 %v2058, %v2229
        %v2313 = vadd.f32 %v2059, %v2231
        %v2314 = vadd.f32 %v2060, %v2234
        %v2315 = vadd.f32 %v2061, %v2236
        %v2316 = vadd.f32 %v2062, %v2239
        %v2317 = vadd.f32 %v2063, %v2241
        %v2318 = vadd.f32 %v2064, %v2244
        %v2319 = vadd.f32 %v2065, %v2246
        %v2320 = vadd.f32 %v2066, %v2249
        %v2321 = vadd.f32 %v2067, %v2251
        %v2322 = vadd.f32 %v2068, %v2254
        %v2323 = vadd.f32 %v2069, %v2256
        %v2324 = vadd.f32 %v2070, %v2259
        %v2325 = vadd.f32 %v2071, %v2261
        %v2326 = vadd.f32 %v2072, %v2264
        %v2327 = vadd.f32 %v2073, %v2266
        %v2328 = vadd.f32 %v2074, %v2269
        %v2329 = vadd.f32 %v2075, %v2271
        %v2330 = vadd.f32 %v2076, %v2274
        %v2331 = vadd.f32 %v2077, %v2276
        %v2332 = vadd.f32 %v2078, %v2279
        %v2333 = vadd.f32 %v2079, %v2281
        %v2334 = vadd.f32 %v2080, %v2284
        %v2335 = vadd.f32 %v2081, %v2286
        %v2336 = vadd.f32 %v2082, %v2289
        %v2337 = vadd.f32 %v2083, %v2291
        %v2338 = vadd.f32 %v2084, %v2294
        %v2339 = vadd.f32 %v2085, %v2296
        %v2340 = vadd.f32 %v2086, %v2299
        %v2341 = vadd.f32 %v2087, %v2301
        %v2342 = vadd.f32 %v2088, %v2304
        %v2343 = vadd.f32 %v2089, %v2306
        %v2344 = vld [vmem:[#allocation3 + $0x24] sm:$0xff]
        %v2345 = vld [vmem:[#allocation3 + $0x2c] sm:$0xff]
        %v2346 = vld [vmem:[#allocation3 + $0x34] sm:$0xff]
        %v2347 = vld [vmem:[#allocation3 + $0x3c] sm:$0xff]
        %v2348 = vld [vmem:[#allocation3 + $0x44] sm:$0xff]
        %v2349 = vld [vmem:[#allocation3 + $0x4c] sm:$0xff]
        %v2350 = vld [vmem:[#allocation3 + $0x54] sm:$0xff]
        %v2351 = vld [vmem:[#allocation3 + $0x5c] sm:$0xff]
        %v2352 = vld [vmem:[#allocation3 + $0x64] sm:$0xff]
        %v2353 = vld [vmem:[#allocation3 + $0x6c] sm:$0xff]
        %v2354 = vld [vmem:[#allocation3 + $0x74] sm:$0xff]
        %v2355 = vld [vmem:[#allocation3 + $0x7c] sm:$0xff]
        %v2356 = vld [vmem:[#allocation3 + $0x84] sm:$0xff]
        %v2357 = vld [vmem:[#allocation3 + $0x8c] sm:$0xff]
        %v2358 = vld [vmem:[#allocation3 + $0x94] sm:$0xff]
        %v2359 = vld [vmem:[#allocation3 + $0x9c] sm:$0xff]
        %v2360 = vld [vmem:[#allocation3 + $0xa4] sm:$0xff]
        %v2361 = vld [vmem:[#allocation3 + $0xac] sm:$0xff]
        %v2362 = vld [vmem:[#allocation3 + $0xb4] sm:$0xff]
        %v2363 = vld [vmem:[#allocation3 + $0xbc] sm:$0xff]
        %v2364 = vld [vmem:[#allocation3 + $0xc4] sm:$0xff]
        %v2365 = vld [vmem:[#allocation3 + $0xcc] sm:$0xff]
        %v2366 = vld [vmem:[#allocation3 + $0xd4] sm:$0xff]
        %v2367 = vld [vmem:[#allocation3 + $0xdc] sm:$0xff]
        %v2368 = vld [vmem:[#allocation3 + $0xe4] sm:$0xff]
        %v2369 = vld [vmem:[#allocation3 + $0xec] sm:$0xff]
        %v2370 = vld [vmem:[#allocation3 + $0xf4] sm:$0xff]
        %v2371 = vld [vmem:[#allocation3 + $0xfc] sm:$0xff]
        %v2372 = vld [vmem:[#allocation3 + $0x104] sm:$0xff]
        %v2373 = vld [vmem:[#allocation3 + $0x10c] sm:$0xff]
        %v2374 = vld [vmem:[#allocation3 + $0x114] sm:$0xff]
        %v2375 = vld [vmem:[#allocation3 + $0x11c] sm:$0xff]
        %v2376 = vld [vmem:[#allocation3 + $0x124] sm:$0xff]
        %v2377 = vld [vmem:[#allocation3 + $0x12c] sm:$0xff]
        %v2378 = vld [vmem:[#allocation3 + $0x134] sm:$0xff]
        %v2379 = vld [vmem:[#allocation3 + $0x13c] sm:$0x3f]
        %v2380 = vpack.c.bf16 %v2345, %v2344
        %v2381 = vpack.c.bf16 %v2347, %v2346
        %v2382 = vpack.c.bf16 %v2349, %v2348
        %v2383 = vpack.c.bf16 %v2351, %v2350
        %v2384 = vpack.c.bf16 %v2353, %v2352
        %v2385 = vpack.c.bf16 %v2355, %v2354
        %v2386 = vpack.c.bf16 %v2357, %v2356
        %v2387 = vpack.c.bf16 %v2359, %v2358
        %v2388 = vpack.c.bf16 %v2361, %v2360
        %v2389 = vpack.c.bf16 %v2363, %v2362
        %v2390 = vpack.c.bf16 %v2365, %v2364
        %v2391 = vpack.c.bf16 %v2367, %v2366
        %v2392 = vpack.c.bf16 %v2369, %v2368
        %v2393 = vpack.c.bf16 %v2371, %v2370
        %v2394 = vpack.c.bf16 %v2373, %v2372
        %v2395 = vpack.c.bf16 %v2375, %v2374
        %v2396 = vpack.c.bf16 %v2377, %v2376
        %v2397 = vpack.c.bf16 %v2379, %v2378
        %s2398 = scalar_lea.vmem %s252, 384 [#allocation4]
        %v2399 = vld [vmem:[%s2398] sm:$0xf]
        %v2400 = vld [vmem:[%s2398 + $0x4] sm:$0xf]
        %v2401 = vld [vmem:[%s2398 + $0x8] sm:$0xf]
        %v2402 = vld [vmem:[%s2398 + $0xc] sm:$0xf]
        %v2403 = vld [vmem:[%s2398 + $0x10] sm:$0xf]
        %v2404 = vld [vmem:[%s2398 + $0x14] sm:$0xf]
        %v2405 = vld [vmem:[%s2398 + $0x18] sm:$0xf]
        %v2406 = vld [vmem:[%s2398 + $0x1c] sm:$0xf]
        %v2407 = vld [vmem:[%s2398 + $0x20] sm:$0xf]
        %v2408 = vld [vmem:[%s2398 + $0x24] sm:$0xf]
        %v2409 = vld [vmem:[%s2398 + $0x28] sm:$0xf]
        %v2410 = vld [vmem:[%s2398 + $0x2c] sm:$0xf]
        %v2411 = vld [vmem:[%s2398 + $0x30] sm:$0xf]
        %v2412 = vld [vmem:[%s2398 + $0x34] sm:$0xf]
        %v2413 = vld [vmem:[%s2398 + $0x38] sm:$0xf]
        %v2414 = vld [vmem:[%s2398 + $0x3c] sm:$0xf]
        %v2431 = vunpack.c.l.b16 %v2399
        %v2432 = vunpack.c.l.b16 %v2400
        %v2433 = vunpack.c.l.b16 %v2401
        %v2434 = vunpack.c.l.b16 %v2402
        %v2435 = vunpack.c.l.b16 %v2403
        %v2436 = vunpack.c.l.b16 %v2404
        %v2437 = vunpack.c.l.b16 %v2405
        %v2438 = vunpack.c.l.b16 %v2406
        %v2439 = vunpack.c.l.b16 %v2407
        %v2440 = vunpack.c.l.b16 %v2408
        %v2441 = vunpack.c.l.b16 %v2409
        %v2442 = vunpack.c.l.b16 %v2410
        %v2443 = vunpack.c.l.b16 %v2411
        %v2444 = vunpack.c.l.b16 %v2412
        %v2445 = vunpack.c.l.b16 %v2413
        %v2446 = vunpack.c.l.b16 %v2414
        %v2447 = vpack.c.b16 %v2432, %v2431
        %v2448 = vpack.c.b16 %v2434, %v2433
        %v2449 = vpack.c.b16 %v2436, %v2435
        %v2450 = vpack.c.b16 %v2438, %v2437
        %v2451 = vpack.c.b16 %v2440, %v2439
        %v2452 = vpack.c.b16 %v2442, %v2441
        %v2453 = vpack.c.b16 %v2444, %v2443
        %v2454 = vpack.c.b16 %v2446, %v2445
        %2463 = vmatpush.bf16.msra.mxu0 %v2454
        %2464 = vmatpush.bf16.msra.mxu0 %v2453
        %2465 = vmatpush.bf16.msra.mxu0 %v2452
        %2466 = vmatpush.bf16.msra.mxu0 %v2451
        %2467 = vmatpush.bf16.msra.mxu0 %v2450
        %2468 = vmatpush.bf16.msra.mxu0 %v2449
        %2469 = vmatpush.bf16.msra.mxu0 %v2448
        %2470 = vmatpush.bf16.msra.mxu0 %v2447
        %2471 = vmatmul.bf16.gmra.mxu0 %v2380
        %v2472 = vpop.f32.mrf.mxu0
        %v2473 = vadd.f32 0.0, %v2472
        %v2474 = vpop.f32.mrf.mxu0
        %v2475 = vadd.f32 0.0, %v2474
        %2476 = vmatmul.bf16.gmra.mxu0 %v2381
        %v2477 = vpop.f32.mrf.mxu0
        %v2478 = vadd.f32 0.0, %v2477
        %v2479 = vpop.f32.mrf.mxu0
        %v2480 = vadd.f32 0.0, %v2479
        %2481 = vmatmul.bf16.gmra.mxu0 %v2382
        %v2482 = vpop.f32.mrf.mxu0
        %v2483 = vadd.f32 0.0, %v2482
        %v2484 = vpop.f32.mrf.mxu0
        %v2485 = vadd.f32 0.0, %v2484
        %2486 = vmatmul.bf16.gmra.mxu0 %v2383
        %v2487 = vpop.f32.mrf.mxu0
        %v2488 = vadd.f32 0.0, %v2487
        %v2489 = vpop.f32.mrf.mxu0
        %v2490 = vadd.f32 0.0, %v2489
        %2491 = vmatmul.bf16.gmra.mxu0 %v2384
        %v2492 = vpop.f32.mrf.mxu0
        %v2493 = vadd.f32 0.0, %v2492
        %v2494 = vpop.f32.mrf.mxu0
        %v2495 = vadd.f32 0.0, %v2494
        %2496 = vmatmul.bf16.gmra.mxu0 %v2385
        %v2497 = vpop.f32.mrf.mxu0
        %v2498 = vadd.f32 0.0, %v2497
        %v2499 = vpop.f32.mrf.mxu0
        %v2500 = vadd.f32 0.0, %v2499
        %2501 = vmatmul.bf16.gmra.mxu0 %v2386
        %v2502 = vpop.f32.mrf.mxu0
        %v2503 = vadd.f32 0.0, %v2502
        %v2504 = vpop.f32.mrf.mxu0
        %v2505 = vadd.f32 0.0, %v2504
        %2506 = vmatmul.bf16.gmra.mxu0 %v2387
        %v2507 = vpop.f32.mrf.mxu0
        %v2508 = vadd.f32 0.0, %v2507
        %v2509 = vpop.f32.mrf.mxu0
        %v2510 = vadd.f32 0.0, %v2509
        %2511 = vmatmul.bf16.gmra.mxu0 %v2388
        %v2512 = vpop.f32.mrf.mxu0
        %v2513 = vadd.f32 0.0, %v2512
        %v2514 = vpop.f32.mrf.mxu0
        %v2515 = vadd.f32 0.0, %v2514
        %2516 = vmatmul.bf16.gmra.mxu0 %v2389
        %v2517 = vpop.f32.mrf.mxu0
        %v2518 = vadd.f32 0.0, %v2517
        %v2519 = vpop.f32.mrf.mxu0
        %v2520 = vadd.f32 0.0, %v2519
        %2521 = vmatmul.bf16.gmra.mxu0 %v2390
        %v2522 = vpop.f32.mrf.mxu0
        %v2523 = vadd.f32 0.0, %v2522
        %v2524 = vpop.f32.mrf.mxu0
        %v2525 = vadd.f32 0.0, %v2524
        %2526 = vmatmul.bf16.gmra.mxu0 %v2391
        %v2527 = vpop.f32.mrf.mxu0
        %v2528 = vadd.f32 0.0, %v2527
        %v2529 = vpop.f32.mrf.mxu0
        %v2530 = vadd.f32 0.0, %v2529
        %2531 = vmatmul.bf16.gmra.mxu0 %v2392
        %v2532 = vpop.f32.mrf.mxu0
        %v2533 = vadd.f32 0.0, %v2532
        %v2534 = vpop.f32.mrf.mxu0
        %v2535 = vadd.f32 0.0, %v2534
        %2536 = vmatmul.bf16.gmra.mxu0 %v2393
        %v2537 = vpop.f32.mrf.mxu0
        %v2538 = vadd.f32 0.0, %v2537
        %v2539 = vpop.f32.mrf.mxu0
        %v2540 = vadd.f32 0.0, %v2539
        %2541 = vmatmul.bf16.gmra.mxu0 %v2394
        %v2542 = vpop.f32.mrf.mxu0
        %v2543 = vadd.f32 0.0, %v2542
        %v2544 = vpop.f32.mrf.mxu0
        %v2545 = vadd.f32 0.0, %v2544
        %2546 = vmatmul.bf16.gmra.mxu0 %v2395
        %v2547 = vpop.f32.mrf.mxu0
        %v2548 = vadd.f32 0.0, %v2547
        %v2549 = vpop.f32.mrf.mxu0
        %v2550 = vadd.f32 0.0, %v2549
        %2551 = vmatmul.bf16.gmra.mxu0 %v2396
        %v2552 = vpop.f32.mrf.mxu0
        %v2553 = vadd.f32 0.0, %v2552
        %v2554 = vpop.f32.mrf.mxu0
        %v2555 = vadd.f32 0.0, %v2554
        %2556 = vmatmul.bf16.gmra.mxu0 %v2397
        %v2557 = vpop.f32.mrf.mxu0
        %v2558 = vadd.f32 0.0, %v2557
        %v2559 = vpop.f32.mrf.mxu0
        %v2560 = vadd.f32 0.0, %v2559
        %2561 = vdwg.mxu0
        %v2562 = vadd.f32 %v2308, %v2473
        %v2563 = vadd.f32 %v2309, %v2475
        %v2564 = vadd.f32 %v2310, %v2478
        %v2565 = vadd.f32 %v2311, %v2480
        %v2566 = vadd.f32 %v2312, %v2483
        %v2567 = vadd.f32 %v2313, %v2485
        %v2568 = vadd.f32 %v2314, %v2488
        %v2569 = vadd.f32 %v2315, %v2490
        %v2570 = vadd.f32 %v2316, %v2493
        %v2571 = vadd.f32 %v2317, %v2495
        %v2572 = vadd.f32 %v2318, %v2498
        %v2573 = vadd.f32 %v2319, %v2500
        %v2574 = vadd.f32 %v2320, %v2503
        %v2575 = vadd.f32 %v2321, %v2505
        %v2576 = vadd.f32 %v2322, %v2508
        %v2577 = vadd.f32 %v2323, %v2510
        %v2578 = vadd.f32 %v2324, %v2513
        %v2579 = vadd.f32 %v2325, %v2515
        %v2580 = vadd.f32 %v2326, %v2518
        %v2581 = vadd.f32 %v2327, %v2520
        %v2582 = vadd.f32 %v2328, %v2523
        %v2583 = vadd.f32 %v2329, %v2525
        %v2584 = vadd.f32 %v2330, %v2528
        %v2585 = vadd.f32 %v2331, %v2530
        %v2586 = vadd.f32 %v2332, %v2533
        %v2587 = vadd.f32 %v2333, %v2535
        %v2588 = vadd.f32 %v2334, %v2538
        %v2589 = vadd.f32 %v2335, %v2540
        %v2590 = vadd.f32 %v2336, %v2543
        %v2591 = vadd.f32 %v2337, %v2545
        %v2592 = vadd.f32 %v2338, %v2548
        %v2593 = vadd.f32 %v2339, %v2550
        %v2594 = vadd.f32 %v2340, %v2553
        %v2595 = vadd.f32 %v2341, %v2555
        %v2596 = vadd.f32 %v2342, %v2558
        %v2597 = vadd.f32 %v2343, %v2560
        %v2598 = vld [vmem:[#allocation3 + $0x25] sm:$0xff]
        %v2599 = vld [vmem:[#allocation3 + $0x2d] sm:$0xff]
        %v2600 = vld [vmem:[#allocation3 + $0x35] sm:$0xff]
        %v2601 = vld [vmem:[#allocation3 + $0x3d] sm:$0xff]
        %v2602 = vld [vmem:[#allocation3 + $0x45] sm:$0xff]
        %v2603 = vld [vmem:[#allocation3 + $0x4d] sm:$0xff]
        %v2604 = vld [vmem:[#allocation3 + $0x55] sm:$0xff]
        %v2605 = vld [vmem:[#allocation3 + $0x5d] sm:$0xff]
        %v2606 = vld [vmem:[#allocation3 + $0x65] sm:$0xff]
        %v2607 = vld [vmem:[#allocation3 + $0x6d] sm:$0xff]
        %v2608 = vld [vmem:[#allocation3 + $0x75] sm:$0xff]
        %v2609 = vld [vmem:[#allocation3 + $0x7d] sm:$0xff]
        %v2610 = vld [vmem:[#allocation3 + $0x85] sm:$0xff]
        %v2611 = vld [vmem:[#allocation3 + $0x8d] sm:$0xff]
        %v2612 = vld [vmem:[#allocation3 + $0x95] sm:$0xff]
        %v2613 = vld [vmem:[#allocation3 + $0x9d] sm:$0xff]
        %v2614 = vld [vmem:[#allocation3 + $0xa5] sm:$0xff]
        %v2615 = vld [vmem:[#allocation3 + $0xad] sm:$0xff]
        %v2616 = vld [vmem:[#allocation3 + $0xb5] sm:$0xff]
        %v2617 = vld [vmem:[#allocation3 + $0xbd] sm:$0xff]
        %v2618 = vld [vmem:[#allocation3 + $0xc5] sm:$0xff]
        %v2619 = vld [vmem:[#allocation3 + $0xcd] sm:$0xff]
        %v2620 = vld [vmem:[#allocation3 + $0xd5] sm:$0xff]
        %v2621 = vld [vmem:[#allocation3 + $0xdd] sm:$0xff]
        %v2622 = vld [vmem:[#allocation3 + $0xe5] sm:$0xff]
        %v2623 = vld [vmem:[#allocation3 + $0xed] sm:$0xff]
        %v2624 = vld [vmem:[#allocation3 + $0xf5] sm:$0xff]
        %v2625 = vld [vmem:[#allocation3 + $0xfd] sm:$0xff]
        %v2626 = vld [vmem:[#allocation3 + $0x105] sm:$0xff]
        %v2627 = vld [vmem:[#allocation3 + $0x10d] sm:$0xff]
        %v2628 = vld [vmem:[#allocation3 + $0x115] sm:$0xff]
        %v2629 = vld [vmem:[#allocation3 + $0x11d] sm:$0xff]
        %v2630 = vld [vmem:[#allocation3 + $0x125] sm:$0xff]
        %v2631 = vld [vmem:[#allocation3 + $0x12d] sm:$0xff]
        %v2632 = vld [vmem:[#allocation3 + $0x135] sm:$0xff]
        %v2633 = vld [vmem:[#allocation3 + $0x13d] sm:$0x3f]
        %v2634 = vpack.c.bf16 %v2599, %v2598
        %v2635 = vpack.c.bf16 %v2601, %v2600
        %v2636 = vpack.c.bf16 %v2603, %v2602
        %v2637 = vpack.c.bf16 %v2605, %v2604
        %v2638 = vpack.c.bf16 %v2607, %v2606
        %v2639 = vpack.c.bf16 %v2609, %v2608
        %v2640 = vpack.c.bf16 %v2611, %v2610
        %v2641 = vpack.c.bf16 %v2613, %v2612
        %v2642 = vpack.c.bf16 %v2615, %v2614
        %v2643 = vpack.c.bf16 %v2617, %v2616
        %v2644 = vpack.c.bf16 %v2619, %v2618
        %v2645 = vpack.c.bf16 %v2621, %v2620
        %v2646 = vpack.c.bf16 %v2623, %v2622
        %v2647 = vpack.c.bf16 %v2625, %v2624
        %v2648 = vpack.c.bf16 %v2627, %v2626
        %v2649 = vpack.c.bf16 %v2629, %v2628
        %v2650 = vpack.c.bf16 %v2631, %v2630
        %v2651 = vpack.c.bf16 %v2633, %v2632
        %s2652 = scalar_lea.vmem %s252, 448 [#allocation4]
        %v2653 = vld [vmem:[%s2652] sm:$0xf]
        %v2654 = vld [vmem:[%s2652 + $0x4] sm:$0xf]
        %v2655 = vld [vmem:[%s2652 + $0x8] sm:$0xf]
        %v2656 = vld [vmem:[%s2652 + $0xc] sm:$0xf]
        %v2657 = vld [vmem:[%s2652 + $0x10] sm:$0xf]
        %v2658 = vld [vmem:[%s2652 + $0x14] sm:$0xf]
        %v2659 = vld [vmem:[%s2652 + $0x18] sm:$0xf]
        %v2660 = vld [vmem:[%s2652 + $0x1c] sm:$0xf]
        %v2661 = vld [vmem:[%s2652 + $0x20] sm:$0xf]
        %v2662 = vld [vmem:[%s2652 + $0x24] sm:$0xf]
        %v2663 = vld [vmem:[%s2652 + $0x28] sm:$0xf]
        %v2664 = vld [vmem:[%s2652 + $0x2c] sm:$0xf]
        %v2665 = vld [vmem:[%s2652 + $0x30] sm:$0xf]
        %v2666 = vld [vmem:[%s2652 + $0x34] sm:$0xf]
        %v2667 = vld [vmem:[%s2652 + $0x38] sm:$0xf]
        %v2668 = vld [vmem:[%s2652 + $0x3c] sm:$0xf]
        %v2685 = vunpack.c.l.b16 %v2653
        %v2686 = vunpack.c.l.b16 %v2654
        %v2687 = vunpack.c.l.b16 %v2655
        %v2688 = vunpack.c.l.b16 %v2656
        %v2689 = vunpack.c.l.b16 %v2657
        %v2690 = vunpack.c.l.b16 %v2658
        %v2691 = vunpack.c.l.b16 %v2659
        %v2692 = vunpack.c.l.b16 %v2660
        %v2693 = vunpack.c.l.b16 %v2661
        %v2694 = vunpack.c.l.b16 %v2662
        %v2695 = vunpack.c.l.b16 %v2663
        %v2696 = vunpack.c.l.b16 %v2664
        %v2697 = vunpack.c.l.b16 %v2665
        %v2698 = vunpack.c.l.b16 %v2666
        %v2699 = vunpack.c.l.b16 %v2667
        %v2700 = vunpack.c.l.b16 %v2668
        %v2701 = vpack.c.b16 %v2686, %v2685
        %v2702 = vpack.c.b16 %v2688, %v2687
        %v2703 = vpack.c.b16 %v2690, %v2689
        %v2704 = vpack.c.b16 %v2692, %v2691
        %v2705 = vpack.c.b16 %v2694, %v2693
        %v2706 = vpack.c.b16 %v2696, %v2695
        %v2707 = vpack.c.b16 %v2698, %v2697
        %v2708 = vpack.c.b16 %v2700, %v2699
        %2717 = vmatpush.bf16.msra.mxu0 %v2708
        %2718 = vmatpush.bf16.msra.mxu0 %v2707
        %2719 = vmatpush.bf16.msra.mxu0 %v2706
        %2720 = vmatpush.bf16.msra.mxu0 %v2705
        %2721 = vmatpush.bf16.msra.mxu0 %v2704
        %2722 = vmatpush.bf16.msra.mxu0 %v2703
        %2723 = vmatpush.bf16.msra.mxu0 %v2702
        %2724 = vmatpush.bf16.msra.mxu0 %v2701
        %2725 = vmatmul.bf16.gmra.mxu0 %v2634
        %v2726 = vpop.f32.mrf.mxu0
        %v2727 = vadd.f32 0.0, %v2726
        %v2728 = vpop.f32.mrf.mxu0
        %v2729 = vadd.f32 0.0, %v2728
        %2730 = vmatmul.bf16.gmra.mxu0 %v2635
        %v2731 = vpop.f32.mrf.mxu0
        %v2732 = vadd.f32 0.0, %v2731
        %v2733 = vpop.f32.mrf.mxu0
        %v2734 = vadd.f32 0.0, %v2733
        %2735 = vmatmul.bf16.gmra.mxu0 %v2636
        %v2736 = vpop.f32.mrf.mxu0
        %v2737 = vadd.f32 0.0, %v2736
        %v2738 = vpop.f32.mrf.mxu0
        %v2739 = vadd.f32 0.0, %v2738
        %2740 = vmatmul.bf16.gmra.mxu0 %v2637
        %v2741 = vpop.f32.mrf.mxu0
        %v2742 = vadd.f32 0.0, %v2741
        %v2743 = vpop.f32.mrf.mxu0
        %v2744 = vadd.f32 0.0, %v2743
        %2745 = vmatmul.bf16.gmra.mxu0 %v2638
        %v2746 = vpop.f32.mrf.mxu0
        %v2747 = vadd.f32 0.0, %v2746
        %v2748 = vpop.f32.mrf.mxu0
        %v2749 = vadd.f32 0.0, %v2748
        %2750 = vmatmul.bf16.gmra.mxu0 %v2639
        %v2751 = vpop.f32.mrf.mxu0
        %v2752 = vadd.f32 0.0, %v2751
        %v2753 = vpop.f32.mrf.mxu0
        %v2754 = vadd.f32 0.0, %v2753
        %2755 = vmatmul.bf16.gmra.mxu0 %v2640
        %v2756 = vpop.f32.mrf.mxu0
        %v2757 = vadd.f32 0.0, %v2756
        %v2758 = vpop.f32.mrf.mxu0
        %v2759 = vadd.f32 0.0, %v2758
        %2760 = vmatmul.bf16.gmra.mxu0 %v2641
        %v2761 = vpop.f32.mrf.mxu0
        %v2762 = vadd.f32 0.0, %v2761
        %v2763 = vpop.f32.mrf.mxu0
        %v2764 = vadd.f32 0.0, %v2763
        %2765 = vmatmul.bf16.gmra.mxu0 %v2642
        %v2766 = vpop.f32.mrf.mxu0
        %v2767 = vadd.f32 0.0, %v2766
        %v2768 = vpop.f32.mrf.mxu0
        %v2769 = vadd.f32 0.0, %v2768
        %2770 = vmatmul.bf16.gmra.mxu0 %v2643
        %v2771 = vpop.f32.mrf.mxu0
        %v2772 = vadd.f32 0.0, %v2771
        %v2773 = vpop.f32.mrf.mxu0
        %v2774 = vadd.f32 0.0, %v2773
        %2775 = vmatmul.bf16.gmra.mxu0 %v2644
        %v2776 = vpop.f32.mrf.mxu0
        %v2777 = vadd.f32 0.0, %v2776
        %v2778 = vpop.f32.mrf.mxu0
        %v2779 = vadd.f32 0.0, %v2778
        %2780 = vmatmul.bf16.gmra.mxu0 %v2645
        %v2781 = vpop.f32.mrf.mxu0
        %v2782 = vadd.f32 0.0, %v2781
        %v2783 = vpop.f32.mrf.mxu0
        %v2784 = vadd.f32 0.0, %v2783
        %2785 = vmatmul.bf16.gmra.mxu0 %v2646
        %v2786 = vpop.f32.mrf.mxu0
        %v2787 = vadd.f32 0.0, %v2786
        %v2788 = vpop.f32.mrf.mxu0
        %v2789 = vadd.f32 0.0, %v2788
        %2790 = vmatmul.bf16.gmra.mxu0 %v2647
        %v2791 = vpop.f32.mrf.mxu0
        %v2792 = vadd.f32 0.0, %v2791
        %v2793 = vpop.f32.mrf.mxu0
        %v2794 = vadd.f32 0.0, %v2793
        %2795 = vmatmul.bf16.gmra.mxu0 %v2648
        %v2796 = vpop.f32.mrf.mxu0
        %v2797 = vadd.f32 0.0, %v2796
        %v2798 = vpop.f32.mrf.mxu0
        %v2799 = vadd.f32 0.0, %v2798
        %2800 = vmatmul.bf16.gmra.mxu0 %v2649
        %v2801 = vpop.f32.mrf.mxu0
        %v2802 = vadd.f32 0.0, %v2801
        %v2803 = vpop.f32.mrf.mxu0
        %v2804 = vadd.f32 0.0, %v2803
        %2805 = vmatmul.bf16.gmra.mxu0 %v2650
        %v2806 = vpop.f32.mrf.mxu0
        %v2807 = vadd.f32 0.0, %v2806
        %v2808 = vpop.f32.mrf.mxu0
        %v2809 = vadd.f32 0.0, %v2808
        %2810 = vmatmul.bf16.gmra.mxu0 %v2651
        %v2811 = vpop.f32.mrf.mxu0
        %v2812 = vadd.f32 0.0, %v2811
        %v2813 = vpop.f32.mrf.mxu0
        %v2814 = vadd.f32 0.0, %v2813
        %2815 = vdwg.mxu0
        %v2816 = vadd.f32 %v2562, %v2727
        %v2817 = vadd.f32 %v2563, %v2729
        %v2818 = vadd.f32 %v2564, %v2732
        %v2819 = vadd.f32 %v2565, %v2734
        %v2820 = vadd.f32 %v2566, %v2737
        %v2821 = vadd.f32 %v2567, %v2739
        %v2822 = vadd.f32 %v2568, %v2742
        %v2823 = vadd.f32 %v2569, %v2744
        %v2824 = vadd.f32 %v2570, %v2747
        %v2825 = vadd.f32 %v2571, %v2749
        %v2826 = vadd.f32 %v2572, %v2752
        %v2827 = vadd.f32 %v2573, %v2754
        %v2828 = vadd.f32 %v2574, %v2757
        %v2829 = vadd.f32 %v2575, %v2759
        %v2830 = vadd.f32 %v2576, %v2762
        %v2831 = vadd.f32 %v2577, %v2764
        %v2832 = vadd.f32 %v2578, %v2767
        %v2833 = vadd.f32 %v2579, %v2769
        %v2834 = vadd.f32 %v2580, %v2772
        %v2835 = vadd.f32 %v2581, %v2774
        %v2836 = vadd.f32 %v2582, %v2777
        %v2837 = vadd.f32 %v2583, %v2779
        %v2838 = vadd.f32 %v2584, %v2782
        %v2839 = vadd.f32 %v2585, %v2784
        %v2840 = vadd.f32 %v2586, %v2787
        %v2841 = vadd.f32 %v2587, %v2789
        %v2842 = vadd.f32 %v2588, %v2792
        %v2843 = vadd.f32 %v2589, %v2794
        %v2844 = vadd.f32 %v2590, %v2797
        %v2845 = vadd.f32 %v2591, %v2799
        %v2846 = vadd.f32 %v2592, %v2802
        %v2847 = vadd.f32 %v2593, %v2804
        %v2848 = vadd.f32 %v2594, %v2807
        %v2849 = vadd.f32 %v2595, %v2809
        %v2850 = vadd.f32 %v2596, %v2812
        %v2851 = vadd.f32 %v2597, %v2814
        %v2852 = vld [vmem:[#allocation3 + $0x26] sm:$0xff]
        %v2853 = vld [vmem:[#allocation3 + $0x2e] sm:$0xff]
        %v2854 = vld [vmem:[#allocation3 + $0x36] sm:$0xff]
        %v2855 = vld [vmem:[#allocation3 + $0x3e] sm:$0xff]
        %v2856 = vld [vmem:[#allocation3 + $0x46] sm:$0xff]
        %v2857 = vld [vmem:[#allocation3 + $0x4e] sm:$0xff]
        %v2858 = vld [vmem:[#allocation3 + $0x56] sm:$0xff]
        %v2859 = vld [vmem:[#allocation3 + $0x5e] sm:$0xff]
        %v2860 = vld [vmem:[#allocation3 + $0x66] sm:$0xff]
        %v2861 = vld [vmem:[#allocation3 + $0x6e] sm:$0xff]
        %v2862 = vld [vmem:[#allocation3 + $0x76] sm:$0xff]
        %v2863 = vld [vmem:[#allocation3 + $0x7e] sm:$0xff]
        %v2864 = vld [vmem:[#allocation3 + $0x86] sm:$0xff]
        %v2865 = vld [vmem:[#allocation3 + $0x8e] sm:$0xff]
        %v2866 = vld [vmem:[#allocation3 + $0x96] sm:$0xff]
        %v2867 = vld [vmem:[#allocation3 + $0x9e] sm:$0xff]
        %v2868 = vld [vmem:[#allocation3 + $0xa6] sm:$0xff]
        %v2869 = vld [vmem:[#allocation3 + $0xae] sm:$0xff]
        %v2870 = vld [vmem:[#allocation3 + $0xb6] sm:$0xff]
        %v2871 = vld [vmem:[#allocation3 + $0xbe] sm:$0xff]
        %v2872 = vld [vmem:[#allocation3 + $0xc6] sm:$0xff]
        %v2873 = vld [vmem:[#allocation3 + $0xce] sm:$0xff]
        %v2874 = vld [vmem:[#allocation3 + $0xd6] sm:$0xff]
        %v2875 = vld [vmem:[#allocation3 + $0xde] sm:$0xff]
        %v2876 = vld [vmem:[#allocation3 + $0xe6] sm:$0xff]
        %v2877 = vld [vmem:[#allocation3 + $0xee] sm:$0xff]
        %v2878 = vld [vmem:[#allocation3 + $0xf6] sm:$0xff]
        %v2879 = vld [vmem:[#allocation3 + $0xfe] sm:$0xff]
        %v2880 = vld [vmem:[#allocation3 + $0x106] sm:$0xff]
        %v2881 = vld [vmem:[#allocation3 + $0x10e] sm:$0xff]
        %v2882 = vld [vmem:[#allocation3 + $0x116] sm:$0xff]
        %v2883 = vld [vmem:[#allocation3 + $0x11e] sm:$0xff]
        %v2884 = vld [vmem:[#allocation3 + $0x126] sm:$0xff]
        %v2885 = vld [vmem:[#allocation3 + $0x12e] sm:$0xff]
        %v2886 = vld [vmem:[#allocation3 + $0x136] sm:$0xff]
        %v2887 = vld [vmem:[#allocation3 + $0x13e] sm:$0x3f]
        %v2888 = vpack.c.bf16 %v2853, %v2852
        %v2889 = vpack.c.bf16 %v2855, %v2854
        %v2890 = vpack.c.bf16 %v2857, %v2856
        %v2891 = vpack.c.bf16 %v2859, %v2858
        %v2892 = vpack.c.bf16 %v2861, %v2860
        %v2893 = vpack.c.bf16 %v2863, %v2862
        %v2894 = vpack.c.bf16 %v2865, %v2864
        %v2895 = vpack.c.bf16 %v2867, %v2866
        %v2896 = vpack.c.bf16 %v2869, %v2868
        %v2897 = vpack.c.bf16 %v2871, %v2870
        %v2898 = vpack.c.bf16 %v2873, %v2872
        %v2899 = vpack.c.bf16 %v2875, %v2874
        %v2900 = vpack.c.bf16 %v2877, %v2876
        %v2901 = vpack.c.bf16 %v2879, %v2878
        %v2902 = vpack.c.bf16 %v2881, %v2880
        %v2903 = vpack.c.bf16 %v2883, %v2882
        %v2904 = vpack.c.bf16 %v2885, %v2884
        %v2905 = vpack.c.bf16 %v2887, %v2886
        %s2906 = scalar_lea.vmem %s252, 512 [#allocation4]
        %v2907 = vld [vmem:[%s2906] sm:$0xf]
        %v2908 = vld [vmem:[%s2906 + $0x4] sm:$0xf]
        %v2909 = vld [vmem:[%s2906 + $0x8] sm:$0xf]
        %v2910 = vld [vmem:[%s2906 + $0xc] sm:$0xf]
        %v2911 = vld [vmem:[%s2906 + $0x10] sm:$0xf]
        %v2912 = vld [vmem:[%s2906 + $0x14] sm:$0xf]
        %v2913 = vld [vmem:[%s2906 + $0x18] sm:$0xf]
        %v2914 = vld [vmem:[%s2906 + $0x1c] sm:$0xf]
        %v2915 = vld [vmem:[%s2906 + $0x20] sm:$0xf]
        %v2916 = vld [vmem:[%s2906 + $0x24] sm:$0xf]
        %v2917 = vld [vmem:[%s2906 + $0x28] sm:$0xf]
        %v2918 = vld [vmem:[%s2906 + $0x2c] sm:$0xf]
        %v2919 = vld [vmem:[%s2906 + $0x30] sm:$0xf]
        %v2920 = vld [vmem:[%s2906 + $0x34] sm:$0xf]
        %v2921 = vld [vmem:[%s2906 + $0x38] sm:$0xf]
        %v2922 = vld [vmem:[%s2906 + $0x3c] sm:$0xf]
        %v2939 = vunpack.c.l.b16 %v2907
        %v2940 = vunpack.c.l.b16 %v2908
        %v2941 = vunpack.c.l.b16 %v2909
        %v2942 = vunpack.c.l.b16 %v2910
        %v2943 = vunpack.c.l.b16 %v2911
        %v2944 = vunpack.c.l.b16 %v2912
        %v2945 = vunpack.c.l.b16 %v2913
        %v2946 = vunpack.c.l.b16 %v2914
        %v2947 = vunpack.c.l.b16 %v2915
        %v2948 = vunpack.c.l.b16 %v2916
        %v2949 = vunpack.c.l.b16 %v2917
        %v2950 = vunpack.c.l.b16 %v2918
        %v2951 = vunpack.c.l.b16 %v2919
        %v2952 = vunpack.c.l.b16 %v2920
        %v2953 = vunpack.c.l.b16 %v2921
        %v2954 = vunpack.c.l.b16 %v2922
        %v2955 = vpack.c.b16 %v2940, %v2939
        %v2956 = vpack.c.b16 %v2942, %v2941
        %v2957 = vpack.c.b16 %v2944, %v2943
        %v2958 = vpack.c.b16 %v2946, %v2945
        %v2959 = vpack.c.b16 %v2948, %v2947
        %v2960 = vpack.c.b16 %v2950, %v2949
        %v2961 = vpack.c.b16 %v2952, %v2951
        %v2962 = vpack.c.b16 %v2954, %v2953
        %2971 = vmatpush.bf16.msra.mxu0 %v2962
        %2972 = vmatpush.bf16.msra.mxu0 %v2961
        %2973 = vmatpush.bf16.msra.mxu0 %v2960
        %2974 = vmatpush.bf16.msra.mxu0 %v2959
        %2975 = vmatpush.bf16.msra.mxu0 %v2958
        %2976 = vmatpush.bf16.msra.mxu0 %v2957
        %2977 = vmatpush.bf16.msra.mxu0 %v2956
        %2978 = vmatpush.bf16.msra.mxu0 %v2955
        %2979 = vmatmul.bf16.gmra.mxu0 %v2888
        %v2980 = vpop.f32.mrf.mxu0
        %v2981 = vadd.f32 0.0, %v2980
        %v2982 = vpop.f32.mrf.mxu0
        %v2983 = vadd.f32 0.0, %v2982
        %2984 = vmatmul.bf16.gmra.mxu0 %v2889
        %v2985 = vpop.f32.mrf.mxu0
        %v2986 = vadd.f32 0.0, %v2985
        %v2987 = vpop.f32.mrf.mxu0
        %v2988 = vadd.f32 0.0, %v2987
        %2989 = vmatmul.bf16.gmra.mxu0 %v2890
        %v2990 = vpop.f32.mrf.mxu0
        %v2991 = vadd.f32 0.0, %v2990
        %v2992 = vpop.f32.mrf.mxu0
        %v2993 = vadd.f32 0.0, %v2992
        %2994 = vmatmul.bf16.gmra.mxu0 %v2891
        %v2995 = vpop.f32.mrf.mxu0
        %v2996 = vadd.f32 0.0, %v2995
        %v2997 = vpop.f32.mrf.mxu0
        %v2998 = vadd.f32 0.0, %v2997
        %2999 = vmatmul.bf16.gmra.mxu0 %v2892
        %v3000 = vpop.f32.mrf.mxu0
        %v3001 = vadd.f32 0.0, %v3000
        %v3002 = vpop.f32.mrf.mxu0
        %v3003 = vadd.f32 0.0, %v3002
        %3004 = vmatmul.bf16.gmra.mxu0 %v2893
        %v3005 = vpop.f32.mrf.mxu0
        %v3006 = vadd.f32 0.0, %v3005
        %v3007 = vpop.f32.mrf.mxu0
        %v3008 = vadd.f32 0.0, %v3007
        %3009 = vmatmul.bf16.gmra.mxu0 %v2894
        %v3010 = vpop.f32.mrf.mxu0
        %v3011 = vadd.f32 0.0, %v3010
        %v3012 = vpop.f32.mrf.mxu0
        %v3013 = vadd.f32 0.0, %v3012
        %3014 = vmatmul.bf16.gmra.mxu0 %v2895
        %v3015 = vpop.f32.mrf.mxu0
        %v3016 = vadd.f32 0.0, %v3015
        %v3017 = vpop.f32.mrf.mxu0
        %v3018 = vadd.f32 0.0, %v3017
        %3019 = vmatmul.bf16.gmra.mxu0 %v2896
        %v3020 = vpop.f32.mrf.mxu0
        %v3021 = vadd.f32 0.0, %v3020
        %v3022 = vpop.f32.mrf.mxu0
        %v3023 = vadd.f32 0.0, %v3022
        %3024 = vmatmul.bf16.gmra.mxu0 %v2897
        %v3025 = vpop.f32.mrf.mxu0
        %v3026 = vadd.f32 0.0, %v3025
        %v3027 = vpop.f32.mrf.mxu0
        %v3028 = vadd.f32 0.0, %v3027
        %3029 = vmatmul.bf16.gmra.mxu0 %v2898
        %v3030 = vpop.f32.mrf.mxu0
        %v3031 = vadd.f32 0.0, %v3030
        %v3032 = vpop.f32.mrf.mxu0
        %v3033 = vadd.f32 0.0, %v3032
        %3034 = vmatmul.bf16.gmra.mxu0 %v2899
        %v3035 = vpop.f32.mrf.mxu0
        %v3036 = vadd.f32 0.0, %v3035
        %v3037 = vpop.f32.mrf.mxu0
        %v3038 = vadd.f32 0.0, %v3037
        %3039 = vmatmul.bf16.gmra.mxu0 %v2900
        %v3040 = vpop.f32.mrf.mxu0
        %v3041 = vadd.f32 0.0, %v3040
        %v3042 = vpop.f32.mrf.mxu0
        %v3043 = vadd.f32 0.0, %v3042
        %3044 = vmatmul.bf16.gmra.mxu0 %v2901
        %v3045 = vpop.f32.mrf.mxu0
        %v3046 = vadd.f32 0.0, %v3045
        %v3047 = vpop.f32.mrf.mxu0
        %v3048 = vadd.f32 0.0, %v3047
        %3049 = vmatmul.bf16.gmra.mxu0 %v2902
        %v3050 = vpop.f32.mrf.mxu0
        %v3051 = vadd.f32 0.0, %v3050
        %v3052 = vpop.f32.mrf.mxu0
        %v3053 = vadd.f32 0.0, %v3052
        %3054 = vmatmul.bf16.gmra.mxu0 %v2903
        %v3055 = vpop.f32.mrf.mxu0
        %v3056 = vadd.f32 0.0, %v3055
        %v3057 = vpop.f32.mrf.mxu0
        %v3058 = vadd.f32 0.0, %v3057
        %3059 = vmatmul.bf16.gmra.mxu0 %v2904
        %v3060 = vpop.f32.mrf.mxu0
        %v3061 = vadd.f32 0.0, %v3060
        %v3062 = vpop.f32.mrf.mxu0
        %v3063 = vadd.f32 0.0, %v3062
        %3064 = vmatmul.bf16.gmra.mxu0 %v2905
        %v3065 = vpop.f32.mrf.mxu0
        %v3066 = vadd.f32 0.0, %v3065
        %v3067 = vpop.f32.mrf.mxu0
        %v3068 = vadd.f32 0.0, %v3067
        %3069 = vdwg.mxu0
        %v3070 = vadd.f32 %v2816, %v2981
        %v3071 = vadd.f32 %v2817, %v2983
        %v3072 = vadd.f32 %v2818, %v2986
        %v3073 = vadd.f32 %v2819, %v2988
        %v3074 = vadd.f32 %v2820, %v2991
        %v3075 = vadd.f32 %v2821, %v2993
        %v3076 = vadd.f32 %v2822, %v2996
        %v3077 = vadd.f32 %v2823, %v2998
        %v3078 = vadd.f32 %v2824, %v3001
        %v3079 = vadd.f32 %v2825, %v3003
        %v3080 = vadd.f32 %v2826, %v3006
        %v3081 = vadd.f32 %v2827, %v3008
        %v3082 = vadd.f32 %v2828, %v3011
        %v3083 = vadd.f32 %v2829, %v3013
        %v3084 = vadd.f32 %v2830, %v3016
        %v3085 = vadd.f32 %v2831, %v3018
        %v3086 = vadd.f32 %v2832, %v3021
        %v3087 = vadd.f32 %v2833, %v3023
        %v3088 = vadd.f32 %v2834, %v3026
        %v3089 = vadd.f32 %v2835, %v3028
        %v3090 = vadd.f32 %v2836, %v3031
        %v3091 = vadd.f32 %v2837, %v3033
        %v3092 = vadd.f32 %v2838, %v3036
        %v3093 = vadd.f32 %v2839, %v3038
        %v3094 = vadd.f32 %v2840, %v3041
        %v3095 = vadd.f32 %v2841, %v3043
        %v3096 = vadd.f32 %v2842, %v3046
        %v3097 = vadd.f32 %v2843, %v3048
        %v3098 = vadd.f32 %v2844, %v3051
        %v3099 = vadd.f32 %v2845, %v3053
        %v3100 = vadd.f32 %v2846, %v3056
        %v3101 = vadd.f32 %v2847, %v3058
        %v3102 = vadd.f32 %v2848, %v3061
        %v3103 = vadd.f32 %v2849, %v3063
        %v3104 = vadd.f32 %v2850, %v3066
        %v3105 = vadd.f32 %v2851, %v3068
        %v3106 = vld [vmem:[#allocation2 + $0x13] sm:$0xff]
        %v3107 = vld [vmem:[#allocation2 + $0x1b] sm:$0xff]
        %v3108 = vld [vmem:[#allocation2 + $0x23] sm:$0xff]
        %v3109 = vld [vmem:[#allocation2 + $0x2b] sm:$0xff]
        %v3110 = vld [vmem:[#allocation2 + $0x33] sm:$0xff]
        %v3111 = vld [vmem:[#allocation2 + $0x3b] sm:$0xff]
        %v3112 = vld [vmem:[#allocation2 + $0x43] sm:$0xff]
        %v3113 = vld [vmem:[#allocation2 + $0x4b] sm:$0xff]
        %v3114 = vld [vmem:[#allocation2 + $0x53] sm:$0xff]
        %v3115 = vld [vmem:[#allocation2 + $0x5b] sm:$0xff]
        %v3116 = vld [vmem:[#allocation2 + $0x63] sm:$0xff]
        %v3117 = vld [vmem:[#allocation2 + $0x6b] sm:$0xff]
        %v3118 = vld [vmem:[#allocation2 + $0x73] sm:$0xff]
        %v3119 = vld [vmem:[#allocation2 + $0x7b] sm:$0xff]
        %v3120 = vld [vmem:[#allocation2 + $0x83] sm:$0xff]
        %v3121 = vld [vmem:[#allocation2 + $0x8b] sm:$0xff]
        %v3122 = vld [vmem:[#allocation2 + $0x93] sm:$0xff]
        %v3123 = vld [vmem:[#allocation2 + $0x9b] sm:$0xff]
        %v3124 = vld [vmem:[#allocation2 + $0xa3] sm:$0xff]
        %v3125 = vld [vmem:[#allocation2 + $0xab] sm:$0xff]
        %v3126 = vld [vmem:[#allocation2 + $0xb3] sm:$0xff]
        %v3127 = vld [vmem:[#allocation2 + $0xbb] sm:$0xff]
        %v3128 = vld [vmem:[#allocation2 + $0xc3] sm:$0xff]
        %v3129 = vld [vmem:[#allocation2 + $0xcb] sm:$0xff]
        %v3130 = vld [vmem:[#allocation2 + $0xd3] sm:$0xff]
        %v3131 = vld [vmem:[#allocation2 + $0xdb] sm:$0xff]
        %v3132 = vld [vmem:[#allocation2 + $0xe3] sm:$0xff]
        %v3133 = vld [vmem:[#allocation2 + $0xeb] sm:$0xff]
        %v3134 = vld [vmem:[#allocation2 + $0xf3] sm:$0xff]
        %v3135 = vld [vmem:[#allocation2 + $0xfb] sm:$0xff]
        %v3136 = vld [vmem:[#allocation2 + $0x103] sm:$0xff]
        %v3137 = vld [vmem:[#allocation2 + $0x10b] sm:$0xff]
        %v3138 = vld [vmem:[#allocation2 + $0x113] sm:$0xff]
        %v3139 = vld [vmem:[#allocation2 + $0x11b] sm:$0xff]
        %v3140 = vld [vmem:[#allocation2 + $0x123] sm:$0xff]
        %v3141 = vld [vmem:[#allocation2 + $0x12b] sm:$0x3f]
        %v3142 = vadd.f32 %v3106, %v3070
        %v3143 = vadd.f32 %v3107, %v3071
        %v3144 = vadd.f32 %v3108, %v3072
        %v3145 = vadd.f32 %v3109, %v3073
        %v3146 = vadd.f32 %v3110, %v3074
        %v3147 = vadd.f32 %v3111, %v3075
        %v3148 = vadd.f32 %v3112, %v3076
        %v3149 = vadd.f32 %v3113, %v3077
        %v3150 = vadd.f32 %v3114, %v3078
        %v3151 = vadd.f32 %v3115, %v3079
        %v3152 = vadd.f32 %v3116, %v3080
        %v3153 = vadd.f32 %v3117, %v3081
        %v3154 = vadd.f32 %v3118, %v3082
        %v3155 = vadd.f32 %v3119, %v3083
        %v3156 = vadd.f32 %v3120, %v3084
        %v3157 = vadd.f32 %v3121, %v3085
        %v3158 = vadd.f32 %v3122, %v3086
        %v3159 = vadd.f32 %v3123, %v3087
        %v3160 = vadd.f32 %v3124, %v3088
        %v3161 = vadd.f32 %v3125, %v3089
        %v3162 = vadd.f32 %v3126, %v3090
        %v3163 = vadd.f32 %v3127, %v3091
        %v3164 = vadd.f32 %v3128, %v3092
        %v3165 = vadd.f32 %v3129, %v3093
        %v3166 = vadd.f32 %v3130, %v3094
        %v3167 = vadd.f32 %v3131, %v3095
        %v3168 = vadd.f32 %v3132, %v3096
        %v3169 = vadd.f32 %v3133, %v3097
        %v3170 = vadd.f32 %v3134, %v3098
        %v3171 = vadd.f32 %v3135, %v3099
        %v3172 = vadd.f32 %v3136, %v3100
        %v3173 = vadd.f32 %v3137, %v3101
        %v3174 = vadd.f32 %v3138, %v3102
        %v3175 = vadd.f32 %v3139, %v3103
        %v3176 = vadd.f32 %v3140, %v3104
        %v3177 = vadd.f32 %v3141, %v3105
        %3178 = vst [vmem:[#allocation2 + $0x13] sm:$0xff] %v3142
        %3179 = vst [vmem:[#allocation2 + $0x1b] sm:$0xff] %v3143
        %3180 = vst [vmem:[#allocation2 + $0x23] sm:$0xff] %v3144
        %3181 = vst [vmem:[#allocation2 + $0x2b] sm:$0xff] %v3145
        %3182 = vst [vmem:[#allocation2 + $0x33] sm:$0xff] %v3146
        %3183 = vst [vmem:[#allocation2 + $0x3b] sm:$0xff] %v3147
        %3184 = vst [vmem:[#allocation2 + $0x43] sm:$0xff] %v3148
        %3185 = vst [vmem:[#allocation2 + $0x4b] sm:$0xff] %v3149
        %3186 = vst [vmem:[#allocation2 + $0x53] sm:$0xff] %v3150
        %3187 = vst [vmem:[#allocation2 + $0x5b] sm:$0xff] %v3151
        %3188 = vst [vmem:[#allocation2 + $0x63] sm:$0xff] %v3152
        %3189 = vst [vmem:[#allocation2 + $0x6b] sm:$0xff] %v3153
        %3190 = vst [vmem:[#allocation2 + $0x73] sm:$0xff] %v3154
        %3191 = vst [vmem:[#allocation2 + $0x7b] sm:$0xff] %v3155
        %3192 = vst [vmem:[#allocation2 + $0x83] sm:$0xff] %v3156
        %3193 = vst [vmem:[#allocation2 + $0x8b] sm:$0xff] %v3157
        %3194 = vst [vmem:[#allocation2 + $0x93] sm:$0xff] %v3158
        %3195 = vst [vmem:[#allocation2 + $0x9b] sm:$0xff] %v3159
        %3196 = vst [vmem:[#allocation2 + $0xa3] sm:$0xff] %v3160
        %3197 = vst [vmem:[#allocation2 + $0xab] sm:$0xff] %v3161
        %3198 = vst [vmem:[#allocation2 + $0xb3] sm:$0xff] %v3162
        %3199 = vst [vmem:[#allocation2 + $0xbb] sm:$0xff] %v3163
        %3200 = vst [vmem:[#allocation2 + $0xc3] sm:$0xff] %v3164
        %3201 = vst [vmem:[#allocation2 + $0xcb] sm:$0xff] %v3165
        %3202 = vst [vmem:[#allocation2 + $0xd3] sm:$0xff] %v3166
        %3203 = vst [vmem:[#allocation2 + $0xdb] sm:$0xff] %v3167
        %3204 = vst [vmem:[#allocation2 + $0xe3] sm:$0xff] %v3168
        %3205 = vst [vmem:[#allocation2 + $0xeb] sm:$0xff] %v3169
        %3206 = vst [vmem:[#allocation2 + $0xf3] sm:$0xff] %v3170
        %3207 = vst [vmem:[#allocation2 + $0xfb] sm:$0xff] %v3171
        %3208 = vst [vmem:[#allocation2 + $0x103] sm:$0xff] %v3172
        %3209 = vst [vmem:[#allocation2 + $0x10b] sm:$0xff] %v3173
        %3210 = vst [vmem:[#allocation2 + $0x113] sm:$0xff] %v3174
        %3211 = vst [vmem:[#allocation2 + $0x11b] sm:$0xff] %v3175
        %3212 = vst [vmem:[#allocation2 + $0x123] sm:$0xff] %v3176
        %3213 = vst [vmem:[#allocation2 + $0x12b] sm:$0x3f] %v3177
        %p3214 = scmp.eq.s32.totalorder %s24, 2
        // Predicated region
        $region49: #{tpu_custom_call.1} parent=39 // pred_check
          %p3215 = pneg %p3214
        $region50: #{tpu_custom_call.1} parent=39 // pred_check_branch
          %3217 = sbr.rel (%p3215) target = $region52
        $region51: #{tpu_custom_call.1} parent=39 // pred_region
          %v3218 = vld [vmem:[#allocation2] sm:$0xff]
          %v3219 = vld [vmem:[#allocation2 + $0x8] sm:$0xff]
          %v3220 = vld [vmem:[#allocation2 + $0x10] sm:$0xff]
          %v3221 = vld [vmem:[#allocation2 + $0x18] sm:$0xff]
          %v3222 = vld [vmem:[#allocation2 + $0x20] sm:$0xff]
          %v3223 = vld [vmem:[#allocation2 + $0x28] sm:$0xff]
          %v3224 = vld [vmem:[#allocation2 + $0x30] sm:$0xff]
          %v3225 = vld [vmem:[#allocation2 + $0x38] sm:$0xff]
          %v3226 = vld [vmem:[#allocation2 + $0x40] sm:$0xff]
          %v3227 = vld [vmem:[#allocation2 + $0x48] sm:$0xff]
          %v3228 = vld [vmem:[#allocation2 + $0x50] sm:$0xff]
          %v3229 = vld [vmem:[#allocation2 + $0x58] sm:$0xff]
          %v3230 = vld [vmem:[#allocation2 + $0x60] sm:$0xff]
          %v3231 = vld [vmem:[#allocation2 + $0x68] sm:$0xff]
          %v3232 = vld [vmem:[#allocation2 + $0x70] sm:$0xff]
          %v3233 = vld [vmem:[#allocation2 + $0x78] sm:$0xff]
          %v3234 = vld [vmem:[#allocation2 + $0x80] sm:$0xff]
          %v3235 = vld [vmem:[#allocation2 + $0x88] sm:$0xff]
          %v3236 = vld [vmem:[#allocation2 + $0x90] sm:$0xff]
          %v3237 = vld [vmem:[#allocation2 + $0x98] sm:$0xff]
          %v3238 = vld [vmem:[#allocation2 + $0xa0] sm:$0xff]
          %v3239 = vld [vmem:[#allocation2 + $0xa8] sm:$0xff]
          %v3240 = vld [vmem:[#allocation2 + $0xb0] sm:$0xff]
          %v3241 = vld [vmem:[#allocation2 + $0xb8] sm:$0xff]
          %v3242 = vld [vmem:[#allocation2 + $0xc0] sm:$0xff]
          %v3243 = vld [vmem:[#allocation2 + $0xc8] sm:$0xff]
          %v3244 = vld [vmem:[#allocation2 + $0xd0] sm:$0xff]
          %v3245 = vld [vmem:[#allocation2 + $0xd8] sm:$0xff]
          %v3246 = vld [vmem:[#allocation2 + $0xe0] sm:$0xff]
          %v3247 = vld [vmem:[#allocation2 + $0xe8] sm:$0xff]
          %v3248 = vld [vmem:[#allocation2 + $0xf0] sm:$0xff]
          %v3249 = vld [vmem:[#allocation2 + $0xf8] sm:$0xff]
          %v3250 = vld [vmem:[#allocation2 + $0x100] sm:$0xff]
          %v3251 = vld [vmem:[#allocation2 + $0x108] sm:$0xff]
          %v3252 = vld [vmem:[#allocation2 + $0x110] sm:$0xff]
          %v3253 = vld [vmem:[#allocation2 + $0x118] sm:$0xff]
          %v3254 = vld [vmem:[#allocation2 + $0x120] sm:$0xff]
          %v3255 = vld [vmem:[#allocation2 + $0x128] sm:$0xff]
          %v3256 = vld [vmem:[#allocation2 + $0x130] sm:$0xff]
          %v3257 = vld [vmem:[#allocation2 + $0x138] sm:$0xff]
          %v3258 = vld [vmem:[#allocation2 + $0x140] sm:$0xf]
          %3259 = vst [vmem:[%s306] sm:$0xff] %v3218
          %3260 = vst [vmem:[%s306 + $0x8] sm:$0xff] %v3219
          %3261 = vst [vmem:[%s306 + $0x10] sm:$0xff] %v3220
          %3262 = vst [vmem:[%s306 + $0x18] sm:$0xff] %v3221
          %3263 = vst [vmem:[%s306 + $0x20] sm:$0xff] %v3222
          %3264 = vst [vmem:[%s306 + $0x28] sm:$0xff] %v3223
          %3265 = vst [vmem:[%s306 + $0x30] sm:$0xff] %v3224
          %3266 = vst [vmem:[%s306 + $0x38] sm:$0xff] %v3225
          %3267 = vst [vmem:[%s306 + $0x40] sm:$0xff] %v3226
          %3268 = vst [vmem:[%s306 + $0x48] sm:$0xff] %v3227
          %3269 = vst [vmem:[%s306 + $0x50] sm:$0xff] %v3228
          %3270 = vst [vmem:[%s306 + $0x58] sm:$0xff] %v3229
          %3271 = vst [vmem:[%s306 + $0x60] sm:$0xff] %v3230
          %3272 = vst [vmem:[%s306 + $0x68] sm:$0xff] %v3231
          %3273 = vst [vmem:[%s306 + $0x70] sm:$0xff] %v3232
          %3274 = vst [vmem:[%s306 + $0x78] sm:$0xff] %v3233
          %3275 = vst [vmem:[%s306 + $0x80] sm:$0xff] %v3234
          %3276 = vst [vmem:[%s306 + $0x88] sm:$0xff] %v3235
          %3277 = vst [vmem:[%s306 + $0x90] sm:$0xff] %v3236
          %3278 = vst [vmem:[%s306 + $0x98] sm:$0xff] %v3237
          %3279 = vst [vmem:[%s306 + $0xa0] sm:$0xff] %v3238
          %3280 = vst [vmem:[%s306 + $0xa8] sm:$0xff] %v3239
          %3281 = vst [vmem:[%s306 + $0xb0] sm:$0xff] %v3240
          %3282 = vst [vmem:[%s306 + $0xb8] sm:$0xff] %v3241
          %3283 = vst [vmem:[%s306 + $0xc0] sm:$0xff] %v3242
          %3284 = vst [vmem:[%s306 + $0xc8] sm:$0xff] %v3243
          %3285 = vst [vmem:[%s306 + $0xd0] sm:$0xff] %v3244
          %3286 = vst [vmem:[%s306 + $0xd8] sm:$0xff] %v3245
          %3287 = vst [vmem:[%s306 + $0xe0] sm:$0xff] %v3246
          %3288 = vst [vmem:[%s306 + $0xe8] sm:$0xff] %v3247
          %3289 = vst [vmem:[%s306 + $0xf0] sm:$0xff] %v3248
          %3290 = vst [vmem:[%s306 + $0xf8] sm:$0xff] %v3249
          %3291 = vst [vmem:[%s306 + $0x100] sm:$0xff] %v3250
          %3292 = vst [vmem:[%s306 + $0x108] sm:$0xff] %v3251
          %3293 = vst [vmem:[%s306 + $0x110] sm:$0xff] %v3252
          %3294 = vst [vmem:[%s306 + $0x118] sm:$0xff] %v3253
          %3295 = vst [vmem:[%s306 + $0x120] sm:$0xff] %v3254
          %3296 = vst [vmem:[%s306 + $0x128] sm:$0xff] %v3255
          %3297 = vst [vmem:[%s306 + $0x130] sm:$0xff] %v3256
          %3298 = vst [vmem:[%s306 + $0x138] sm:$0xff] %v3257
          %3299 = vst [vmem:[%s306 + $0x140] sm:$0xf] %v3258
        $region52: #{tpu_custom_call.1} parent=39 // pred_fallthru
          _
        %p3300 = scmp.lt.s32.totalorder %s23, 1
        %s3301 = scalar_select %p3300, %s23, 1
        %s3302 = smul.addr %s3301, 41
        %s3303 = smul.addr %s3302, 8
        %s3304 = scalar_lea.vmem %s5, %s3303
        // Predicated region
        $region53: #{tpu_custom_call.1} parent=39 // pred_check
          %p3305 = pneg %p174
        $region54: #{tpu_custom_call.1} parent=39 // pred_check_branch
          %3307 = sbr.rel (%p3305) target = $region56
        $region55: #{tpu_custom_call.1} parent=39 // pred_region
          _
        $region56: #{tpu_custom_call.1} parent=39 // pred_fallthru
          _
      $region40: #{tpu_custom_call.1} parent=5 // pred_fallthru
        _
      %p3308 = scmp.le.s32.totalorder 2, %s14
      // Predicated region
      $region57: #{tpu_custom_call.1} parent=5 // pred_check
        %p3309 = pneg %p3308
      $region58: #{tpu_custom_call.1} parent=5 // pred_check_branch
        %3311 = sbr.rel (%p3309) target = $region60
      $region59: #{tpu_custom_call.1} parent=5 // pred_region
        %s3312 = ssub.s32 %s14, 2
        // Predicated region
        $region61: #{tpu_custom_call.1} parent=59 // pred_check
          %p3313 = pneg %p180
        $region62: #{tpu_custom_call.1} parent=59 // pred_check_branch
          %3315 = sbr.rel (%p3313) target = $region64
        $region63: #{tpu_custom_call.1} parent=59 // pred_region
          %p3316 = scmp.lt.s32.totalorder %s25, 1
          %s3317 = scalar_select %p3316, %s25, 1
          %s3318 = smul.addr %s3317, 41
          %s3319 = smul.addr %s3318, 8
          %s3320 = scalar_lea.vmem %s5, %s3319
        $region64: #{tpu_custom_call.1} parent=59 // pred_fallthru
          _
      $region60: #{tpu_custom_call.1} parent=5 // pred_fallthru
        _
    $region6: #{tpu_custom_call.1} parent=1 // loop_footer
      %s18 = sadd.s32 1, %s14
    $region7: #{tpu_custom_call.1} parent=1 // loop_footer_branch
      %13 = sbr.rel target = $region3
    $region8: #{tpu_custom_call.1} parent=1 // loop_exit
      _
    %3321 = vsyncpa [#allocation5], 1
    %s3322 = scalar_lea.sflag [#allocation5], 1
    %3323 = vsyncpa %s3322, 1

</llo_original>
